<compile_context>
chip_gen: v5e
topology: v5e:2x2
jax: 0.10.0
libtpu: 0.0.40
codegen_flags: <defaults>
</compile_context>

<pallas_src>
import functools

import jax
import jax.numpy as jnp
from jax.experimental import pallas as pl
from jax.experimental.pallas import tpu as pltpu

# SELU constants (match torch.nn.functional.selu)
_SELU_ALPHA = 1.6732632423543772848170429916717
_SELU_SCALE = 1.0507009873554804934193349852946


def _selu(x):
    return _SELU_SCALE * jnp.where(x > 0, x, _SELU_ALPHA * (jnp.exp(x) - 1.0))


def _round_up(x, m):
    return ((x + m - 1) // m) * m


def _decoder_kernel(z_ref, w1_ref, b1_ref, w2_ref, b2_ref, out_ref):
    # fc1 + SELU (f32 accumulation regardless of operand dtype)
    h = jnp.dot(z_ref[...], w1_ref[...], preferred_element_type=jnp.float32)
    h = _selu(h + b1_ref[...])
    # fc2 + SELU
    h = jnp.dot(h.astype(w2_ref.dtype), w2_ref[...],
                preferred_element_type=jnp.float32)
    out_ref[...] = _selu(h + b2_ref[...]).astype(out_ref.dtype)


@functools.partial(jax.jit, static_argnames=("nc", "block_b", "use_bf16"))
def forward_linear_decoder(z, w1, b1, w2, b2, nc=1, block_b=256, use_bf16=False):
    """z: (B, Z_DIM) -> (B, nc, 64, 64).  w1: (Z_DIM, 256), w2: (256, 4096)."""
    B, Z = z.shape
    H1 = w1.shape[1]          # 256
    H2 = w2.shape[1]          # 4096

    if use_bf16:
        # Halve weight / activation DMA; dots still accumulate in f32.
        z = z.astype(jnp.bfloat16)
        w1 = w1.astype(jnp.bfloat16)
        w2 = w2.astype(jnp.bfloat16)

    # Batch tile: multiple of 8 (f32 sublane), capped at block_b.
    tb = min(block_b, _round_up(B, 8))
    b_pad = _round_up(B, tb)
    if b_pad != B:
        z = jnp.pad(z, ((0, b_pad - B), (0, 0)))
    grid = (pl.cdiv(b_pad, tb),)

    out_flat = pl.pallas_call(
        _decoder_kernel,
        out_shape=jax.ShapeDtypeStruct((b_pad, H2), jnp.float32),
        grid_spec=pltpu.PrefetchScalarGridSpec(
            num_scalar_prefetch=0,
            grid=grid,
            in_specs=[
                pl.BlockSpec((tb, Z), lambda i: (i, 0)),    # z tile (pipelined)
                pl.BlockSpec((Z, H1), lambda i: (0, 0)),    # W1 (resident)
                pl.BlockSpec((1, H1), lambda i: (0, 0)),    # b1 (resident)
                pl.BlockSpec((H1, H2), lambda i: (0, 0)),   # W2 (resident)
                pl.BlockSpec((1, H2), lambda i: (0, 0)),    # b2 (resident)
            ],
            out_specs=pl.BlockSpec((tb, H2), lambda i: (i, 0)),
        ),
        compiler_params=pltpu.CompilerParams(
            dimension_semantics=("parallel",),   # v7x: shard tiles over 2 TCs
            vmem_limit_bytes=32 << 20,           # safe on v5e/v6e/v7x with TB<=256
        ),
    )(z, w1, b1, w2, b2)

    out_flat = out_flat[:B]
    h = out_flat.reshape(-1, 1, 64, 64)
    if nc == 3:
        # Lazy broadcast instead of jnp.tile (avoid tripling HBM write traffic here).
        h = jnp.broadcast_to(h, (h.shape[0], 3, 64, 64))
    return h


def _init_params(key, z_dim):
    """Deterministic init mimicking nn.Linear's U(-1/sqrt(fan_in), 1/sqrt(fan_in))."""
    k1, k2, k3, k4 = jax.random.split(key, 4)
    bound1 = 1.0 / jnp.sqrt(jnp.float32(z_dim))
    bound2 = 1.0 / jnp.sqrt(jnp.float32(256))
    # stored as (in, out) so the kernel does z @ W (PyTorch stores (out, in))
    w1 = jax.random.uniform(k1, (z_dim, 256), jnp.float32, -bound1, bound1)
    b1 = jax.random.uniform(k2, (1, 256), jnp.float32, -bound1, bound1)
    w2 = jax.random.uniform(k3, (256, 64 * 64), jnp.float32, -bound2, bound2)
    b2 = jax.random.uniform(k4, (1, 64 * 64), jnp.float32, -bound2, bound2)
    return w1, b1, w2, b2


def _reference(z, w1, b1, w2, b2, nc=1):
    h = _selu(z @ w1 + b1)
    h = _selu(h @ w2 + b2)
    h = h.reshape(-1, 1, 64, 64)
    if nc == 3:
        h = jnp.broadcast_to(h, (h.shape[0], 3, 64, 64))
    return h


if __name__ == "__main__":
    Z_DIM = 32
    B = 8

    key = jax.random.PRNGKey(0)
    kz, kp = jax.random.split(key)
    z = jax.random.normal(kz, (B, Z_DIM), jnp.float32)
    w1, b1, w2, b2 = _init_params(kp, Z_DIM)

    # f32 path: exact parity with the reference.
    out = forward_linear_decoder(z, w1, b1, w2, b2, nc=1)
    out = jax.block_until_ready(out)
    assert out.shape == (B, 1, 64, 64), out.shape
    ref = _reference(z, w1, b1, w2, b2, nc=1)
    assert jnp.allclose(out, ref, atol=1e-4, rtol=1e-4), "mismatch vs reference"

    # Ragged batch + nc==3 path (exercises padding / slicing / broadcast glue).
    B2 = 10
    z2 = jax.random.normal(jax.random.PRNGKey(1), (B2, Z_DIM), jnp.float32)
    out3 = forward_linear_decoder(z2, w1, b1, w2, b2, nc=3)
    out3 = jax.block_until_ready(out3)
    assert out3.shape == (B2, 3, 64, 64), out3.shape
    ref3 = _reference(z2, w1, b1, w2, b2, nc=3)
    assert jnp.allclose(out3, ref3, atol=1e-4, rtol=1e-4), "mismatch vs reference (nc=3)"

    print("KERNEL_OK")
</pallas_src>

<mosaic_0001>
module attributes {stable_mosaic.version = 11 : i64} {
  func.func @_decoder_kernel(%arg0: i32, %arg1: memref<8x32xf32, #tpu.memory_space<vmem>>, %arg2: memref<32x256xf32, #tpu.memory_space<vmem>>, %arg3: memref<1x256xf32, #tpu.memory_space<vmem>>, %arg4: memref<256x4096xf32, #tpu.memory_space<vmem>>, %arg5: memref<1x4096xf32, #tpu.memory_space<vmem>>, %arg6: memref<8x4096xf32, #tpu.memory_space<vmem>>) attributes {dimension_semantics = [#tpu.dimension_semantics<parallel>], iteration_bounds = array<i64: 1>, scalar_prefetch = 0 : i64, scratch_operands = 0 : i64, tpu.core_type = #tpu.core_type<tc>, window_params = [{transform_indices = @transform_0, window_bounds = array<i64: 8, 32>}, {pipeline_mode = #tpu.pipeline_mode<synchronous>, transform_indices = @transform_1, window_bounds = array<i64: 32, 256>}, {pipeline_mode = #tpu.pipeline_mode<synchronous>, transform_indices = @transform_2, window_bounds = array<i64: 1, 256>}, {pipeline_mode = #tpu.pipeline_mode<synchronous>, transform_indices = @transform_3, window_bounds = array<i64: 256, 4096>}, {pipeline_mode = #tpu.pipeline_mode<synchronous>, transform_indices = @transform_4, window_bounds = array<i64: 1, 4096>}, {transform_indices = @transform_5, window_bounds = array<i64: 8, 4096>}]} {
    %c0 = arith.constant 0 : index
    %c0_0 = arith.constant 0 : index
    %0 = vector.load %arg1[%c0, %c0_0] : memref<8x32xf32, #tpu.memory_space<vmem>>, vector<8x32xf32>
    %c0_1 = arith.constant 0 : index
    %c0_2 = arith.constant 0 : index
    %1 = vector.load %arg2[%c0_1, %c0_2] : memref<32x256xf32, #tpu.memory_space<vmem>>, vector<32x256xf32>
    %cst = arith.constant dense<0.000000e+00> : vector<8x256xf32>
    %2 = tpu.matmul %0, %1, %cst {dimension_numbers = #tpu.dot_dimension_numbers<[1], [0], [0], [1], [0, 0, 1, 1], [], []>} : vector<8x32xf32>, vector<32x256xf32>, vector<8x256xf32> -> vector<8x256xf32>
    %c0_3 = arith.constant 0 : index
    %c0_4 = arith.constant 0 : index
    %3 = vector.load %arg3[%c0_3, %c0_4] : memref<1x256xf32, #tpu.memory_space<vmem>>, vector<1x256xf32>
    %4 = vector.broadcast %3 : vector<1x256xf32> to vector<8x256xf32>
    %5 = arith.addf %2, %4 : vector<8x256xf32>
    %cst_5 = arith.constant 0.000000e+00 : f32
    %6 = vector.broadcast %cst_5 : f32 to vector<8x256xf32>
    %7 = arith.cmpf ogt, %5, %6 : vector<8x256xf32>
    %8 = math.exp %5 : vector<8x256xf32>
    %cst_6 = arith.constant 1.000000e+00 : f32
    %9 = vector.broadcast %cst_6 : f32 to vector<8x256xf32>
    %10 = arith.subf %8, %9 : vector<8x256xf32>
    %cst_7 = arith.constant 1.67326319 : f32
    %11 = vector.broadcast %cst_7 : f32 to vector<8x256xf32>
    %12 = arith.mulf %11, %10 : vector<8x256xf32>
    %13 = arith.select %7, %5, %12 : vector<8x256xi1>, vector<8x256xf32>
    %cst_8 = arith.constant 1.05070102 : f32
    %14 = vector.broadcast %cst_8 : f32 to vector<8x256xf32>
    %15 = arith.mulf %14, %13 : vector<8x256xf32>
    %c0_9 = arith.constant 0 : index
    %c0_10 = arith.constant 0 : index
    %16 = vector.load %arg4[%c0_9, %c0_10] : memref<256x4096xf32, #tpu.memory_space<vmem>>, vector<256x4096xf32>
    %cst_11 = arith.constant dense<0.000000e+00> : vector<8x4096xf32>
    %17 = tpu.matmul %15, %16, %cst_11 {dimension_numbers = #tpu.dot_dimension_numbers<[1], [0], [0], [1], [0, 0, 1, 1], [], []>} : vector<8x256xf32>, vector<256x4096xf32>, vector<8x4096xf32> -> vector<8x4096xf32>
    %c0_12 = arith.constant 0 : index
    %c0_13 = arith.constant 0 : index
    %18 = vector.load %arg5[%c0_12, %c0_13] : memref<1x4096xf32, #tpu.memory_space<vmem>>, vector<1x4096xf32>
    %19 = vector.broadcast %18 : vector<1x4096xf32> to vector<8x4096xf32>
    %20 = arith.addf %17, %19 : vector<8x4096xf32>
    %cst_14 = arith.constant 0.000000e+00 : f32
    %21 = vector.broadcast %cst_14 : f32 to vector<8x4096xf32>
    %22 = arith.cmpf ogt, %20, %21 : vector<8x4096xf32>
    %23 = math.exp %20 : vector<8x4096xf32>
    %cst_15 = arith.constant 1.000000e+00 : f32
    %24 = vector.broadcast %cst_15 : f32 to vector<8x4096xf32>
    %25 = arith.subf %23, %24 : vector<8x4096xf32>
    %cst_16 = arith.constant 1.67326319 : f32
    %26 = vector.broadcast %cst_16 : f32 to vector<8x4096xf32>
    %27 = arith.mulf %26, %25 : vector<8x4096xf32>
    %28 = arith.select %22, %20, %27 : vector<8x4096xi1>, vector<8x4096xf32>
    %cst_17 = arith.constant 1.05070102 : f32
    %29 = vector.broadcast %cst_17 : f32 to vector<8x4096xf32>
    %30 = arith.mulf %29, %28 : vector<8x4096xf32>
    %c0_18 = arith.constant 0 : index
    %c0_19 = arith.constant 0 : index
    %31 = vector.load %arg6[%c0_18, %c0_19] : memref<8x4096xf32, #tpu.memory_space<vmem>>, vector<8x4096xf32>
    tpu.vector_store %arg6[%c0_18, %c0_19], %30 {strides = array<i32>} : memref<8x4096xf32, #tpu.memory_space<vmem>>, vector<8x4096xf32>,
    return
  }
  func.func @transform_0(%arg0: i32) -> (i32, i32) {
    %c0_i32 = arith.constant 0 : i32
    %c0_i32_0 = arith.constant 0 : i32
    return %arg0, %c0_i32 : i32, i32
  }
  func.func @transform_1(%arg0: i32) -> (i32, i32) {
    %c0_i32 = arith.constant 0 : i32
    %c0_i32_0 = arith.constant 0 : i32
    %c0_i32_1 = arith.constant 0 : i32
    return %c0_i32, %c0_i32_0 : i32, i32
  }
  func.func @transform_2(%arg0: i32) -> (i32, i32) {
    %c0_i32 = arith.constant 0 : i32
    %c0_i32_0 = arith.constant 0 : i32
    %c0_i32_1 = arith.constant 0 : i32
    return %c0_i32, %c0_i32_0 : i32, i32
  }
  func.func @transform_3(%arg0: i32) -> (i32, i32) {
    %c0_i32 = arith.constant 0 : i32
    %c0_i32_0 = arith.constant 0 : i32
    %c0_i32_1 = arith.constant 0 : i32
    return %c0_i32, %c0_i32_0 : i32, i32
  }
  func.func @transform_4(%arg0: i32) -> (i32, i32) {
    %c0_i32 = arith.constant 0 : i32
    %c0_i32_0 = arith.constant 0 : i32
    %c0_i32_1 = arith.constant 0 : i32
    return %c0_i32, %c0_i32_0 : i32, i32
  }
  func.func @transform_5(%arg0: i32) -> (i32, i32) {
    %c0_i32 = arith.constant 0 : i32
    %c0_i32_0 = arith.constant 0 : i32
    return %arg0, %c0_i32 : i32, i32
  }
}

</mosaic_0001>

<llo_original>
// kernel: forward_linear_decoder.1
$region0: #{forward_linear_decoder.1}
  #allocation0 [shape = 'u32[]', space=smem, size = 0x4, offset = 0x4, fixed_abs, tag = 'smem constant byte address 0x4 - core index']
  #allocation1 [shape = 'u32[72,128]{1,0:T(1,128)}', space=vmem, size = 0x9000, scoped, tag = 'internal scratch']
  %s0 = inlined_call_operand.hbm [shape: f32[8,32], index: 0, kind: input, shape index: {}]
  %s1 = inlined_call_operand.hbm [shape: f32[32,256], index: 1, kind: input, shape index: {}]
  %s2 = inlined_call_operand.hbm [shape: f32[1,256], index: 2, kind: input, shape index: {}]
  %s3 = inlined_call_operand.hbm [shape: f32[256,4096], index: 3, kind: input, shape index: {}]
  %s4 = inlined_call_operand.hbm [shape: f32[1,4096], index: 4, kind: input, shape index: {}]
  %s5 = inlined_call_operand.vmem [shape: f32[8,4096], index: 5, kind: output, shape index: {}]
  %s6 = sld [smem:[#allocation0]]
  $region50: #{forward_linear_decoder.1} parent=0
    _
  %s8 = ssub.s32 1, %s6
  %s9 = scalar_select 0, %s8, %s6
  $region1: #{forward_linear_decoder.1} parent=0
    #allocation2 [shape = 'u8[4096]{0}', space=vmem, size = 0x1000, scoped, tag = 'input window, operand 0, single buffered']
    #allocation3 [shape = 's32[1]{0}', space=sflag, size = 0x4, scoped, tag = 'scoped memory for forward_linear_decoder.1']
    #allocation4 [shape = 'u8[32768]{0}', space=vmem, size = 0x8000, scoped, tag = 'input window, operand 1, single buffered']
    #allocation5 [shape = 's32[1]{0}', space=sflag, size = 0x4, scoped, tag = 'scoped memory for forward_linear_decoder.1']
    #allocation6 [shape = 'u8[1024]{0}', space=vmem, size = 0x400, scoped, tag = 'input window, operand 2, single buffered']
    #allocation7 [shape = 'u8[4194304]{0}', space=vmem, size = 0x400000, scoped, tag = 'input window, operand 3, single buffered']
    #allocation8 [shape = 's32[1]{0}', space=sflag, size = 0x4, scoped, tag = 'scoped memory for forward_linear_decoder.1']
    #allocation9 [shape = 'u8[16384]{0}', space=vmem, size = 0x4000, scoped, tag = 'input window, operand 4, single buffered']
    %10 = vsyncpa [#allocation3], 0
    %11 = vsyncpa [#allocation5], 0
    %12 = vsyncpa [#allocation8], 0
    // Predicated region
    $region2: #{forward_linear_decoder.1} parent=1 // pred_check
      _
    $region3: #{forward_linear_decoder.1} parent=1 // pred_check_branch
      %14 = sbr.rel (0) target = $region5
    $region4: #{forward_linear_decoder.1} parent=1 // pred_region
      %16 = vsyncadd [#allocation3], 0
      %s18 = sshll.u32 %s0, 4
      %s19 = int_to_ptr.hbm [resolvable:$true] %s18
      %s20 = sshll.u32 [#allocation2], 4
      %s21 = int_to_ptr.vmem [resolvable:$true] %s20
      %23 = dma.hbm_to_vmem [thread:$0]  %s19, 128, %s21, [#allocation3]
    $region5: #{forward_linear_decoder.1} parent=1 // pred_fallthru
      _
    // Predicated region
    $region6: #{forward_linear_decoder.1} parent=1 // pred_check
      _
    $region7: #{forward_linear_decoder.1} parent=1 // pred_check_branch
      %25 = sbr.rel (0) target = $region9
    $region8: #{forward_linear_decoder.1} parent=1 // pred_region
      %27 = vsyncadd [#allocation5], 0
      %s28 = sshll.u32 %s1, 4
      %s29 = int_to_ptr.hbm [resolvable:$true] %s28
      %s30 = sshll.u32 [#allocation4], 4
      %s31 = int_to_ptr.vmem [resolvable:$true] %s30
      %36 = dma.hbm_to_vmem [thread:$0]  %s29, 1024, %s31, [#allocation5], 256, 256, 16
    $region9: #{forward_linear_decoder.1} parent=1 // pred_fallthru
      _
    // Predicated region
    $region10: #{forward_linear_decoder.1} parent=1 // pred_check
      _
    $region11: #{forward_linear_decoder.1} parent=1 // pred_check_branch
      %38 = sbr.rel (0) target = $region13
    $region12: #{forward_linear_decoder.1} parent=1 // pred_region
      %40 = vsyncadd [#allocation5], 0
      %s42 = sshll.u32 %s2, 4
      %s43 = int_to_ptr.hbm [resolvable:$true] %s42
      %s44 = sshll.u32 [#allocation6], 4
      %s45 = int_to_ptr.vmem [resolvable:$true] %s44
      %47 = dma.hbm_to_vmem [thread:$0]  %s43, 32, %s45, [#allocation5]
    $region13: #{forward_linear_decoder.1} parent=1 // pred_fallthru
      _
    // Predicated region
    $region14: #{forward_linear_decoder.1} parent=1 // pred_check
      _
    $region15: #{forward_linear_decoder.1} parent=1 // pred_check_branch
      %49 = sbr.rel (0) target = $region17
    $region16: #{forward_linear_decoder.1} parent=1 // pred_region
      %51 = vsyncadd [#allocation8], 0
      %s52 = sshll.u32 %s3, 4
      %s53 = int_to_ptr.hbm [resolvable:$true] %s52
      %s54 = sshll.u32 [#allocation7], 4
      %s55 = int_to_ptr.vmem [resolvable:$true] %s54
      %60 = dma.hbm_to_vmem [thread:$0]  %s53, 131072, %s55, [#allocation8], 4096, 4096, 256
    $region17: #{forward_linear_decoder.1} parent=1 // pred_fallthru
      _
    // Predicated region
    $region18: #{forward_linear_decoder.1} parent=1 // pred_check
      _
    $region19: #{forward_linear_decoder.1} parent=1 // pred_check_branch
      %62 = sbr.rel (0) target = $region21
    $region20: #{forward_linear_decoder.1} parent=1 // pred_region
      %64 = vsyncadd [#allocation8], 0
      %s66 = sshll.u32 %s4, 4
      %s67 = int_to_ptr.hbm [resolvable:$true] %s66
      %s68 = sshll.u32 [#allocation9], 4
      %s69 = int_to_ptr.vmem [resolvable:$true] %s68
      %71 = dma.hbm_to_vmem [thread:$0]  %s67, 512, %s69, [#allocation8]
    $region21: #{forward_linear_decoder.1} parent=1 // pred_fallthru
      _
    // Predicated region
    $region22: #{forward_linear_decoder.1} parent=1 // pred_check
      _
    $region23: #{forward_linear_decoder.1} parent=1 // pred_check_branch
      %73 = sbr.rel (0) target = $region25
    $region24: #{forward_linear_decoder.1} parent=1 // pred_region
      %75 = dma.done [#allocation3], 128
    $region25: #{forward_linear_decoder.1} parent=1 // pred_fallthru
      _
    // Predicated region
    $region26: #{forward_linear_decoder.1} parent=1 // pred_check
      _
    $region27: #{forward_linear_decoder.1} parent=1 // pred_check_branch
      %77 = sbr.rel (0) target = $region29
    $region28: #{forward_linear_decoder.1} parent=1 // pred_region
      %79 = dma.done [#allocation5], 1024
    $region29: #{forward_linear_decoder.1} parent=1 // pred_fallthru
      _
    // Predicated region
    $region30: #{forward_linear_decoder.1} parent=1 // pred_check
      _
    $region31: #{forward_linear_decoder.1} parent=1 // pred_check_branch
      %81 = sbr.rel (0) target = $region33
    $region32: #{forward_linear_decoder.1} parent=1 // pred_region
      %83 = dma.done [#allocation5], 32
    $region33: #{forward_linear_decoder.1} parent=1 // pred_fallthru
      _
    // Predicated region
    $region34: #{forward_linear_decoder.1} parent=1 // pred_check
      _
    $region35: #{forward_linear_decoder.1} parent=1 // pred_check_branch
      %85 = sbr.rel (0) target = $region37
    $region36: #{forward_linear_decoder.1} parent=1 // pred_region
      %87 = dma.done [#allocation8], 131072
    $region37: #{forward_linear_decoder.1} parent=1 // pred_fallthru
      _
    // Predicated region
    $region38: #{forward_linear_decoder.1} parent=1 // pred_check
      _
    $region39: #{forward_linear_decoder.1} parent=1 // pred_check_branch
      %89 = sbr.rel (0) target = $region41
    $region40: #{forward_linear_decoder.1} parent=1 // pred_region
      %91 = dma.done [#allocation8], 512
    $region41: #{forward_linear_decoder.1} parent=1 // pred_fallthru
      _
    %v92 = vld [vmem:[#allocation2] sm:$0xff]
    %v93 = vld [vmem:[#allocation4] sm:$0xff]
    %v94 = vld [vmem:[#allocation4 + $0x8] sm:$0xff]
    %v95 = vld [vmem:[#allocation4 + $0x10] sm:$0xff]
    %v96 = vld [vmem:[#allocation4 + $0x18] sm:$0xff]
    %v97 = vld [vmem:[#allocation4 + $0x20] sm:$0xff]
    %v98 = vld [vmem:[#allocation4 + $0x28] sm:$0xff]
    %v99 = vld [vmem:[#allocation4 + $0x30] sm:$0xff]
    %v100 = vld [vmem:[#allocation4 + $0x38] sm:$0xff]
    %v101 = vld [vmem:[#allocation6] sm:$0x3]
    %v103 = vperm.slane %v101, 0
    %v104 = vperm.slane %v101, 1
    %vm107 = vcmask 261120
    %v109 = vsel %vm107, %v92, 0
    %111 = vmatpush.msra.mxu0 0.0
    %112 = vmatpush.msra.mxu0 0.0
    %113 = vmatpush.msra.mxu0 0.0
    %114 = vmatpush.msra.mxu0 0.0
    %115 = vmatpush.msra.mxu0 0.0
    %116 = vmatpush.msra.mxu0 0.0
    %117 = vmatpush.msra.mxu0 0.0
    %118 = vmatpush.msra.mxu0 0.0
    %119 = vmatpush.msra.mxu0 0.0
    %120 = vmatpush.msra.mxu0 0.0
    %121 = vmatpush.msra.mxu0 0.0
    %122 = vmatpush.msra.mxu0 0.0
    %123 = vmatpush.msra.mxu0 %v99
    %124 = vmatpush.msra.mxu0 %v97
    %125 = vmatpush.msra.mxu0 %v95
    %126 = vmatpush.msra.mxu0 %v93
    %127 = vmatmul.f32.gmra.mxu0 %v109
    %v128 = vpop.f32.mrf.mxu0
    %v129 = vadd.f32 %v103, %v128
    %130 = vdwg.mxu0
    %131 = vmatpush.msra.mxu0 0.0
    %132 = vmatpush.msra.mxu0 0.0
    %133 = vmatpush.msra.mxu0 0.0
    %134 = vmatpush.msra.mxu0 0.0
    %135 = vmatpush.msra.mxu0 0.0
    %136 = vmatpush.msra.mxu0 0.0
    %137 = vmatpush.msra.mxu0 0.0
    %138 = vmatpush.msra.mxu0 0.0
    %139 = vmatpush.msra.mxu0 0.0
    %140 = vmatpush.msra.mxu0 0.0
    %141 = vmatpush.msra.mxu0 0.0
    %142 = vmatpush.msra.mxu0 0.0
    %143 = vmatpush.msra.mxu0 %v100
    %144 = vmatpush.msra.mxu0 %v98
    %145 = vmatpush.msra.mxu0 %v96
    %146 = vmatpush.msra.mxu0 %v94
    %147 = vmatmul.f32.gmra.mxu0 %v109
    %v148 = vpop.f32.mrf.mxu0
    %v149 = vadd.f32 %v104, %v148
    %150 = vdwg.mxu0
    %vm151 = vcmp.gt.f32.partialorder %v129, 0.0
    %vm152 = vcmp.gt.f32.partialorder %v149, 0.0
    %v153 = vmul.f32 %v129, 1.442695
    %v154 = vpow.pop %v153
    %v155 = vmul.f32 %v149, 1.442695
    %v156 = vpow.pop %v155
    %v157 = vsub.f32 %v154, 1.0
    %v158 = vsub.f32 %v156, 1.0
    %v159 = vmul.f32 %v157, 1.6732632
    %v160 = vmul.f32 %v158, 1.6732632
    %v161 = vsel %vm151, %v129, %v159
    %v162 = vsel %vm152, %v149, %v160
    %v163 = vmul.f32 %v161, 1.050701
    %v164 = vmul.f32 %v162, 1.050701
    %v165 = vld [vmem:[#allocation7] sm:$0xff]
    %v166 = vld [vmem:[#allocation7 + $0x8] sm:$0xff]
    %v167 = vld [vmem:[#allocation7 + $0x10] sm:$0xff]
    %v168 = vld [vmem:[#allocation7 + $0x18] sm:$0xff]
    %v169 = vld [vmem:[#allocation7 + $0x20] sm:$0xff]
    %v170 = vld [vmem:[#allocation7 + $0x28] sm:$0xff]
    %v171 = vld [vmem:[#allocation7 + $0x30] sm:$0xff]
    %v172 = vld [vmem:[#allocation7 + $0x38] sm:$0xff]
    %v173 = vld [vmem:[#allocation7 + $0x40] sm:$0xff]
    %v174 = vld [vmem:[#allocation7 + $0x48] sm:$0xff]
    %v175 = vld [vmem:[#allocation7 + $0x50] sm:$0xff]
    %v176 = vld [vmem:[#allocation7 + $0x58] sm:$0xff]
    %v177 = vld [vmem:[#allocation7 + $0x60] sm:$0xff]
    %v178 = vld [vmem:[#allocation7 + $0x68] sm:$0xff]
    %v179 = vld [vmem:[#allocation7 + $0x70] sm:$0xff]
    %v180 = vld [vmem:[#allocation7 + $0x78] sm:$0xff]
    %v181 = vld [vmem:[#allocation7 + $0x80] sm:$0xff]
    %v182 = vld [vmem:[#allocation7 + $0x88] sm:$0xff]
    %v183 = vld [vmem:[#allocation7 + $0x90] sm:$0xff]
    %v184 = vld [vmem:[#allocation7 + $0x98] sm:$0xff]
    %v185 = vld [vmem:[#allocation7 + $0xa0] sm:$0xff]
    %v186 = vld [vmem:[#allocation7 + $0xa8] sm:$0xff]
    %v187 = vld [vmem:[#allocation7 + $0xb0] sm:$0xff]
    %v188 = vld [vmem:[#allocation7 + $0xb8] sm:$0xff]
    %v189 = vld [vmem:[#allocation7 + $0xc0] sm:$0xff]
    %v190 = vld [vmem:[#allocation7 + $0xc8] sm:$0xff]
    %v191 = vld [vmem:[#allocation7 + $0xd0] sm:$0xff]
    %v192 = vld [vmem:[#allocation7 + $0xd8] sm:$0xff]
    %v193 = vld [vmem:[#allocation7 + $0xe0] sm:$0xff]
    %v194 = vld [vmem:[#allocation7 + $0xe8] sm:$0xff]
    %v195 = vld [vmem:[#allocation7 + $0xf0] sm:$0xff]
    %v196 = vld [vmem:[#allocation7 + $0xf8] sm:$0xff]
    %v197 = vld [vmem:[#allocation7 + $0x100] sm:$0xff]
    %v198 = vld [vmem:[#allocation7 + $0x108] sm:$0xff]
    %v199 = vld [vmem:[#allocation7 + $0x110] sm:$0xff]
    %v200 = vld [vmem:[#allocation7 + $0x118] sm:$0xff]
    %v201 = vld [vmem:[#allocation7 + $0x120] sm:$0xff]
    %v202 = vld [vmem:[#allocation7 + $0x128] sm:$0xff]
    %v203 = vld [vmem:[#allocation7 + $0x130] sm:$0xff]
    %v204 = vld [vmem:[#allocation7 + $0x138] sm:$0xff]
    %v205 = vld [vmem:[#allocation7 + $0x140] sm:$0xff]
    %v206 = vld [vmem:[#allocation7 + $0x148] sm:$0xff]
    %v207 = vld [vmem:[#allocation7 + $0x150] sm:$0xff]
    %v208 = vld [vmem:[#allocation7 + $0x158] sm:$0xff]
    %v209 = vld [vmem:[#allocation7 + $0x160] sm:$0xff]
    %v210 = vld [vmem:[#allocation7 + $0x168] sm:$0xff]
    %v211 = vld [vmem:[#allocation7 + $0x170] sm:$0xff]
    %v212 = vld [vmem:[#allocation7 + $0x178] sm:$0xff]
    %v213 = vld [vmem:[#allocation7 + $0x180] sm:$0xff]
    %v214 = vld [vmem:[#allocation7 + $0x188] sm:$0xff]
    %v215 = vld [vmem:[#allocation7 + $0x190] sm:$0xff]
    %v216 = vld [vmem:[#allocation7 + $0x198] sm:$0xff]
    %v217 = vld [vmem:[#allocation7 + $0x1a0] sm:$0xff]
    %v218 = vld [vmem:[#allocation7 + $0x1a8] sm:$0xff]
    %v219 = vld [vmem:[#allocation7 + $0x1b0] sm:$0xff]
    %v220 = vld [vmem:[#allocation7 + $0x1b8] sm:$0xff]
    %v221 = vld [vmem:[#allocation7 + $0x1c0] sm:$0xff]
    %v222 = vld [vmem:[#allocation7 + $0x1c8] sm:$0xff]
    %v223 = vld [vmem:[#allocation7 + $0x1d0] sm:$0xff]
    %v224 = vld [vmem:[#allocation7 + $0x1d8] sm:$0xff]
    %v225 = vld [vmem:[#allocation7 + $0x1e0] sm:$0xff]
    %v226 = vld [vmem:[#allocation7 + $0x1e8] sm:$0xff]
    %v227 = vld [vmem:[#allocation7 + $0x1f0] sm:$0xff]
    %v228 = vld [vmem:[#allocation7 + $0x1f8] sm:$0xff]
    %v229 = vld [vmem:[#allocation7 + $0x200] sm:$0xff]
    %v230 = vld [vmem:[#allocation7 + $0x208] sm:$0xff]
    %v231 = vld [vmem:[#allocation7 + $0x210] sm:$0xff]
    %v232 = vld [vmem:[#allocation7 + $0x218] sm:$0xff]
    %v233 = vld [vmem:[#allocation7 + $0x220] sm:$0xff]
    %v234 = vld [vmem:[#allocation7 + $0x228] sm:$0xff]
    %v235 = vld [vmem:[#allocation7 + $0x230] sm:$0xff]
    %v236 = vld [vmem:[#allocation7 + $0x238] sm:$0xff]
    %v237 = vld [vmem:[#allocation7 + $0x240] sm:$0xff]
    %v238 = vld [vmem:[#allocation7 + $0x248] sm:$0xff]
    %v239 = vld [vmem:[#allocation7 + $0x250] sm:$0xff]
    %v240 = vld [vmem:[#allocation7 + $0x258] sm:$0xff]
    %v241 = vld [vmem:[#allocation7 + $0x260] sm:$0xff]
    %v242 = vld [vmem:[#allocation7 + $0x268] sm:$0xff]
    %v243 = vld [vmem:[#allocation7 + $0x270] sm:$0xff]
    %v244 = vld [vmem:[#allocation7 + $0x278] sm:$0xff]
    %v245 = vld [vmem:[#allocation7 + $0x280] sm:$0xff]
    %v246 = vld [vmem:[#allocation7 + $0x288] sm:$0xff]
    %v247 = vld [vmem:[#allocation7 + $0x290] sm:$0xff]
    %v248 = vld [vmem:[#allocation7 + $0x298] sm:$0xff]
    %v249 = vld [vmem:[#allocation7 + $0x2a0] sm:$0xff]
    %v250 = vld [vmem:[#allocation7 + $0x2a8] sm:$0xff]
    %v251 = vld [vmem:[#allocation7 + $0x2b0] sm:$0xff]
    %v252 = vld [vmem:[#allocation7 + $0x2b8] sm:$0xff]
    %v253 = vld [vmem:[#allocation7 + $0x2c0] sm:$0xff]
    %v254 = vld [vmem:[#allocation7 + $0x2c8] sm:$0xff]
    %v255 = vld [vmem:[#allocation7 + $0x2d0] sm:$0xff]
    %v256 = vld [vmem:[#allocation7 + $0x2d8] sm:$0xff]
    %v257 = vld [vmem:[#allocation7 + $0x2e0] sm:$0xff]
    %v258 = vld [vmem:[#allocation7 + $0x2e8] sm:$0xff]
    %v259 = vld [vmem:[#allocation7 + $0x2f0] sm:$0xff]
    %v260 = vld [vmem:[#allocation7 + $0x2f8] sm:$0xff]
    %v261 = vld [vmem:[#allocation7 + $0x300] sm:$0xff]
    %v262 = vld [vmem:[#allocation7 + $0x308] sm:$0xff]
    %v263 = vld [vmem:[#allocation7 + $0x310] sm:$0xff]
    %v264 = vld [vmem:[#allocation7 + $0x318] sm:$0xff]
    %v265 = vld [vmem:[#allocation7 + $0x320] sm:$0xff]
    %v266 = vld [vmem:[#allocation7 + $0x328] sm:$0xff]
    %v267 = vld [vmem:[#allocation7 + $0x330] sm:$0xff]
    %v268 = vld [vmem:[#allocation7 + $0x338] sm:$0xff]
    %v269 = vld [vmem:[#allocation7 + $0x340] sm:$0xff]
    %v270 = vld [vmem:[#allocation7 + $0x348] sm:$0xff]
    %v271 = vld [vmem:[#allocation7 + $0x350] sm:$0xff]
    %v272 = vld [vmem:[#allocation7 + $0x358] sm:$0xff]
    %v273 = vld [vmem:[#allocation7 + $0x360] sm:$0xff]
    %v274 = vld [vmem:[#allocation7 + $0x368] sm:$0xff]
    %v275 = vld [vmem:[#allocation7 + $0x370] sm:$0xff]
    %v276 = vld [vmem:[#allocation7 + $0x378] sm:$0xff]
    %v277 = vld [vmem:[#allocation7 + $0x380] sm:$0xff]
    %v278 = vld [vmem:[#allocation7 + $0x388] sm:$0xff]
    %v279 = vld [vmem:[#allocation7 + $0x390] sm:$0xff]
    %v280 = vld [vmem:[#allocation7 + $0x398] sm:$0xff]
    %v281 = vld [vmem:[#allocation7 + $0x3a0] sm:$0xff]
    %v282 = vld [vmem:[#allocation7 + $0x3a8] sm:$0xff]
    %v283 = vld [vmem:[#allocation7 + $0x3b0] sm:$0xff]
    %v284 = vld [vmem:[#allocation7 + $0x3b8] sm:$0xff]
    %v285 = vld [vmem:[#allocation7 + $0x3c0] sm:$0xff]
    %v286 = vld [vmem:[#allocation7 + $0x3c8] sm:$0xff]
    %v287 = vld [vmem:[#allocation7 + $0x3d0] sm:$0xff]
    %v288 = vld [vmem:[#allocation7 + $0x3d8] sm:$0xff]
    %v289 = vld [vmem:[#allocation7 + $0x3e0] sm:$0xff]
    %v290 = vld [vmem:[#allocation7 + $0x3e8] sm:$0xff]
    %v291 = vld [vmem:[#allocation7 + $0x3f0] sm:$0xff]
    %v292 = vld [vmem:[#allocation7 + $0x3f8] sm:$0xff]
    %v293 = vld [vmem:[#allocation7 + $0x400] sm:$0xff]
    %v294 = vld [vmem:[#allocation7 + $0x408] sm:$0xff]
    %v295 = vld [vmem:[#allocation7 + $0x410] sm:$0xff]
    %v296 = vld [vmem:[#allocation7 + $0x418] sm:$0xff]
    %v297 = vld [vmem:[#allocation7 + $0x420] sm:$0xff]
    %v298 = vld [vmem:[#allocation7 + $0x428] sm:$0xff]
    %v299 = vld [vmem:[#allocation7 + $0x430] sm:$0xff]
    %v300 = vld [vmem:[#allocation7 + $0x438] sm:$0xff]
    %v301 = vld [vmem:[#allocation7 + $0x440] sm:$0xff]
    %v302 = vld [vmem:[#allocation7 + $0x448] sm:$0xff]
    %v303 = vld [vmem:[#allocation7 + $0x450] sm:$0xff]
    %v304 = vld [vmem:[#allocation7 + $0x458] sm:$0xff]
    %v305 = vld [vmem:[#allocation7 + $0x460] sm:$0xff]
    %v306 = vld [vmem:[#allocation7 + $0x468] sm:$0xff]
    %v307 = vld [vmem:[#allocation7 + $0x470] sm:$0xff]
    %v308 = vld [vmem:[#allocation7 + $0x478] sm:$0xff]
    %v309 = vld [vmem:[#allocation7 + $0x480] sm:$0xff]
    %v310 = vld [vmem:[#allocation7 + $0x488] sm:$0xff]
    %v311 = vld [vmem:[#allocation7 + $0x490] sm:$0xff]
    %v312 = vld [vmem:[#allocation7 + $0x498] sm:$0xff]
    %v313 = vld [vmem:[#allocation7 + $0x4a0] sm:$0xff]
    %v314 = vld [vmem:[#allocation7 + $0x4a8] sm:$0xff]
    %v315 = vld [vmem:[#allocation7 + $0x4b0] sm:$0xff]
    %v316 = vld [vmem:[#allocation7 + $0x4b8] sm:$0xff]
    %v317 = vld [vmem:[#allocation7 + $0x4c0] sm:$0xff]
    %v318 = vld [vmem:[#allocation7 + $0x4c8] sm:$0xff]
    %v319 = vld [vmem:[#allocation7 + $0x4d0] sm:$0xff]
    %v320 = vld [vmem:[#allocation7 + $0x4d8] sm:$0xff]
    %v321 = vld [vmem:[#allocation7 + $0x4e0] sm:$0xff]
    %v322 = vld [vmem:[#allocation7 + $0x4e8] sm:$0xff]
    %v323 = vld [vmem:[#allocation7 + $0x4f0] sm:$0xff]
    %v324 = vld [vmem:[#allocation7 + $0x4f8] sm:$0xff]
    %v325 = vld [vmem:[#allocation7 + $0x500] sm:$0xff]
    %v326 = vld [vmem:[#allocation7 + $0x508] sm:$0xff]
    %v327 = vld [vmem:[#allocation7 + $0x510] sm:$0xff]
    %v328 = vld [vmem:[#allocation7 + $0x518] sm:$0xff]
    %v329 = vld [vmem:[#allocation7 + $0x520] sm:$0xff]
    %v330 = vld [vmem:[#allocation7 + $0x528] sm:$0xff]
    %v331 = vld [vmem:[#allocation7 + $0x530] sm:$0xff]
    %v332 = vld [vmem:[#allocation7 + $0x538] sm:$0xff]
    %v333 = vld [vmem:[#allocation7 + $0x540] sm:$0xff]
    %v334 = vld [vmem:[#allocation7 + $0x548] sm:$0xff]
    %v335 = vld [vmem:[#allocation7 + $0x550] sm:$0xff]
    %v336 = vld [vmem:[#allocation7 + $0x558] sm:$0xff]
    %v337 = vld [vmem:[#allocation7 + $0x560] sm:$0xff]
    %v338 = vld [vmem:[#allocation7 + $0x568] sm:$0xff]
    %v339 = vld [vmem:[#allocation7 + $0x570] sm:$0xff]
    %v340 = vld [vmem:[#allocation7 + $0x578] sm:$0xff]
    %v341 = vld [vmem:[#allocation7 + $0x580] sm:$0xff]
    %v342 = vld [vmem:[#allocation7 + $0x588] sm:$0xff]
    %v343 = vld [vmem:[#allocation7 + $0x590] sm:$0xff]
    %v344 = vld [vmem:[#allocation7 + $0x598] sm:$0xff]
    %v345 = vld [vmem:[#allocation7 + $0x5a0] sm:$0xff]
    %v346 = vld [vmem:[#allocation7 + $0x5a8] sm:$0xff]
    %v347 = vld [vmem:[#allocation7 + $0x5b0] sm:$0xff]
    %v348 = vld [vmem:[#allocation7 + $0x5b8] sm:$0xff]
    %v349 = vld [vmem:[#allocation7 + $0x5c0] sm:$0xff]
    %v350 = vld [vmem:[#allocation7 + $0x5c8] sm:$0xff]
    %v351 = vld [vmem:[#allocation7 + $0x5d0] sm:$0xff]
    %v352 = vld [vmem:[#allocation7 + $0x5d8] sm:$0xff]
    %v353 = vld [vmem:[#allocation7 + $0x5e0] sm:$0xff]
    %v354 = vld [vmem:[#allocation7 + $0x5e8] sm:$0xff]
    %v355 = vld [vmem:[#allocation7 + $0x5f0] sm:$0xff]
    %v356 = vld [vmem:[#allocation7 + $0x5f8] sm:$0xff]
    %v357 = vld [vmem:[#allocation7 + $0x600] sm:$0xff]
    %v358 = vld [vmem:[#allocation7 + $0x608] sm:$0xff]
    %v359 = vld [vmem:[#allocation7 + $0x610] sm:$0xff]
    %v360 = vld [vmem:[#allocation7 + $0x618] sm:$0xff]
    %v361 = vld [vmem:[#allocation7 + $0x620] sm:$0xff]
    %v362 = vld [vmem:[#allocation7 + $0x628] sm:$0xff]
    %v363 = vld [vmem:[#allocation7 + $0x630] sm:$0xff]
    %v364 = vld [vmem:[#allocation7 + $0x638] sm:$0xff]
    %v365 = vld [vmem:[#allocation7 + $0x640] sm:$0xff]
    %v366 = vld [vmem:[#allocation7 + $0x648] sm:$0xff]
    %v367 = vld [vmem:[#allocation7 + $0x650] sm:$0xff]
    %v368 = vld [vmem:[#allocation7 + $0x658] sm:$0xff]
    %v369 = vld [vmem:[#allocation7 + $0x660] sm:$0xff]
    %v370 = vld [vmem:[#allocation7 + $0x668] sm:$0xff]
    %v371 = vld [vmem:[#allocation7 + $0x670] sm:$0xff]
    %v372 = vld [vmem:[#allocation7 + $0x678] sm:$0xff]
    %v373 = vld [vmem:[#allocation7 + $0x680] sm:$0xff]
    %v374 = vld [vmem:[#allocation7 + $0x688] sm:$0xff]
    %v375 = vld [vmem:[#allocation7 + $0x690] sm:$0xff]
    %v376 = vld [vmem:[#allocation7 + $0x698] sm:$0xff]
    %v377 = vld [vmem:[#allocation7 + $0x6a0] sm:$0xff]
    %v378 = vld [vmem:[#allocation7 + $0x6a8] sm:$0xff]
    %v379 = vld [vmem:[#allocation7 + $0x6b0] sm:$0xff]
    %v380 = vld [vmem:[#allocation7 + $0x6b8] sm:$0xff]
    %v381 = vld [vmem:[#allocation7 + $0x6c0] sm:$0xff]
    %v382 = vld [vmem:[#allocation7 + $0x6c8] sm:$0xff]
    %v383 = vld [vmem:[#allocation7 + $0x6d0] sm:$0xff]
    %v384 = vld [vmem:[#allocation7 + $0x6d8] sm:$0xff]
    %v385 = vld [vmem:[#allocation7 + $0x6e0] sm:$0xff]
    %v386 = vld [vmem:[#allocation7 + $0x6e8] sm:$0xff]
    %v387 = vld [vmem:[#allocation7 + $0x6f0] sm:$0xff]
    %v388 = vld [vmem:[#allocation7 + $0x6f8] sm:$0xff]
    %v389 = vld [vmem:[#allocation7 + $0x700] sm:$0xff]
    %v390 = vld [vmem:[#allocation7 + $0x708] sm:$0xff]
    %v391 = vld [vmem:[#allocation7 + $0x710] sm:$0xff]
    %v392 = vld [vmem:[#allocation7 + $0x718] sm:$0xff]
    %v393 = vld [vmem:[#allocation7 + $0x720] sm:$0xff]
    %v394 = vld [vmem:[#allocation7 + $0x728] sm:$0xff]
    %v395 = vld [vmem:[#allocation7 + $0x730] sm:$0xff]
    %v396 = vld [vmem:[#allocation7 + $0x738] sm:$0xff]
    %v397 = vld [vmem:[#allocation7 + $0x740] sm:$0xff]
    %v398 = vld [vmem:[#allocation7 + $0x748] sm:$0xff]
    %v399 = vld [vmem:[#allocation7 + $0x750] sm:$0xff]
    %v400 = vld [vmem:[#allocation7 + $0x758] sm:$0xff]
    %v401 = vld [vmem:[#allocation7 + $0x760] sm:$0xff]
    %v402 = vld [vmem:[#allocation7 + $0x768] sm:$0xff]
    %v403 = vld [vmem:[#allocation7 + $0x770] sm:$0xff]
    %v404 = vld [vmem:[#allocation7 + $0x778] sm:$0xff]
    %v405 = vld [vmem:[#allocation7 + $0x780] sm:$0xff]
    %v406 = vld [vmem:[#allocation7 + $0x788] sm:$0xff]
    %v407 = vld [vmem:[#allocation7 + $0x790] sm:$0xff]
    %v408 = vld [vmem:[#allocation7 + $0x798] sm:$0xff]
    %v409 = vld [vmem:[#allocation7 + $0x7a0] sm:$0xff]
    %v410 = vld [vmem:[#allocation7 + $0x7a8] sm:$0xff]
    %v411 = vld [vmem:[#allocation7 + $0x7b0] sm:$0xff]
    %v412 = vld [vmem:[#allocation7 + $0x7b8] sm:$0xff]
    %v413 = vld [vmem:[#allocation7 + $0x7c0] sm:$0xff]
    %v414 = vld [vmem:[#allocation7 + $0x7c8] sm:$0xff]
    %v415 = vld [vmem:[#allocation7 + $0x7d0] sm:$0xff]
    %v416 = vld [vmem:[#allocation7 + $0x7d8] sm:$0xff]
    %v417 = vld [vmem:[#allocation7 + $0x7e0] sm:$0xff]
    %v418 = vld [vmem:[#allocation7 + $0x7e8] sm:$0xff]
    %v419 = vld [vmem:[#allocation7 + $0x7f0] sm:$0xff]
    %v420 = vld [vmem:[#allocation7 + $0x7f8] sm:$0xff]
    %v421 = vld [vmem:[#allocation7 + $0x800] sm:$0xff]
    %v422 = vld [vmem:[#allocation7 + $0x808] sm:$0xff]
    %v423 = vld [vmem:[#allocation7 + $0x810] sm:$0xff]
    %v424 = vld [vmem:[#allocation7 + $0x818] sm:$0xff]
    %v425 = vld [vmem:[#allocation7 + $0x820] sm:$0xff]
    %v426 = vld [vmem:[#allocation7 + $0x828] sm:$0xff]
    %v427 = vld [vmem:[#allocation7 + $0x830] sm:$0xff]
    %v428 = vld [vmem:[#allocation7 + $0x838] sm:$0xff]
    %v429 = vld [vmem:[#allocation7 + $0x840] sm:$0xff]
    %v430 = vld [vmem:[#allocation7 + $0x848] sm:$0xff]
    %v431 = vld [vmem:[#allocation7 + $0x850] sm:$0xff]
    %v432 = vld [vmem:[#allocation7 + $0x858] sm:$0xff]
    %v433 = vld [vmem:[#allocation7 + $0x860] sm:$0xff]
    %v434 = vld [vmem:[#allocation7 + $0x868] sm:$0xff]
    %v435 = vld [vmem:[#allocation7 + $0x870] sm:$0xff]
    %v436 = vld [vmem:[#allocation7 + $0x878] sm:$0xff]
    %v437 = vld [vmem:[#allocation7 + $0x880] sm:$0xff]
    %v438 = vld [vmem:[#allocation7 + $0x888] sm:$0xff]
    %v439 = vld [vmem:[#allocation7 + $0x890] sm:$0xff]
    %v440 = vld [vmem:[#allocation7 + $0x898] sm:$0xff]
    %v441 = vld [vmem:[#allocation7 + $0x8a0] sm:$0xff]
    %v442 = vld [vmem:[#allocation7 + $0x8a8] sm:$0xff]
    %v443 = vld [vmem:[#allocation7 + $0x8b0] sm:$0xff]
    %v444 = vld [vmem:[#allocation7 + $0x8b8] sm:$0xff]
    %v445 = vld [vmem:[#allocation7 + $0x8c0] sm:$0xff]
    %v446 = vld [vmem:[#allocation7 + $0x8c8] sm:$0xff]
    %v447 = vld [vmem:[#allocation7 + $0x8d0] sm:$0xff]
    %v448 = vld [vmem:[#allocation7 + $0x8d8] sm:$0xff]
    %v449 = vld [vmem:[#allocation7 + $0x8e0] sm:$0xff]
    %v450 = vld [vmem:[#allocation7 + $0x8e8] sm:$0xff]
    %v451 = vld [vmem:[#allocation7 + $0x8f0] sm:$0xff]
    %v452 = vld [vmem:[#allocation7 + $0x8f8] sm:$0xff]
    %v453 = vld [vmem:[#allocation7 + $0x900] sm:$0xff]
    %v454 = vld [vmem:[#allocation7 + $0x908] sm:$0xff]
    %v455 = vld [vmem:[#allocation7 + $0x910] sm:$0xff]
    %v456 = vld [vmem:[#allocation7 + $0x918] sm:$0xff]
    %v457 = vld [vmem:[#allocation7 + $0x920] sm:$0xff]
    %v458 = vld [vmem:[#allocation7 + $0x928] sm:$0xff]
    %v459 = vld [vmem:[#allocation7 + $0x930] sm:$0xff]
    %v460 = vld [vmem:[#allocation7 + $0x938] sm:$0xff]
    %v461 = vld [vmem:[#allocation7 + $0x940] sm:$0xff]
    %v462 = vld [vmem:[#allocation7 + $0x948] sm:$0xff]
    %v463 = vld [vmem:[#allocation7 + $0x950] sm:$0xff]
    %v464 = vld [vmem:[#allocation7 + $0x958] sm:$0xff]
    %v465 = vld [vmem:[#allocation7 + $0x960] sm:$0xff]
    %v466 = vld [vmem:[#allocation7 + $0x968] sm:$0xff]
    %v467 = vld [vmem:[#allocation7 + $0x970] sm:$0xff]
    %v468 = vld [vmem:[#allocation7 + $0x978] sm:$0xff]
    %v469 = vld [vmem:[#allocation7 + $0x980] sm:$0xff]
    %v470 = vld [vmem:[#allocation7 + $0x988] sm:$0xff]
    %v471 = vld [vmem:[#allocation7 + $0x990] sm:$0xff]
    %v472 = vld [vmem:[#allocation7 + $0x998] sm:$0xff]
    %v473 = vld [vmem:[#allocation7 + $0x9a0] sm:$0xff]
    %v474 = vld [vmem:[#allocation7 + $0x9a8] sm:$0xff]
    %v475 = vld [vmem:[#allocation7 + $0x9b0] sm:$0xff]
    %v476 = vld [vmem:[#allocation7 + $0x9b8] sm:$0xff]
    %v477 = vld [vmem:[#allocation7 + $0x9c0] sm:$0xff]
    %v478 = vld [vmem:[#allocation7 + $0x9c8] sm:$0xff]
    %v479 = vld [vmem:[#allocation7 + $0x9d0] sm:$0xff]
    %v480 = vld [vmem:[#allocation7 + $0x9d8] sm:$0xff]
    %v481 = vld [vmem:[#allocation7 + $0x9e0] sm:$0xff]
    %v482 = vld [vmem:[#allocation7 + $0x9e8] sm:$0xff]
    %v483 = vld [vmem:[#allocation7 + $0x9f0] sm:$0xff]
    %v484 = vld [vmem:[#allocation7 + $0x9f8] sm:$0xff]
    %v485 = vld [vmem:[#allocation7 + $0xa00] sm:$0xff]
    %v486 = vld [vmem:[#allocation7 + $0xa08] sm:$0xff]
    %v487 = vld [vmem:[#allocation7 + $0xa10] sm:$0xff]
    %v488 = vld [vmem:[#allocation7 + $0xa18] sm:$0xff]
    %v489 = vld [vmem:[#allocation7 + $0xa20] sm:$0xff]
    %v490 = vld [vmem:[#allocation7 + $0xa28] sm:$0xff]
    %v491 = vld [vmem:[#allocation7 + $0xa30] sm:$0xff]
    %v492 = vld [vmem:[#allocation7 + $0xa38] sm:$0xff]
    %v493 = vld [vmem:[#allocation7 + $0xa40] sm:$0xff]
    %v494 = vld [vmem:[#allocation7 + $0xa48] sm:$0xff]
    %v495 = vld [vmem:[#allocation7 + $0xa50] sm:$0xff]
    %v496 = vld [vmem:[#allocation7 + $0xa58] sm:$0xff]
    %v497 = vld [vmem:[#allocation7 + $0xa60] sm:$0xff]
    %v498 = vld [vmem:[#allocation7 + $0xa68] sm:$0xff]
    %v499 = vld [vmem:[#allocation7 + $0xa70] sm:$0xff]
    %v500 = vld [vmem:[#allocation7 + $0xa78] sm:$0xff]
    %v501 = vld [vmem:[#allocation7 + $0xa80] sm:$0xff]
    %v502 = vld [vmem:[#allocation7 + $0xa88] sm:$0xff]
    %v503 = vld [vmem:[#allocation7 + $0xa90] sm:$0xff]
    %v504 = vld [vmem:[#allocation7 + $0xa98] sm:$0xff]
    %v505 = vld [vmem:[#allocation7 + $0xaa0] sm:$0xff]
    %v506 = vld [vmem:[#allocation7 + $0xaa8] sm:$0xff]
    %v507 = vld [vmem:[#allocation7 + $0xab0] sm:$0xff]
    %v508 = vld [vmem:[#allocation7 + $0xab8] sm:$0xff]
    %v509 = vld [vmem:[#allocation7 + $0xac0] sm:$0xff]
    %v510 = vld [vmem:[#allocation7 + $0xac8] sm:$0xff]
    %v511 = vld [vmem:[#allocation7 + $0xad0] sm:$0xff]
    %v512 = vld [vmem:[#allocation7 + $0xad8] sm:$0xff]
    %v513 = vld [vmem:[#allocation7 + $0xae0] sm:$0xff]
    %v514 = vld [vmem:[#allocation7 + $0xae8] sm:$0xff]
    %v515 = vld [vmem:[#allocation7 + $0xaf0] sm:$0xff]
    %v516 = vld [vmem:[#allocation7 + $0xaf8] sm:$0xff]
    %v517 = vld [vmem:[#allocation7 + $0xb00] sm:$0xff]
    %v518 = vld [vmem:[#allocation7 + $0xb08] sm:$0xff]
    %v519 = vld [vmem:[#allocation7 + $0xb10] sm:$0xff]
    %v520 = vld [vmem:[#allocation7 + $0xb18] sm:$0xff]
    %v521 = vld [vmem:[#allocation7 + $0xb20] sm:$0xff]
    %v522 = vld [vmem:[#allocation7 + $0xb28] sm:$0xff]
    %v523 = vld [vmem:[#allocation7 + $0xb30] sm:$0xff]
    %v524 = vld [vmem:[#allocation7 + $0xb38] sm:$0xff]
    %v525 = vld [vmem:[#allocation7 + $0xb40] sm:$0xff]
    %v526 = vld [vmem:[#allocation7 + $0xb48] sm:$0xff]
    %v527 = vld [vmem:[#allocation7 + $0xb50] sm:$0xff]
    %v528 = vld [vmem:[#allocation7 + $0xb58] sm:$0xff]
    %v529 = vld [vmem:[#allocation7 + $0xb60] sm:$0xff]
    %v530 = vld [vmem:[#allocation7 + $0xb68] sm:$0xff]
    %v531 = vld [vmem:[#allocation7 + $0xb70] sm:$0xff]
    %v532 = vld [vmem:[#allocation7 + $0xb78] sm:$0xff]
    %v533 = vld [vmem:[#allocation7 + $0xb80] sm:$0xff]
    %v534 = vld [vmem:[#allocation7 + $0xb88] sm:$0xff]
    %v535 = vld [vmem:[#allocation7 + $0xb90] sm:$0xff]
    %v536 = vld [vmem:[#allocation7 + $0xb98] sm:$0xff]
    %v537 = vld [vmem:[#allocation7 + $0xba0] sm:$0xff]
    %v538 = vld [vmem:[#allocation7 + $0xba8] sm:$0xff]
    %v539 = vld [vmem:[#allocation7 + $0xbb0] sm:$0xff]
    %v540 = vld [vmem:[#allocation7 + $0xbb8] sm:$0xff]
    %v541 = vld [vmem:[#allocation7 + $0xbc0] sm:$0xff]
    %v542 = vld [vmem:[#allocation7 + $0xbc8] sm:$0xff]
    %v543 = vld [vmem:[#allocation7 + $0xbd0] sm:$0xff]
    %v544 = vld [vmem:[#allocation7 + $0xbd8] sm:$0xff]
    %v545 = vld [vmem:[#allocation7 + $0xbe0] sm:$0xff]
    %v546 = vld [vmem:[#allocation7 + $0xbe8] sm:$0xff]
    %v547 = vld [vmem:[#allocation7 + $0xbf0] sm:$0xff]
    %v548 = vld [vmem:[#allocation7 + $0xbf8] sm:$0xff]
    %v549 = vld [vmem:[#allocation7 + $0xc00] sm:$0xff]
    %v550 = vld [vmem:[#allocation7 + $0xc08] sm:$0xff]
    %v551 = vld [vmem:[#allocation7 + $0xc10] sm:$0xff]
    %v552 = vld [vmem:[#allocation7 + $0xc18] sm:$0xff]
    %v553 = vld [vmem:[#allocation7 + $0xc20] sm:$0xff]
    %v554 = vld [vmem:[#allocation7 + $0xc28] sm:$0xff]
    %v555 = vld [vmem:[#allocation7 + $0xc30] sm:$0xff]
    %v556 = vld [vmem:[#allocation7 + $0xc38] sm:$0xff]
    %v557 = vld [vmem:[#allocation7 + $0xc40] sm:$0xff]
    %v558 = vld [vmem:[#allocation7 + $0xc48] sm:$0xff]
    %v559 = vld [vmem:[#allocation7 + $0xc50] sm:$0xff]
    %v560 = vld [vmem:[#allocation7 + $0xc58] sm:$0xff]
    %v561 = vld [vmem:[#allocation7 + $0xc60] sm:$0xff]
    %v562 = vld [vmem:[#allocation7 + $0xc68] sm:$0xff]
    %v563 = vld [vmem:[#allocation7 + $0xc70] sm:$0xff]
    %v564 = vld [vmem:[#allocation7 + $0xc78] sm:$0xff]
    %v565 = vld [vmem:[#allocation7 + $0xc80] sm:$0xff]
    %v566 = vld [vmem:[#allocation7 + $0xc88] sm:$0xff]
    %v567 = vld [vmem:[#allocation7 + $0xc90] sm:$0xff]
    %v568 = vld [vmem:[#allocation7 + $0xc98] sm:$0xff]
    %v569 = vld [vmem:[#allocation7 + $0xca0] sm:$0xff]
    %v570 = vld [vmem:[#allocation7 + $0xca8] sm:$0xff]
    %v571 = vld [vmem:[#allocation7 + $0xcb0] sm:$0xff]
    %v572 = vld [vmem:[#allocation7 + $0xcb8] sm:$0xff]
    %v573 = vld [vmem:[#allocation7 + $0xcc0] sm:$0xff]
    %v574 = vld [vmem:[#allocation7 + $0xcc8] sm:$0xff]
    %v575 = vld [vmem:[#allocation7 + $0xcd0] sm:$0xff]
    %v576 = vld [vmem:[#allocation7 + $0xcd8] sm:$0xff]
    %v577 = vld [vmem:[#allocation7 + $0xce0] sm:$0xff]
    %v578 = vld [vmem:[#allocation7 + $0xce8] sm:$0xff]
    %v579 = vld [vmem:[#allocation7 + $0xcf0] sm:$0xff]
    %v580 = vld [vmem:[#allocation7 + $0xcf8] sm:$0xff]
    %v581 = vld [vmem:[#allocation7 + $0xd00] sm:$0xff]
    %v582 = vld [vmem:[#allocation7 + $0xd08] sm:$0xff]
    %v583 = vld [vmem:[#allocation7 + $0xd10] sm:$0xff]
    %v584 = vld [vmem:[#allocation7 + $0xd18] sm:$0xff]
    %v585 = vld [vmem:[#allocation7 + $0xd20] sm:$0xff]
    %v586 = vld [vmem:[#allocation7 + $0xd28] sm:$0xff]
    %v587 = vld [vmem:[#allocation7 + $0xd30] sm:$0xff]
    %v588 = vld [vmem:[#allocation7 + $0xd38] sm:$0xff]
    %v589 = vld [vmem:[#allocation7 + $0xd40] sm:$0xff]
    %v590 = vld [vmem:[#allocation7 + $0xd48] sm:$0xff]
    %v591 = vld [vmem:[#allocation7 + $0xd50] sm:$0xff]
    %v592 = vld [vmem:[#allocation7 + $0xd58] sm:$0xff]
    %v593 = vld [vmem:[#allocation7 + $0xd60] sm:$0xff]
    %v594 = vld [vmem:[#allocation7 + $0xd68] sm:$0xff]
    %v595 = vld [vmem:[#allocation7 + $0xd70] sm:$0xff]
    %v596 = vld [vmem:[#allocation7 + $0xd78] sm:$0xff]
    %v597 = vld [vmem:[#allocation7 + $0xd80] sm:$0xff]
    %v598 = vld [vmem:[#allocation7 + $0xd88] sm:$0xff]
    %v599 = vld [vmem:[#allocation7 + $0xd90] sm:$0xff]
    %v600 = vld [vmem:[#allocation7 + $0xd98] sm:$0xff]
    %v601 = vld [vmem:[#allocation7 + $0xda0] sm:$0xff]
    %v602 = vld [vmem:[#allocation7 + $0xda8] sm:$0xff]
    %v603 = vld [vmem:[#allocation7 + $0xdb0] sm:$0xff]
    %v604 = vld [vmem:[#allocation7 + $0xdb8] sm:$0xff]
    %v605 = vld [vmem:[#allocation7 + $0xdc0] sm:$0xff]
    %v606 = vld [vmem:[#allocation7 + $0xdc8] sm:$0xff]
    %v607 = vld [vmem:[#allocation7 + $0xdd0] sm:$0xff]
    %v608 = vld [vmem:[#allocation7 + $0xdd8] sm:$0xff]
    %v609 = vld [vmem:[#allocation7 + $0xde0] sm:$0xff]
    %v610 = vld [vmem:[#allocation7 + $0xde8] sm:$0xff]
    %v611 = vld [vmem:[#allocation7 + $0xdf0] sm:$0xff]
    %v612 = vld [vmem:[#allocation7 + $0xdf8] sm:$0xff]
    %v613 = vld [vmem:[#allocation7 + $0xe00] sm:$0xff]
    %v614 = vld [vmem:[#allocation7 + $0xe08] sm:$0xff]
    %v615 = vld [vmem:[#allocation7 + $0xe10] sm:$0xff]
    %v616 = vld [vmem:[#allocation7 + $0xe18] sm:$0xff]
    %v617 = vld [vmem:[#allocation7 + $0xe20] sm:$0xff]
    %v618 = vld [vmem:[#allocation7 + $0xe28] sm:$0xff]
    %v619 = vld [vmem:[#allocation7 + $0xe30] sm:$0xff]
    %v620 = vld [vmem:[#allocation7 + $0xe38] sm:$0xff]
    %v621 = vld [vmem:[#allocation7 + $0xe40] sm:$0xff]
    %v622 = vld [vmem:[#allocation7 + $0xe48] sm:$0xff]
    %v623 = vld [vmem:[#allocation7 + $0xe50] sm:$0xff]
    %v624 = vld [vmem:[#allocation7 + $0xe58] sm:$0xff]
    %v625 = vld [vmem:[#allocation7 + $0xe60] sm:$0xff]
    %v626 = vld [vmem:[#allocation7 + $0xe68] sm:$0xff]
    %v627 = vld [vmem:[#allocation7 + $0xe70] sm:$0xff]
    %v628 = vld [vmem:[#allocation7 + $0xe78] sm:$0xff]
    %v629 = vld [vmem:[#allocation7 + $0xe80] sm:$0xff]
    %v630 = vld [vmem:[#allocation7 + $0xe88] sm:$0xff]
    %v631 = vld [vmem:[#allocation7 + $0xe90] sm:$0xff]
    %v632 = vld [vmem:[#allocation7 + $0xe98] sm:$0xff]
    %v633 = vld [vmem:[#allocation7 + $0xea0] sm:$0xff]
    %v634 = vld [vmem:[#allocation7 + $0xea8] sm:$0xff]
    %v635 = vld [vmem:[#allocation7 + $0xeb0] sm:$0xff]
    %v636 = vld [vmem:[#allocation7 + $0xeb8] sm:$0xff]
    %v637 = vld [vmem:[#allocation7 + $0xec0] sm:$0xff]
    %v638 = vld [vmem:[#allocation7 + $0xec8] sm:$0xff]
    %v639 = vld [vmem:[#allocation7 + $0xed0] sm:$0xff]
    %v640 = vld [vmem:[#allocation7 + $0xed8] sm:$0xff]
    %v641 = vld [vmem:[#allocation7 + $0xee0] sm:$0xff]
    %v642 = vld [vmem:[#allocation7 + $0xee8] sm:$0xff]
    %v643 = vld [vmem:[#allocation7 + $0xef0] sm:$0xff]
    %v644 = vld [vmem:[#allocation7 + $0xef8] sm:$0xff]
    %v645 = vld [vmem:[#allocation7 + $0xf00] sm:$0xff]
    %v646 = vld [vmem:[#allocation7 + $0xf08] sm:$0xff]
    %v647 = vld [vmem:[#allocation7 + $0xf10] sm:$0xff]
    %v648 = vld [vmem:[#allocation7 + $0xf18] sm:$0xff]
    %v649 = vld [vmem:[#allocation7 + $0xf20] sm:$0xff]
    %v650 = vld [vmem:[#allocation7 + $0xf28] sm:$0xff]
    %v651 = vld [vmem:[#allocation7 + $0xf30] sm:$0xff]
    %v652 = vld [vmem:[#allocation7 + $0xf38] sm:$0xff]
    %v653 = vld [vmem:[#allocation7 + $0xf40] sm:$0xff]
    %v654 = vld [vmem:[#allocation7 + $0xf48] sm:$0xff]
    %v655 = vld [vmem:[#allocation7 + $0xf50] sm:$0xff]
    %v656 = vld [vmem:[#allocation7 + $0xf58] sm:$0xff]
    %v657 = vld [vmem:[#allocation7 + $0xf60] sm:$0xff]
    %v658 = vld [vmem:[#allocation7 + $0xf68] sm:$0xff]
    %v659 = vld [vmem:[#allocation7 + $0xf70] sm:$0xff]
    %v660 = vld [vmem:[#allocation7 + $0xf78] sm:$0xff]
    %v661 = vld [vmem:[#allocation7 + $0xf80] sm:$0xff]
    %v662 = vld [vmem:[#allocation7 + $0xf88] sm:$0xff]
    %v663 = vld [vmem:[#allocation7 + $0xf90] sm:$0xff]
    %v664 = vld [vmem:[#allocation7 + $0xf98] sm:$0xff]
    %v665 = vld [vmem:[#allocation7 + $0xfa0] sm:$0xff]
    %v666 = vld [vmem:[#allocation7 + $0xfa8] sm:$0xff]
    %v667 = vld [vmem:[#allocation7 + $0xfb0] sm:$0xff]
    %v668 = vld [vmem:[#allocation7 + $0xfb8] sm:$0xff]
    %v669 = vld [vmem:[#allocation7 + $0xfc0] sm:$0xff]
    %v670 = vld [vmem:[#allocation7 + $0xfc8] sm:$0xff]
    %v671 = vld [vmem:[#allocation7 + $0xfd0] sm:$0xff]
    %v672 = vld [vmem:[#allocation7 + $0xfd8] sm:$0xff]
    %v673 = vld [vmem:[#allocation7 + $0xfe0] sm:$0xff]
    %v674 = vld [vmem:[#allocation7 + $0xfe8] sm:$0xff]
    %v675 = vld [vmem:[#allocation7 + $0xff0] sm:$0xff]
    %v676 = vld [vmem:[#allocation7 + $0xff8] sm:$0xff]
    %v677 = vld [vmem:[#allocation7 + $0x1000] sm:$0xff]
    %v678 = vld [vmem:[#allocation7 + $0x1008] sm:$0xff]
    %v679 = vld [vmem:[#allocation7 + $0x1010] sm:$0xff]
    %v680 = vld [vmem:[#allocation7 + $0x1018] sm:$0xff]
    %v681 = vld [vmem:[#allocation7 + $0x1020] sm:$0xff]
    %v682 = vld [vmem:[#allocation7 + $0x1028] sm:$0xff]
    %v683 = vld [vmem:[#allocation7 + $0x1030] sm:$0xff]
    %v684 = vld [vmem:[#allocation7 + $0x1038] sm:$0xff]
    %v685 = vld [vmem:[#allocation7 + $0x1040] sm:$0xff]
    %v686 = vld [vmem:[#allocation7 + $0x1048] sm:$0xff]
    %v687 = vld [vmem:[#allocation7 + $0x1050] sm:$0xff]
    %v688 = vld [vmem:[#allocation7 + $0x1058] sm:$0xff]
    %v689 = vld [vmem:[#allocation7 + $0x1060] sm:$0xff]
    %v690 = vld [vmem:[#allocation7 + $0x1068] sm:$0xff]
    %v691 = vld [vmem:[#allocation7 + $0x1070] sm:$0xff]
    %v692 = vld [vmem:[#allocation7 + $0x1078] sm:$0xff]
    %v693 = vld [vmem:[#allocation7 + $0x1080] sm:$0xff]
    %v694 = vld [vmem:[#allocation7 + $0x1088] sm:$0xff]
    %v695 = vld [vmem:[#allocation7 + $0x1090] sm:$0xff]
    %v696 = vld [vmem:[#allocation7 + $0x1098] sm:$0xff]
    %v697 = vld [vmem:[#allocation7 + $0x10a0] sm:$0xff]
    %v698 = vld [vmem:[#allocation7 + $0x10a8] sm:$0xff]
    %v699 = vld [vmem:[#allocation7 + $0x10b0] sm:$0xff]
    %v700 = vld [vmem:[#allocation7 + $0x10b8] sm:$0xff]
    %v701 = vld [vmem:[#allocation7 + $0x10c0] sm:$0xff]
    %v702 = vld [vmem:[#allocation7 + $0x10c8] sm:$0xff]
    %v703 = vld [vmem:[#allocation7 + $0x10d0] sm:$0xff]
    %v704 = vld [vmem:[#allocation7 + $0x10d8] sm:$0xff]
    %v705 = vld [vmem:[#allocation7 + $0x10e0] sm:$0xff]
    %v706 = vld [vmem:[#allocation7 + $0x10e8] sm:$0xff]
    %v707 = vld [vmem:[#allocation7 + $0x10f0] sm:$0xff]
    %v708 = vld [vmem:[#allocation7 + $0x10f8] sm:$0xff]
    %v709 = vld [vmem:[#allocation7 + $0x1100] sm:$0xff]
    %v710 = vld [vmem:[#allocation7 + $0x1108] sm:$0xff]
    %v711 = vld [vmem:[#allocation7 + $0x1110] sm:$0xff]
    %v712 = vld [vmem:[#allocation7 + $0x1118] sm:$0xff]
    %v713 = vld [vmem:[#allocation7 + $0x1120] sm:$0xff]
    %v714 = vld [vmem:[#allocation7 + $0x1128] sm:$0xff]
    %v715 = vld [vmem:[#allocation7 + $0x1130] sm:$0xff]
    %v716 = vld [vmem:[#allocation7 + $0x1138] sm:$0xff]
    %v717 = vld [vmem:[#allocation7 + $0x1140] sm:$0xff]
    %v718 = vld [vmem:[#allocation7 + $0x1148] sm:$0xff]
    %v719 = vld [vmem:[#allocation7 + $0x1150] sm:$0xff]
    %v720 = vld [vmem:[#allocation7 + $0x1158] sm:$0xff]
    %v721 = vld [vmem:[#allocation7 + $0x1160] sm:$0xff]
    %v722 = vld [vmem:[#allocation7 + $0x1168] sm:$0xff]
    %v723 = vld [vmem:[#allocation7 + $0x1170] sm:$0xff]
    %v724 = vld [vmem:[#allocation7 + $0x1178] sm:$0xff]
    %v725 = vld [vmem:[#allocation7 + $0x1180] sm:$0xff]
    %v726 = vld [vmem:[#allocation7 + $0x1188] sm:$0xff]
    %v727 = vld [vmem:[#allocation7 + $0x1190] sm:$0xff]
    %v728 = vld [vmem:[#allocation7 + $0x1198] sm:$0xff]
    %v729 = vld [vmem:[#allocation7 + $0x11a0] sm:$0xff]
    %v730 = vld [vmem:[#allocation7 + $0x11a8] sm:$0xff]
    %v731 = vld [vmem:[#allocation7 + $0x11b0] sm:$0xff]
    %v732 = vld [vmem:[#allocation7 + $0x11b8] sm:$0xff]
    %v733 = vld [vmem:[#allocation7 + $0x11c0] sm:$0xff]
    %v734 = vld [vmem:[#allocation7 + $0x11c8] sm:$0xff]
    %v735 = vld [vmem:[#allocation7 + $0x11d0] sm:$0xff]
    %v736 = vld [vmem:[#allocation7 + $0x11d8] sm:$0xff]
    %v737 = vld [vmem:[#allocation7 + $0x11e0] sm:$0xff]
    %v738 = vld [vmem:[#allocation7 + $0x11e8] sm:$0xff]
    %v739 = vld [vmem:[#allocation7 + $0x11f0] sm:$0xff]
    %v740 = vld [vmem:[#allocation7 + $0x11f8] sm:$0xff]
    %v741 = vld [vmem:[#allocation7 + $0x1200] sm:$0xff]
    %v742 = vld [vmem:[#allocation7 + $0x1208] sm:$0xff]
    %v743 = vld [vmem:[#allocation7 + $0x1210] sm:$0xff]
    %v744 = vld [vmem:[#allocation7 + $0x1218] sm:$0xff]
    %v745 = vld [vmem:[#allocation7 + $0x1220] sm:$0xff]
    %v746 = vld [vmem:[#allocation7 + $0x1228] sm:$0xff]
    %v747 = vld [vmem:[#allocation7 + $0x1230] sm:$0xff]
    %v748 = vld [vmem:[#allocation7 + $0x1238] sm:$0xff]
    %v749 = vld [vmem:[#allocation7 + $0x1240] sm:$0xff]
    %v750 = vld [vmem:[#allocation7 + $0x1248] sm:$0xff]
    %v751 = vld [vmem:[#allocation7 + $0x1250] sm:$0xff]
    %v752 = vld [vmem:[#allocation7 + $0x1258] sm:$0xff]
    %v753 = vld [vmem:[#allocation7 + $0x1260] sm:$0xff]
    %v754 = vld [vmem:[#allocation7 + $0x1268] sm:$0xff]
    %v755 = vld [vmem:[#allocation7 + $0x1270] sm:$0xff]
    %v756 = vld [vmem:[#allocation7 + $0x1278] sm:$0xff]
    %v757 = vld [vmem:[#allocation7 + $0x1280] sm:$0xff]
    %v758 = vld [vmem:[#allocation7 + $0x1288] sm:$0xff]
    %v759 = vld [vmem:[#allocation7 + $0x1290] sm:$0xff]
    %v760 = vld [vmem:[#allocation7 + $0x1298] sm:$0xff]
    %v761 = vld [vmem:[#allocation7 + $0x12a0] sm:$0xff]
    %v762 = vld [vmem:[#allocation7 + $0x12a8] sm:$0xff]
    %v763 = vld [vmem:[#allocation7 + $0x12b0] sm:$0xff]
    %v764 = vld [vmem:[#allocation7 + $0x12b8] sm:$0xff]
    %v765 = vld [vmem:[#allocation7 + $0x12c0] sm:$0xff]
    %v766 = vld [vmem:[#allocation7 + $0x12c8] sm:$0xff]
    %v767 = vld [vmem:[#allocation7 + $0x12d0] sm:$0xff]
    %v768 = vld [vmem:[#allocation7 + $0x12d8] sm:$0xff]
    %v769 = vld [vmem:[#allocation7 + $0x12e0] sm:$0xff]
    %v770 = vld [vmem:[#allocation7 + $0x12e8] sm:$0xff]
    %v771 = vld [vmem:[#allocation7 + $0x12f0] sm:$0xff]
    %v772 = vld [vmem:[#allocation7 + $0x12f8] sm:$0xff]
    %v773 = vld [vmem:[#allocation7 + $0x1300] sm:$0xff]
    %v774 = vld [vmem:[#allocation7 + $0x1308] sm:$0xff]
    %v775 = vld [vmem:[#allocation7 + $0x1310] sm:$0xff]
    %v776 = vld [vmem:[#allocation7 + $0x1318] sm:$0xff]
    %v777 = vld [vmem:[#allocation7 + $0x1320] sm:$0xff]
    %v778 = vld [vmem:[#allocation7 + $0x1328] sm:$0xff]
    %v779 = vld [vmem:[#allocation7 + $0x1330] sm:$0xff]
    %v780 = vld [vmem:[#allocation7 + $0x1338] sm:$0xff]
    %v781 = vld [vmem:[#allocation7 + $0x1340] sm:$0xff]
    %v782 = vld [vmem:[#allocation7 + $0x1348] sm:$0xff]
    %v783 = vld [vmem:[#allocation7 + $0x1350] sm:$0xff]
    %v784 = vld [vmem:[#allocation7 + $0x1358] sm:$0xff]
    %v785 = vld [vmem:[#allocation7 + $0x1360] sm:$0xff]
    %v786 = vld [vmem:[#allocation7 + $0x1368] sm:$0xff]
    %v787 = vld [vmem:[#allocation7 + $0x1370] sm:$0xff]
    %v788 = vld [vmem:[#allocation7 + $0x1378] sm:$0xff]
    %v789 = vld [vmem:[#allocation7 + $0x1380] sm:$0xff]
    %v790 = vld [vmem:[#allocation7 + $0x1388] sm:$0xff]
    %v791 = vld [vmem:[#allocation7 + $0x1390] sm:$0xff]
    %v792 = vld [vmem:[#allocation7 + $0x1398] sm:$0xff]
    %v793 = vld [vmem:[#allocation7 + $0x13a0] sm:$0xff]
    %v794 = vld [vmem:[#allocation7 + $0x13a8] sm:$0xff]
    %v795 = vld [vmem:[#allocation7 + $0x13b0] sm:$0xff]
    %v796 = vld [vmem:[#allocation7 + $0x13b8] sm:$0xff]
    %v797 = vld [vmem:[#allocation7 + $0x13c0] sm:$0xff]
    %v798 = vld [vmem:[#allocation7 + $0x13c8] sm:$0xff]
    %v799 = vld [vmem:[#allocation7 + $0x13d0] sm:$0xff]
    %v800 = vld [vmem:[#allocation7 + $0x13d8] sm:$0xff]
    %v801 = vld [vmem:[#allocation7 + $0x13e0] sm:$0xff]
    %v802 = vld [vmem:[#allocation7 + $0x13e8] sm:$0xff]
    %v803 = vld [vmem:[#allocation7 + $0x13f0] sm:$0xff]
    %v804 = vld [vmem:[#allocation7 + $0x13f8] sm:$0xff]
    %v805 = vld [vmem:[#allocation7 + $0x1400] sm:$0xff]
    %v806 = vld [vmem:[#allocation7 + $0x1408] sm:$0xff]
    %v807 = vld [vmem:[#allocation7 + $0x1410] sm:$0xff]
    %v808 = vld [vmem:[#allocation7 + $0x1418] sm:$0xff]
    %v809 = vld [vmem:[#allocation7 + $0x1420] sm:$0xff]
    %v810 = vld [vmem:[#allocation7 + $0x1428] sm:$0xff]
    %v811 = vld [vmem:[#allocation7 + $0x1430] sm:$0xff]
    %v812 = vld [vmem:[#allocation7 + $0x1438] sm:$0xff]
    %v813 = vld [vmem:[#allocation7 + $0x1440] sm:$0xff]
    %v814 = vld [vmem:[#allocation7 + $0x1448] sm:$0xff]
    %v815 = vld [vmem:[#allocation7 + $0x1450] sm:$0xff]
    %v816 = vld [vmem:[#allocation7 + $0x1458] sm:$0xff]
    %v817 = vld [vmem:[#allocation7 + $0x1460] sm:$0xff]
    %v818 = vld [vmem:[#allocation7 + $0x1468] sm:$0xff]
    %v819 = vld [vmem:[#allocation7 + $0x1470] sm:$0xff]
    %v820 = vld [vmem:[#allocation7 + $0x1478] sm:$0xff]
    %v821 = vld [vmem:[#allocation7 + $0x1480] sm:$0xff]
    %v822 = vld [vmem:[#allocation7 + $0x1488] sm:$0xff]
    %v823 = vld [vmem:[#allocation7 + $0x1490] sm:$0xff]
    %v824 = vld [vmem:[#allocation7 + $0x1498] sm:$0xff]
    %v825 = vld [vmem:[#allocation7 + $0x14a0] sm:$0xff]
    %v826 = vld [vmem:[#allocation7 + $0x14a8] sm:$0xff]
    %v827 = vld [vmem:[#allocation7 + $0x14b0] sm:$0xff]
    %v828 = vld [vmem:[#allocation7 + $0x14b8] sm:$0xff]
    %v829 = vld [vmem:[#allocation7 + $0x14c0] sm:$0xff]
    %v830 = vld [vmem:[#allocation7 + $0x14c8] sm:$0xff]
    %v831 = vld [vmem:[#allocation7 + $0x14d0] sm:$0xff]
    %v832 = vld [vmem:[#allocation7 + $0x14d8] sm:$0xff]
    %v833 = vld [vmem:[#allocation7 + $0x14e0] sm:$0xff]
    %v834 = vld [vmem:[#allocation7 + $0x14e8] sm:$0xff]
    %v835 = vld [vmem:[#allocation7 + $0x14f0] sm:$0xff]
    %v836 = vld [vmem:[#allocation7 + $0x14f8] sm:$0xff]
    %v837 = vld [vmem:[#allocation7 + $0x1500] sm:$0xff]
    %v838 = vld [vmem:[#allocation7 + $0x1508] sm:$0xff]
    %v839 = vld [vmem:[#allocation7 + $0x1510] sm:$0xff]
    %v840 = vld [vmem:[#allocation7 + $0x1518] sm:$0xff]
    %v841 = vld [vmem:[#allocation7 + $0x1520] sm:$0xff]
    %v842 = vld [vmem:[#allocation7 + $0x1528] sm:$0xff]
    %v843 = vld [vmem:[#allocation7 + $0x1530] sm:$0xff]
    %v844 = vld [vmem:[#allocation7 + $0x1538] sm:$0xff]
    %v845 = vld [vmem:[#allocation7 + $0x1540] sm:$0xff]
    %v846 = vld [vmem:[#allocation7 + $0x1548] sm:$0xff]
    %v847 = vld [vmem:[#allocation7 + $0x1550] sm:$0xff]
    %v848 = vld [vmem:[#allocation7 + $0x1558] sm:$0xff]
    %v849 = vld [vmem:[#allocation7 + $0x1560] sm:$0xff]
    %v850 = vld [vmem:[#allocation7 + $0x1568] sm:$0xff]
    %v851 = vld [vmem:[#allocation7 + $0x1570] sm:$0xff]
    %v852 = vld [vmem:[#allocation7 + $0x1578] sm:$0xff]
    %v853 = vld [vmem:[#allocation7 + $0x1580] sm:$0xff]
    %v854 = vld [vmem:[#allocation7 + $0x1588] sm:$0xff]
    %v855 = vld [vmem:[#allocation7 + $0x1590] sm:$0xff]
    %v856 = vld [vmem:[#allocation7 + $0x1598] sm:$0xff]
    %v857 = vld [vmem:[#allocation7 + $0x15a0] sm:$0xff]
    %v858 = vld [vmem:[#allocation7 + $0x15a8] sm:$0xff]
    %v859 = vld [vmem:[#allocation7 + $0x15b0] sm:$0xff]
    %v860 = vld [vmem:[#allocation7 + $0x15b8] sm:$0xff]
    %v861 = vld [vmem:[#allocation7 + $0x15c0] sm:$0xff]
    %v862 = vld [vmem:[#allocation7 + $0x15c8] sm:$0xff]
    %v863 = vld [vmem:[#allocation7 + $0x15d0] sm:$0xff]
    %v864 = vld [vmem:[#allocation7 + $0x15d8] sm:$0xff]
    %v865 = vld [vmem:[#allocation7 + $0x15e0] sm:$0xff]
    %v866 = vld [vmem:[#allocation7 + $0x15e8] sm:$0xff]
    %v867 = vld [vmem:[#allocation7 + $0x15f0] sm:$0xff]
    %v868 = vld [vmem:[#allocation7 + $0x15f8] sm:$0xff]
    %v869 = vld [vmem:[#allocation7 + $0x1600] sm:$0xff]
    %v870 = vld [vmem:[#allocation7 + $0x1608] sm:$0xff]
    %v871 = vld [vmem:[#allocation7 + $0x1610] sm:$0xff]
    %v872 = vld [vmem:[#allocation7 + $0x1618] sm:$0xff]
    %v873 = vld [vmem:[#allocation7 + $0x1620] sm:$0xff]
    %v874 = vld [vmem:[#allocation7 + $0x1628] sm:$0xff]
    %v875 = vld [vmem:[#allocation7 + $0x1630] sm:$0xff]
    %v876 = vld [vmem:[#allocation7 + $0x1638] sm:$0xff]
    %v877 = vld [vmem:[#allocation7 + $0x1640] sm:$0xff]
    %v878 = vld [vmem:[#allocation7 + $0x1648] sm:$0xff]
    %v879 = vld [vmem:[#allocation7 + $0x1650] sm:$0xff]
    %v880 = vld [vmem:[#allocation7 + $0x1658] sm:$0xff]
    %v881 = vld [vmem:[#allocation7 + $0x1660] sm:$0xff]
    %v882 = vld [vmem:[#allocation7 + $0x1668] sm:$0xff]
    %v883 = vld [vmem:[#allocation7 + $0x1670] sm:$0xff]
    %v884 = vld [vmem:[#allocation7 + $0x1678] sm:$0xff]
    %v885 = vld [vmem:[#allocation7 + $0x1680] sm:$0xff]
    %v886 = vld [vmem:[#allocation7 + $0x1688] sm:$0xff]
    %v887 = vld [vmem:[#allocation7 + $0x1690] sm:$0xff]
    %v888 = vld [vmem:[#allocation7 + $0x1698] sm:$0xff]
    %v889 = vld [vmem:[#allocation7 + $0x16a0] sm:$0xff]
    %v890 = vld [vmem:[#allocation7 + $0x16a8] sm:$0xff]
    %v891 = vld [vmem:[#allocation7 + $0x16b0] sm:$0xff]
    %v892 = vld [vmem:[#allocation7 + $0x16b8] sm:$0xff]
    %v893 = vld [vmem:[#allocation7 + $0x16c0] sm:$0xff]
    %v894 = vld [vmem:[#allocation7 + $0x16c8] sm:$0xff]
    %v895 = vld [vmem:[#allocation7 + $0x16d0] sm:$0xff]
    %v896 = vld [vmem:[#allocation7 + $0x16d8] sm:$0xff]
    %v897 = vld [vmem:[#allocation7 + $0x16e0] sm:$0xff]
    %v898 = vld [vmem:[#allocation7 + $0x16e8] sm:$0xff]
    %v899 = vld [vmem:[#allocation7 + $0x16f0] sm:$0xff]
    %v900 = vld [vmem:[#allocation7 + $0x16f8] sm:$0xff]
    %v901 = vld [vmem:[#allocation7 + $0x1700] sm:$0xff]
    %v902 = vld [vmem:[#allocation7 + $0x1708] sm:$0xff]
    %v903 = vld [vmem:[#allocation7 + $0x1710] sm:$0xff]
    %v904 = vld [vmem:[#allocation7 + $0x1718] sm:$0xff]
    %v905 = vld [vmem:[#allocation7 + $0x1720] sm:$0xff]
    %v906 = vld [vmem:[#allocation7 + $0x1728] sm:$0xff]
    %v907 = vld [vmem:[#allocation7 + $0x1730] sm:$0xff]
    %v908 = vld [vmem:[#allocation7 + $0x1738] sm:$0xff]
    %v909 = vld [vmem:[#allocation7 + $0x1740] sm:$0xff]
    %v910 = vld [vmem:[#allocation7 + $0x1748] sm:$0xff]
    %v911 = vld [vmem:[#allocation7 + $0x1750] sm:$0xff]
    %v912 = vld [vmem:[#allocation7 + $0x1758] sm:$0xff]
    %v913 = vld [vmem:[#allocation7 + $0x1760] sm:$0xff]
    %v914 = vld [vmem:[#allocation7 + $0x1768] sm:$0xff]
    %v915 = vld [vmem:[#allocation7 + $0x1770] sm:$0xff]
    %v916 = vld [vmem:[#allocation7 + $0x1778] sm:$0xff]
    %v917 = vld [vmem:[#allocation7 + $0x1780] sm:$0xff]
    %v918 = vld [vmem:[#allocation7 + $0x1788] sm:$0xff]
    %v919 = vld [vmem:[#allocation7 + $0x1790] sm:$0xff]
    %v920 = vld [vmem:[#allocation7 + $0x1798] sm:$0xff]
    %v921 = vld [vmem:[#allocation7 + $0x17a0] sm:$0xff]
    %v922 = vld [vmem:[#allocation7 + $0x17a8] sm:$0xff]
    %v923 = vld [vmem:[#allocation7 + $0x17b0] sm:$0xff]
    %v924 = vld [vmem:[#allocation7 + $0x17b8] sm:$0xff]
    %v925 = vld [vmem:[#allocation7 + $0x17c0] sm:$0xff]
    %v926 = vld [vmem:[#allocation7 + $0x17c8] sm:$0xff]
    %v927 = vld [vmem:[#allocation7 + $0x17d0] sm:$0xff]
    %v928 = vld [vmem:[#allocation7 + $0x17d8] sm:$0xff]
    %v929 = vld [vmem:[#allocation7 + $0x17e0] sm:$0xff]
    %v930 = vld [vmem:[#allocation7 + $0x17e8] sm:$0xff]
    %v931 = vld [vmem:[#allocation7 + $0x17f0] sm:$0xff]
    %v932 = vld [vmem:[#allocation7 + $0x17f8] sm:$0xff]
    %v933 = vld [vmem:[#allocation7 + $0x1800] sm:$0xff]
    %v934 = vld [vmem:[#allocation7 + $0x1808] sm:$0xff]
    %v935 = vld [vmem:[#allocation7 + $0x1810] sm:$0xff]
    %v936 = vld [vmem:[#allocation7 + $0x1818] sm:$0xff]
    %v937 = vld [vmem:[#allocation7 + $0x1820] sm:$0xff]
    %v938 = vld [vmem:[#allocation7 + $0x1828] sm:$0xff]
    %v939 = vld [vmem:[#allocation7 + $0x1830] sm:$0xff]
    %v940 = vld [vmem:[#allocation7 + $0x1838] sm:$0xff]
    %v941 = vld [vmem:[#allocation7 + $0x1840] sm:$0xff]
    %v942 = vld [vmem:[#allocation7 + $0x1848] sm:$0xff]
    %v943 = vld [vmem:[#allocation7 + $0x1850] sm:$0xff]
    %v944 = vld [vmem:[#allocation7 + $0x1858] sm:$0xff]
    %v945 = vld [vmem:[#allocation7 + $0x1860] sm:$0xff]
    %v946 = vld [vmem:[#allocation7 + $0x1868] sm:$0xff]
    %v947 = vld [vmem:[#allocation7 + $0x1870] sm:$0xff]
    %v948 = vld [vmem:[#allocation7 + $0x1878] sm:$0xff]
    %v949 = vld [vmem:[#allocation7 + $0x1880] sm:$0xff]
    %v950 = vld [vmem:[#allocation7 + $0x1888] sm:$0xff]
    %v951 = vld [vmem:[#allocation7 + $0x1890] sm:$0xff]
    %v952 = vld [vmem:[#allocation7 + $0x1898] sm:$0xff]
    %v953 = vld [vmem:[#allocation7 + $0x18a0] sm:$0xff]
    %v954 = vld [vmem:[#allocation7 + $0x18a8] sm:$0xff]
    %v955 = vld [vmem:[#allocation7 + $0x18b0] sm:$0xff]
    %v956 = vld [vmem:[#allocation7 + $0x18b8] sm:$0xff]
    %v957 = vld [vmem:[#allocation7 + $0x18c0] sm:$0xff]
    %v958 = vld [vmem:[#allocation7 + $0x18c8] sm:$0xff]
    %v959 = vld [vmem:[#allocation7 + $0x18d0] sm:$0xff]
    %v960 = vld [vmem:[#allocation7 + $0x18d8] sm:$0xff]
    %v961 = vld [vmem:[#allocation7 + $0x18e0] sm:$0xff]
    %v962 = vld [vmem:[#allocation7 + $0x18e8] sm:$0xff]
    %v963 = vld [vmem:[#allocation7 + $0x18f0] sm:$0xff]
    %v964 = vld [vmem:[#allocation7 + $0x18f8] sm:$0xff]
    %v965 = vld [vmem:[#allocation7 + $0x1900] sm:$0xff]
    %v966 = vld [vmem:[#allocation7 + $0x1908] sm:$0xff]
    %v967 = vld [vmem:[#allocation7 + $0x1910] sm:$0xff]
    %v968 = vld [vmem:[#allocation7 + $0x1918] sm:$0xff]
    %v969 = vld [vmem:[#allocation7 + $0x1920] sm:$0xff]
    %v970 = vld [vmem:[#allocation7 + $0x1928] sm:$0xff]
    %v971 = vld [vmem:[#allocation7 + $0x1930] sm:$0xff]
    %v972 = vld [vmem:[#allocation7 + $0x1938] sm:$0xff]
    %v973 = vld [vmem:[#allocation7 + $0x1940] sm:$0xff]
    %v974 = vld [vmem:[#allocation7 + $0x1948] sm:$0xff]
    %v975 = vld [vmem:[#allocation7 + $0x1950] sm:$0xff]
    %v976 = vld [vmem:[#allocation7 + $0x1958] sm:$0xff]
    %v977 = vld [vmem:[#allocation7 + $0x1960] sm:$0xff]
    %v978 = vld [vmem:[#allocation7 + $0x1968] sm:$0xff]
    %v979 = vld [vmem:[#allocation7 + $0x1970] sm:$0xff]
    %v980 = vld [vmem:[#allocation7 + $0x1978] sm:$0xff]
    %v981 = vld [vmem:[#allocation7 + $0x1980] sm:$0xff]
    %v982 = vld [vmem:[#allocation7 + $0x1988] sm:$0xff]
    %v983 = vld [vmem:[#allocation7 + $0x1990] sm:$0xff]
    %v984 = vld [vmem:[#allocation7 + $0x1998] sm:$0xff]
    %v985 = vld [vmem:[#allocation7 + $0x19a0] sm:$0xff]
    %v986 = vld [vmem:[#allocation7 + $0x19a8] sm:$0xff]
    %v987 = vld [vmem:[#allocation7 + $0x19b0] sm:$0xff]
    %v988 = vld [vmem:[#allocation7 + $0x19b8] sm:$0xff]
    %v989 = vld [vmem:[#allocation7 + $0x19c0] sm:$0xff]
    %v990 = vld [vmem:[#allocation7 + $0x19c8] sm:$0xff]
    %v991 = vld [vmem:[#allocation7 + $0x19d0] sm:$0xff]
    %v992 = vld [vmem:[#allocation7 + $0x19d8] sm:$0xff]
    %v993 = vld [vmem:[#allocation7 + $0x19e0] sm:$0xff]
    %v994 = vld [vmem:[#allocation7 + $0x19e8] sm:$0xff]
    %v995 = vld [vmem:[#allocation7 + $0x19f0] sm:$0xff]
    %v996 = vld [vmem:[#allocation7 + $0x19f8] sm:$0xff]
    %v997 = vld [vmem:[#allocation7 + $0x1a00] sm:$0xff]
    %v998 = vld [vmem:[#allocation7 + $0x1a08] sm:$0xff]
    %v999 = vld [vmem:[#allocation7 + $0x1a10] sm:$0xff]
    %v1000 = vld [vmem:[#allocation7 + $0x1a18] sm:$0xff]
    %v1001 = vld [vmem:[#allocation7 + $0x1a20] sm:$0xff]
    %v1002 = vld [vmem:[#allocation7 + $0x1a28] sm:$0xff]
    %v1003 = vld [vmem:[#allocation7 + $0x1a30] sm:$0xff]
    %v1004 = vld [vmem:[#allocation7 + $0x1a38] sm:$0xff]
    %v1005 = vld [vmem:[#allocation7 + $0x1a40] sm:$0xff]
    %v1006 = vld [vmem:[#allocation7 + $0x1a48] sm:$0xff]
    %v1007 = vld [vmem:[#allocation7 + $0x1a50] sm:$0xff]
    %v1008 = vld [vmem:[#allocation7 + $0x1a58] sm:$0xff]
    %v1009 = vld [vmem:[#allocation7 + $0x1a60] sm:$0xff]
    %v1010 = vld [vmem:[#allocation7 + $0x1a68] sm:$0xff]
    %v1011 = vld [vmem:[#allocation7 + $0x1a70] sm:$0xff]
    %v1012 = vld [vmem:[#allocation7 + $0x1a78] sm:$0xff]
    %v1013 = vld [vmem:[#allocation7 + $0x1a80] sm:$0xff]
    %v1014 = vld [vmem:[#allocation7 + $0x1a88] sm:$0xff]
    %v1015 = vld [vmem:[#allocation7 + $0x1a90] sm:$0xff]
    %v1016 = vld [vmem:[#allocation7 + $0x1a98] sm:$0xff]
    %v1017 = vld [vmem:[#allocation7 + $0x1aa0] sm:$0xff]
    %v1018 = vld [vmem:[#allocation7 + $0x1aa8] sm:$0xff]
    %v1019 = vld [vmem:[#allocation7 + $0x1ab0] sm:$0xff]
    %v1020 = vld [vmem:[#allocation7 + $0x1ab8] sm:$0xff]
    %v1021 = vld [vmem:[#allocation7 + $0x1ac0] sm:$0xff]
    %v1022 = vld [vmem:[#allocation7 + $0x1ac8] sm:$0xff]
    %v1023 = vld [vmem:[#allocation7 + $0x1ad0] sm:$0xff]
    %v1024 = vld [vmem:[#allocation7 + $0x1ad8] sm:$0xff]
    %v1025 = vld [vmem:[#allocation7 + $0x1ae0] sm:$0xff]
    %v1026 = vld [vmem:[#allocation7 + $0x1ae8] sm:$0xff]
    %v1027 = vld [vmem:[#allocation7 + $0x1af0] sm:$0xff]
    %v1028 = vld [vmem:[#allocation7 + $0x1af8] sm:$0xff]
    %v1029 = vld [vmem:[#allocation7 + $0x1b00] sm:$0xff]
    %v1030 = vld [vmem:[#allocation7 + $0x1b08] sm:$0xff]
    %v1031 = vld [vmem:[#allocation7 + $0x1b10] sm:$0xff]
    %v1032 = vld [vmem:[#allocation7 + $0x1b18] sm:$0xff]
    %v1033 = vld [vmem:[#allocation7 + $0x1b20] sm:$0xff]
    %v1034 = vld [vmem:[#allocation7 + $0x1b28] sm:$0xff]
    %v1035 = vld [vmem:[#allocation7 + $0x1b30] sm:$0xff]
    %v1036 = vld [vmem:[#allocation7 + $0x1b38] sm:$0xff]
    %v1037 = vld [vmem:[#allocation7 + $0x1b40] sm:$0xff]
    %v1038 = vld [vmem:[#allocation7 + $0x1b48] sm:$0xff]
    %v1039 = vld [vmem:[#allocation7 + $0x1b50] sm:$0xff]
    %v1040 = vld [vmem:[#allocation7 + $0x1b58] sm:$0xff]
    %v1041 = vld [vmem:[#allocation7 + $0x1b60] sm:$0xff]
    %v1042 = vld [vmem:[#allocation7 + $0x1b68] sm:$0xff]
    %v1043 = vld [vmem:[#allocation7 + $0x1b70] sm:$0xff]
    %v1044 = vld [vmem:[#allocation7 + $0x1b78] sm:$0xff]
    %v1045 = vld [vmem:[#allocation7 + $0x1b80] sm:$0xff]
    %v1046 = vld [vmem:[#allocation7 + $0x1b88] sm:$0xff]
    %v1047 = vld [vmem:[#allocation7 + $0x1b90] sm:$0xff]
    %v1048 = vld [vmem:[#allocation7 + $0x1b98] sm:$0xff]
    %v1049 = vld [vmem:[#allocation7 + $0x1ba0] sm:$0xff]
    %v1050 = vld [vmem:[#allocation7 + $0x1ba8] sm:$0xff]
    %v1051 = vld [vmem:[#allocation7 + $0x1bb0] sm:$0xff]
    %v1052 = vld [vmem:[#allocation7 + $0x1bb8] sm:$0xff]
    %v1053 = vld [vmem:[#allocation7 + $0x1bc0] sm:$0xff]
    %v1054 = vld [vmem:[#allocation7 + $0x1bc8] sm:$0xff]
    %v1055 = vld [vmem:[#allocation7 + $0x1bd0] sm:$0xff]
    %v1056 = vld [vmem:[#allocation7 + $0x1bd8] sm:$0xff]
    %v1057 = vld [vmem:[#allocation7 + $0x1be0] sm:$0xff]
    %v1058 = vld [vmem:[#allocation7 + $0x1be8] sm:$0xff]
    %v1059 = vld [vmem:[#allocation7 + $0x1bf0] sm:$0xff]
    %v1060 = vld [vmem:[#allocation7 + $0x1bf8] sm:$0xff]
    %v1061 = vld [vmem:[#allocation7 + $0x1c00] sm:$0xff]
    %v1062 = vld [vmem:[#allocation7 + $0x1c08] sm:$0xff]
    %v1063 = vld [vmem:[#allocation7 + $0x1c10] sm:$0xff]
    %v1064 = vld [vmem:[#allocation7 + $0x1c18] sm:$0xff]
    %v1065 = vld [vmem:[#allocation7 + $0x1c20] sm:$0xff]
    %v1066 = vld [vmem:[#allocation7 + $0x1c28] sm:$0xff]
    %v1067 = vld [vmem:[#allocation7 + $0x1c30] sm:$0xff]
    %v1068 = vld [vmem:[#allocation7 + $0x1c38] sm:$0xff]
    %v1069 = vld [vmem:[#allocation7 + $0x1c40] sm:$0xff]
    %v1070 = vld [vmem:[#allocation7 + $0x1c48] sm:$0xff]
    %v1071 = vld [vmem:[#allocation7 + $0x1c50] sm:$0xff]
    %v1072 = vld [vmem:[#allocation7 + $0x1c58] sm:$0xff]
    %v1073 = vld [vmem:[#allocation7 + $0x1c60] sm:$0xff]
    %v1074 = vld [vmem:[#allocation7 + $0x1c68] sm:$0xff]
    %v1075 = vld [vmem:[#allocation7 + $0x1c70] sm:$0xff]
    %v1076 = vld [vmem:[#allocation7 + $0x1c78] sm:$0xff]
    %v1077 = vld [vmem:[#allocation7 + $0x1c80] sm:$0xff]
    %v1078 = vld [vmem:[#allocation7 + $0x1c88] sm:$0xff]
    %v1079 = vld [vmem:[#allocation7 + $0x1c90] sm:$0xff]
    %v1080 = vld [vmem:[#allocation7 + $0x1c98] sm:$0xff]
    %v1081 = vld [vmem:[#allocation7 + $0x1ca0] sm:$0xff]
    %v1082 = vld [vmem:[#allocation7 + $0x1ca8] sm:$0xff]
    %v1083 = vld [vmem:[#allocation7 + $0x1cb0] sm:$0xff]
    %v1084 = vld [vmem:[#allocation7 + $0x1cb8] sm:$0xff]
    %v1085 = vld [vmem:[#allocation7 + $0x1cc0] sm:$0xff]
    %v1086 = vld [vmem:[#allocation7 + $0x1cc8] sm:$0xff]
    %v1087 = vld [vmem:[#allocation7 + $0x1cd0] sm:$0xff]
    %v1088 = vld [vmem:[#allocation7 + $0x1cd8] sm:$0xff]
    %v1089 = vld [vmem:[#allocation7 + $0x1ce0] sm:$0xff]
    %v1090 = vld [vmem:[#allocation7 + $0x1ce8] sm:$0xff]
    %v1091 = vld [vmem:[#allocation7 + $0x1cf0] sm:$0xff]
    %v1092 = vld [vmem:[#allocation7 + $0x1cf8] sm:$0xff]
    %v1093 = vld [vmem:[#allocation7 + $0x1d00] sm:$0xff]
    %v1094 = vld [vmem:[#allocation7 + $0x1d08] sm:$0xff]
    %v1095 = vld [vmem:[#allocation7 + $0x1d10] sm:$0xff]
    %v1096 = vld [vmem:[#allocation7 + $0x1d18] sm:$0xff]
    %v1097 = vld [vmem:[#allocation7 + $0x1d20] sm:$0xff]
    %v1098 = vld [vmem:[#allocation7 + $0x1d28] sm:$0xff]
    %v1099 = vld [vmem:[#allocation7 + $0x1d30] sm:$0xff]
    %v1100 = vld [vmem:[#allocation7 + $0x1d38] sm:$0xff]
    %v1101 = vld [vmem:[#allocation7 + $0x1d40] sm:$0xff]
    %v1102 = vld [vmem:[#allocation7 + $0x1d48] sm:$0xff]
    %v1103 = vld [vmem:[#allocation7 + $0x1d50] sm:$0xff]
    %v1104 = vld [vmem:[#allocation7 + $0x1d58] sm:$0xff]
    %v1105 = vld [vmem:[#allocation7 + $0x1d60] sm:$0xff]
    %v1106 = vld [vmem:[#allocation7 + $0x1d68] sm:$0xff]
    %v1107 = vld [vmem:[#allocation7 + $0x1d70] sm:$0xff]
    %v1108 = vld [vmem:[#allocation7 + $0x1d78] sm:$0xff]
    %v1109 = vld [vmem:[#allocation7 + $0x1d80] sm:$0xff]
    %v1110 = vld [vmem:[#allocation7 + $0x1d88] sm:$0xff]
    %v1111 = vld [vmem:[#allocation7 + $0x1d90] sm:$0xff]
    %v1112 = vld [vmem:[#allocation7 + $0x1d98] sm:$0xff]
    %v1113 = vld [vmem:[#allocation7 + $0x1da0] sm:$0xff]
    %v1114 = vld [vmem:[#allocation7 + $0x1da8] sm:$0xff]
    %v1115 = vld [vmem:[#allocation7 + $0x1db0] sm:$0xff]
    %v1116 = vld [vmem:[#allocation7 + $0x1db8] sm:$0xff]
    %v1117 = vld [vmem:[#allocation7 + $0x1dc0] sm:$0xff]
    %v1118 = vld [vmem:[#allocation7 + $0x1dc8] sm:$0xff]
    %v1119 = vld [vmem:[#allocation7 + $0x1dd0] sm:$0xff]
    %v1120 = vld [vmem:[#allocation7 + $0x1dd8] sm:$0xff]
    %v1121 = vld [vmem:[#allocation7 + $0x1de0] sm:$0xff]
    %v1122 = vld [vmem:[#allocation7 + $0x1de8] sm:$0xff]
    %v1123 = vld [vmem:[#allocation7 + $0x1df0] sm:$0xff]
    %v1124 = vld [vmem:[#allocation7 + $0x1df8] sm:$0xff]
    %v1125 = vld [vmem:[#allocation7 + $0x1e00] sm:$0xff]
    %v1126 = vld [vmem:[#allocation7 + $0x1e08] sm:$0xff]
    %v1127 = vld [vmem:[#allocation7 + $0x1e10] sm:$0xff]
    %v1128 = vld [vmem:[#allocation7 + $0x1e18] sm:$0xff]
    %v1129 = vld [vmem:[#allocation7 + $0x1e20] sm:$0xff]
    %v1130 = vld [vmem:[#allocation7 + $0x1e28] sm:$0xff]
    %v1131 = vld [vmem:[#allocation7 + $0x1e30] sm:$0xff]
    %v1132 = vld [vmem:[#allocation7 + $0x1e38] sm:$0xff]
    %v1133 = vld [vmem:[#allocation7 + $0x1e40] sm:$0xff]
    %v1134 = vld [vmem:[#allocation7 + $0x1e48] sm:$0xff]
    %v1135 = vld [vmem:[#allocation7 + $0x1e50] sm:$0xff]
    %v1136 = vld [vmem:[#allocation7 + $0x1e58] sm:$0xff]
    %v1137 = vld [vmem:[#allocation7 + $0x1e60] sm:$0xff]
    %v1138 = vld [vmem:[#allocation7 + $0x1e68] sm:$0xff]
    %v1139 = vld [vmem:[#allocation7 + $0x1e70] sm:$0xff]
    %v1140 = vld [vmem:[#allocation7 + $0x1e78] sm:$0xff]
    %v1141 = vld [vmem:[#allocation7 + $0x1e80] sm:$0xff]
    %v1142 = vld [vmem:[#allocation7 + $0x1e88] sm:$0xff]
    %v1143 = vld [vmem:[#allocation7 + $0x1e90] sm:$0xff]
    %v1144 = vld [vmem:[#allocation7 + $0x1e98] sm:$0xff]
    %v1145 = vld [vmem:[#allocation7 + $0x1ea0] sm:$0xff]
    %v1146 = vld [vmem:[#allocation7 + $0x1ea8] sm:$0xff]
    %v1147 = vld [vmem:[#allocation7 + $0x1eb0] sm:$0xff]
    %v1148 = vld [vmem:[#allocation7 + $0x1eb8] sm:$0xff]
    %v1149 = vld [vmem:[#allocation7 + $0x1ec0] sm:$0xff]
    %v1150 = vld [vmem:[#allocation7 + $0x1ec8] sm:$0xff]
    %v1151 = vld [vmem:[#allocation7 + $0x1ed0] sm:$0xff]
    %v1152 = vld [vmem:[#allocation7 + $0x1ed8] sm:$0xff]
    %v1153 = vld [vmem:[#allocation7 + $0x1ee0] sm:$0xff]
    %v1154 = vld [vmem:[#allocation7 + $0x1ee8] sm:$0xff]
    %v1155 = vld [vmem:[#allocation7 + $0x1ef0] sm:$0xff]
    %v1156 = vld [vmem:[#allocation7 + $0x1ef8] sm:$0xff]
    %v1157 = vld [vmem:[#allocation7 + $0x1f00] sm:$0xff]
    %v1158 = vld [vmem:[#allocation7 + $0x1f08] sm:$0xff]
    %v1159 = vld [vmem:[#allocation7 + $0x1f10] sm:$0xff]
    %v1160 = vld [vmem:[#allocation7 + $0x1f18] sm:$0xff]
    %v1161 = vld [vmem:[#allocation7 + $0x1f20] sm:$0xff]
    %v1162 = vld [vmem:[#allocation7 + $0x1f28] sm:$0xff]
    %v1163 = vld [vmem:[#allocation7 + $0x1f30] sm:$0xff]
    %v1164 = vld [vmem:[#allocation7 + $0x1f38] sm:$0xff]
    %v1165 = vld [vmem:[#allocation7 + $0x1f40] sm:$0xff]
    %v1166 = vld [vmem:[#allocation7 + $0x1f48] sm:$0xff]
    %v1167 = vld [vmem:[#allocation7 + $0x1f50] sm:$0xff]
    %v1168 = vld [vmem:[#allocation7 + $0x1f58] sm:$0xff]
    %v1169 = vld [vmem:[#allocation7 + $0x1f60] sm:$0xff]
    %v1170 = vld [vmem:[#allocation7 + $0x1f68] sm:$0xff]
    %v1171 = vld [vmem:[#allocation7 + $0x1f70] sm:$0xff]
    %v1172 = vld [vmem:[#allocation7 + $0x1f78] sm:$0xff]
    %v1173 = vld [vmem:[#allocation7 + $0x1f80] sm:$0xff]
    %v1174 = vld [vmem:[#allocation7 + $0x1f88] sm:$0xff]
    %v1175 = vld [vmem:[#allocation7 + $0x1f90] sm:$0xff]
    %v1176 = vld [vmem:[#allocation7 + $0x1f98] sm:$0xff]
    %v1177 = vld [vmem:[#allocation7 + $0x1fa0] sm:$0xff]
    %v1178 = vld [vmem:[#allocation7 + $0x1fa8] sm:$0xff]
    %v1179 = vld [vmem:[#allocation7 + $0x1fb0] sm:$0xff]
    %v1180 = vld [vmem:[#allocation7 + $0x1fb8] sm:$0xff]
    %v1181 = vld [vmem:[#allocation7 + $0x1fc0] sm:$0xff]
    %v1182 = vld [vmem:[#allocation7 + $0x1fc8] sm:$0xff]
    %v1183 = vld [vmem:[#allocation7 + $0x1fd0] sm:$0xff]
    %v1184 = vld [vmem:[#allocation7 + $0x1fd8] sm:$0xff]
    %v1185 = vld [vmem:[#allocation7 + $0x1fe0] sm:$0xff]
    %v1186 = vld [vmem:[#allocation7 + $0x1fe8] sm:$0xff]
    %v1187 = vld [vmem:[#allocation7 + $0x1ff0] sm:$0xff]
    %v1188 = vld [vmem:[#allocation7 + $0x1ff8] sm:$0xff]
    %v1189 = vld [vmem:[#allocation9] sm:$0xff]
    %v1190 = vld [vmem:[#allocation9 + $0x8] sm:$0xff]
    %v1191 = vld [vmem:[#allocation9 + $0x10] sm:$0xff]
    %v1192 = vld [vmem:[#allocation9 + $0x18] sm:$0xff]
    %v1197 = vperm.slane %v1189, 0
    %v1198 = vperm.slane %v1189, 1
    %v1199 = vperm.slane %v1189, 2
    %v1200 = vperm.slane %v1189, 3
    %v1201 = vperm.slane %v1189, 4
    %v1202 = vperm.slane %v1189, 5
    %v1203 = vperm.slane %v1189, 6
    %v1204 = vperm.slane %v1189, 7
    %v1205 = vperm.slane %v1190, 0
    %v1206 = vperm.slane %v1190, 1
    %v1207 = vperm.slane %v1190, 2
    %v1208 = vperm.slane %v1190, 3
    %v1209 = vperm.slane %v1190, 4
    %v1210 = vperm.slane %v1190, 5
    %v1211 = vperm.slane %v1190, 6
    %v1212 = vperm.slane %v1190, 7
    %v1213 = vperm.slane %v1191, 0
    %v1214 = vperm.slane %v1191, 1
    %v1215 = vperm.slane %v1191, 2
    %v1216 = vperm.slane %v1191, 3
    %v1217 = vperm.slane %v1191, 4
    %v1218 = vperm.slane %v1191, 5
    %v1219 = vperm.slane %v1191, 6
    %v1220 = vperm.slane %v1191, 7
    %v1221 = vperm.slane %v1192, 0
    %v1222 = vperm.slane %v1192, 1
    %v1223 = vperm.slane %v1192, 2
    %v1224 = vperm.slane %v1192, 3
    %v1225 = vperm.slane %v1192, 4
    %v1226 = vperm.slane %v1192, 5
    %v1227 = vperm.slane %v1192, 6
    %v1228 = vperm.slane %v1192, 7
    %1261 = vmatpush.msra.mxu0 %v645
    %1262 = vmatpush.msra.mxu0 %v613
    %1263 = vmatpush.msra.mxu0 %v581
    %1264 = vmatpush.msra.mxu0 %v549
    %1265 = vmatpush.msra.mxu0 %v517
    %1266 = vmatpush.msra.mxu0 %v485
    %1267 = vmatpush.msra.mxu0 %v453
    %1268 = vmatpush.msra.mxu0 %v421
    %1269 = vmatpush.msra.mxu0 %v389
    %1270 = vmatpush.msra.mxu0 %v357
    %1271 = vmatpush.msra.mxu0 %v325
    %1272 = vmatpush.msra.mxu0 %v293
    %1273 = vmatpush.msra.mxu0 %v261
    %1274 = vmatpush.msra.mxu0 %v229
    %1275 = vmatpush.msra.mxu0 %v197
    %1276 = vmatpush.msra.mxu0 %v165
    %1277 = vmatmul.f32.gmra.mxu0 %v163
    %v1278 = vpop.f32.mrf.mxu0
    %v1279 = vadd.f32 %v1197, %v1278
    %1280 = vdwg.mxu0
    %1281 = vmatpush.msra.mxu0 %v1157
    %1282 = vmatpush.msra.mxu0 %v1125
    %1283 = vmatpush.msra.mxu0 %v1093
    %1284 = vmatpush.msra.mxu0 %v1061
    %1285 = vmatpush.msra.mxu0 %v1029
    %1286 = vmatpush.msra.mxu0 %v997
    %1287 = vmatpush.msra.mxu0 %v965
    %1288 = vmatpush.msra.mxu0 %v933
    %1289 = vmatpush.msra.mxu0 %v901
    %1290 = vmatpush.msra.mxu0 %v869
    %1291 = vmatpush.msra.mxu0 %v837
    %1292 = vmatpush.msra.mxu0 %v805
    %1293 = vmatpush.msra.mxu0 %v773
    %1294 = vmatpush.msra.mxu0 %v741
    %1295 = vmatpush.msra.mxu0 %v709
    %1296 = vmatpush.msra.mxu0 %v677
    %1297 = vmatmul.f32.gmra.mxu0 %v164
    %v1298 = vpop.f32.mrf.mxu0
    %v1299 = vadd.f32 %v1279, %v1298
    %1300 = vdwg.mxu0
    %1301 = vmatpush.msra.mxu0 %v646
    %1302 = vmatpush.msra.mxu0 %v614
    %1303 = vmatpush.msra.mxu0 %v582
    %1304 = vmatpush.msra.mxu0 %v550
    %1305 = vmatpush.msra.mxu0 %v518
    %1306 = vmatpush.msra.mxu0 %v486
    %1307 = vmatpush.msra.mxu0 %v454
    %1308 = vmatpush.msra.mxu0 %v422
    %1309 = vmatpush.msra.mxu0 %v390
    %1310 = vmatpush.msra.mxu0 %v358
    %1311 = vmatpush.msra.mxu0 %v326
    %1312 = vmatpush.msra.mxu0 %v294
    %1313 = vmatpush.msra.mxu0 %v262
    %1314 = vmatpush.msra.mxu0 %v230
    %1315 = vmatpush.msra.mxu0 %v198
    %1316 = vmatpush.msra.mxu0 %v166
    %1317 = vmatmul.f32.gmra.mxu0 %v163
    %v1318 = vpop.f32.mrf.mxu0
    %v1319 = vadd.f32 %v1198, %v1318
    %1320 = vdwg.mxu0
    %1321 = vmatpush.msra.mxu0 %v1158
    %1322 = vmatpush.msra.mxu0 %v1126
    %1323 = vmatpush.msra.mxu0 %v1094
    %1324 = vmatpush.msra.mxu0 %v1062
    %1325 = vmatpush.msra.mxu0 %v1030
    %1326 = vmatpush.msra.mxu0 %v998
    %1327 = vmatpush.msra.mxu0 %v966
    %1328 = vmatpush.msra.mxu0 %v934
    %1329 = vmatpush.msra.mxu0 %v902
    %1330 = vmatpush.msra.mxu0 %v870
    %1331 = vmatpush.msra.mxu0 %v838
    %1332 = vmatpush.msra.mxu0 %v806
    %1333 = vmatpush.msra.mxu0 %v774
    %1334 = vmatpush.msra.mxu0 %v742
    %1335 = vmatpush.msra.mxu0 %v710
    %1336 = vmatpush.msra.mxu0 %v678
    %1337 = vmatmul.f32.gmra.mxu0 %v164
    %v1338 = vpop.f32.mrf.mxu0
    %v1339 = vadd.f32 %v1319, %v1338
    %1340 = vdwg.mxu0
    %1341 = vmatpush.msra.mxu0 %v647
    %1342 = vmatpush.msra.mxu0 %v615
    %1343 = vmatpush.msra.mxu0 %v583
    %1344 = vmatpush.msra.mxu0 %v551
    %1345 = vmatpush.msra.mxu0 %v519
    %1346 = vmatpush.msra.mxu0 %v487
    %1347 = vmatpush.msra.mxu0 %v455
    %1348 = vmatpush.msra.mxu0 %v423
    %1349 = vmatpush.msra.mxu0 %v391
    %1350 = vmatpush.msra.mxu0 %v359
    %1351 = vmatpush.msra.mxu0 %v327
    %1352 = vmatpush.msra.mxu0 %v295
    %1353 = vmatpush.msra.mxu0 %v263
    %1354 = vmatpush.msra.mxu0 %v231
    %1355 = vmatpush.msra.mxu0 %v199
    %1356 = vmatpush.msra.mxu0 %v167
    %1357 = vmatmul.f32.gmra.mxu0 %v163
    %v1358 = vpop.f32.mrf.mxu0
    %v1359 = vadd.f32 %v1199, %v1358
    %1360 = vdwg.mxu0
    %1361 = vmatpush.msra.mxu0 %v1159
    %1362 = vmatpush.msra.mxu0 %v1127
    %1363 = vmatpush.msra.mxu0 %v1095
    %1364 = vmatpush.msra.mxu0 %v1063
    %1365 = vmatpush.msra.mxu0 %v1031
    %1366 = vmatpush.msra.mxu0 %v999
    %1367 = vmatpush.msra.mxu0 %v967
    %1368 = vmatpush.msra.mxu0 %v935
    %1369 = vmatpush.msra.mxu0 %v903
    %1370 = vmatpush.msra.mxu0 %v871
    %1371 = vmatpush.msra.mxu0 %v839
    %1372 = vmatpush.msra.mxu0 %v807
    %1373 = vmatpush.msra.mxu0 %v775
    %1374 = vmatpush.msra.mxu0 %v743
    %1375 = vmatpush.msra.mxu0 %v711
    %1376 = vmatpush.msra.mxu0 %v679
    %1377 = vmatmul.f32.gmra.mxu0 %v164
    %v1378 = vpop.f32.mrf.mxu0
    %v1379 = vadd.f32 %v1359, %v1378
    %1380 = vdwg.mxu0
    %1381 = vmatpush.msra.mxu0 %v648
    %1382 = vmatpush.msra.mxu0 %v616
    %1383 = vmatpush.msra.mxu0 %v584
    %1384 = vmatpush.msra.mxu0 %v552
    %1385 = vmatpush.msra.mxu0 %v520
    %1386 = vmatpush.msra.mxu0 %v488
    %1387 = vmatpush.msra.mxu0 %v456
    %1388 = vmatpush.msra.mxu0 %v424
    %1389 = vmatpush.msra.mxu0 %v392
    %1390 = vmatpush.msra.mxu0 %v360
    %1391 = vmatpush.msra.mxu0 %v328
    %1392 = vmatpush.msra.mxu0 %v296
    %1393 = vmatpush.msra.mxu0 %v264
    %1394 = vmatpush.msra.mxu0 %v232
    %1395 = vmatpush.msra.mxu0 %v200
    %1396 = vmatpush.msra.mxu0 %v168
    %1397 = vmatmul.f32.gmra.mxu0 %v163
    %v1398 = vpop.f32.mrf.mxu0
    %v1399 = vadd.f32 %v1200, %v1398
    %1400 = vdwg.mxu0
    %1401 = vmatpush.msra.mxu0 %v1160
    %1402 = vmatpush.msra.mxu0 %v1128
    %1403 = vmatpush.msra.mxu0 %v1096
    %1404 = vmatpush.msra.mxu0 %v1064
    %1405 = vmatpush.msra.mxu0 %v1032
    %1406 = vmatpush.msra.mxu0 %v1000
    %1407 = vmatpush.msra.mxu0 %v968
    %1408 = vmatpush.msra.mxu0 %v936
    %1409 = vmatpush.msra.mxu0 %v904
    %1410 = vmatpush.msra.mxu0 %v872
    %1411 = vmatpush.msra.mxu0 %v840
    %1412 = vmatpush.msra.mxu0 %v808
    %1413 = vmatpush.msra.mxu0 %v776
    %1414 = vmatpush.msra.mxu0 %v744
    %1415 = vmatpush.msra.mxu0 %v712
    %1416 = vmatpush.msra.mxu0 %v680
    %1417 = vmatmul.f32.gmra.mxu0 %v164
    %v1418 = vpop.f32.mrf.mxu0
    %v1419 = vadd.f32 %v1399, %v1418
    %1420 = vdwg.mxu0
    %1421 = vmatpush.msra.mxu0 %v649
    %1422 = vmatpush.msra.mxu0 %v617
    %1423 = vmatpush.msra.mxu0 %v585
    %1424 = vmatpush.msra.mxu0 %v553
    %1425 = vmatpush.msra.mxu0 %v521
    %1426 = vmatpush.msra.mxu0 %v489
    %1427 = vmatpush.msra.mxu0 %v457
    %1428 = vmatpush.msra.mxu0 %v425
    %1429 = vmatpush.msra.mxu0 %v393
    %1430 = vmatpush.msra.mxu0 %v361
    %1431 = vmatpush.msra.mxu0 %v329
    %1432 = vmatpush.msra.mxu0 %v297
    %1433 = vmatpush.msra.mxu0 %v265
    %1434 = vmatpush.msra.mxu0 %v233
    %1435 = vmatpush.msra.mxu0 %v201
    %1436 = vmatpush.msra.mxu0 %v169
    %1437 = vmatmul.f32.gmra.mxu0 %v163
    %v1438 = vpop.f32.mrf.mxu0
    %v1439 = vadd.f32 %v1201, %v1438
    %1440 = vdwg.mxu0
    %1441 = vmatpush.msra.mxu0 %v1161
    %1442 = vmatpush.msra.mxu0 %v1129
    %1443 = vmatpush.msra.mxu0 %v1097
    %1444 = vmatpush.msra.mxu0 %v1065
    %1445 = vmatpush.msra.mxu0 %v1033
    %1446 = vmatpush.msra.mxu0 %v1001
    %1447 = vmatpush.msra.mxu0 %v969
    %1448 = vmatpush.msra.mxu0 %v937
    %1449 = vmatpush.msra.mxu0 %v905
    %1450 = vmatpush.msra.mxu0 %v873
    %1451 = vmatpush.msra.mxu0 %v841
    %1452 = vmatpush.msra.mxu0 %v809
    %1453 = vmatpush.msra.mxu0 %v777
    %1454 = vmatpush.msra.mxu0 %v745
    %1455 = vmatpush.msra.mxu0 %v713
    %1456 = vmatpush.msra.mxu0 %v681
    %1457 = vmatmul.f32.gmra.mxu0 %v164
    %v1458 = vpop.f32.mrf.mxu0
    %v1459 = vadd.f32 %v1439, %v1458
    %1460 = vdwg.mxu0
    %1461 = vmatpush.msra.mxu0 %v650
    %1462 = vmatpush.msra.mxu0 %v618
    %1463 = vmatpush.msra.mxu0 %v586
    %1464 = vmatpush.msra.mxu0 %v554
    %1465 = vmatpush.msra.mxu0 %v522
    %1466 = vmatpush.msra.mxu0 %v490
    %1467 = vmatpush.msra.mxu0 %v458
    %1468 = vmatpush.msra.mxu0 %v426
    %1469 = vmatpush.msra.mxu0 %v394
    %1470 = vmatpush.msra.mxu0 %v362
    %1471 = vmatpush.msra.mxu0 %v330
    %1472 = vmatpush.msra.mxu0 %v298
    %1473 = vmatpush.msra.mxu0 %v266
    %1474 = vmatpush.msra.mxu0 %v234
    %1475 = vmatpush.msra.mxu0 %v202
    %1476 = vmatpush.msra.mxu0 %v170
    %1477 = vmatmul.f32.gmra.mxu0 %v163
    %v1478 = vpop.f32.mrf.mxu0
    %v1479 = vadd.f32 %v1202, %v1478
    %1480 = vdwg.mxu0
    %1481 = vmatpush.msra.mxu0 %v1162
    %1482 = vmatpush.msra.mxu0 %v1130
    %1483 = vmatpush.msra.mxu0 %v1098
    %1484 = vmatpush.msra.mxu0 %v1066
    %1485 = vmatpush.msra.mxu0 %v1034
    %1486 = vmatpush.msra.mxu0 %v1002
    %1487 = vmatpush.msra.mxu0 %v970
    %1488 = vmatpush.msra.mxu0 %v938
    %1489 = vmatpush.msra.mxu0 %v906
    %1490 = vmatpush.msra.mxu0 %v874
    %1491 = vmatpush.msra.mxu0 %v842
    %1492 = vmatpush.msra.mxu0 %v810
    %1493 = vmatpush.msra.mxu0 %v778
    %1494 = vmatpush.msra.mxu0 %v746
    %1495 = vmatpush.msra.mxu0 %v714
    %1496 = vmatpush.msra.mxu0 %v682
    %1497 = vmatmul.f32.gmra.mxu0 %v164
    %v1498 = vpop.f32.mrf.mxu0
    %v1499 = vadd.f32 %v1479, %v1498
    %1500 = vdwg.mxu0
    %1501 = vmatpush.msra.mxu0 %v651
    %1502 = vmatpush.msra.mxu0 %v619
    %1503 = vmatpush.msra.mxu0 %v587
    %1504 = vmatpush.msra.mxu0 %v555
    %1505 = vmatpush.msra.mxu0 %v523
    %1506 = vmatpush.msra.mxu0 %v491
    %1507 = vmatpush.msra.mxu0 %v459
    %1508 = vmatpush.msra.mxu0 %v427
    %1509 = vmatpush.msra.mxu0 %v395
    %1510 = vmatpush.msra.mxu0 %v363
    %1511 = vmatpush.msra.mxu0 %v331
    %1512 = vmatpush.msra.mxu0 %v299
    %1513 = vmatpush.msra.mxu0 %v267
    %1514 = vmatpush.msra.mxu0 %v235
    %1515 = vmatpush.msra.mxu0 %v203
    %1516 = vmatpush.msra.mxu0 %v171
    %1517 = vmatmul.f32.gmra.mxu0 %v163
    %v1518 = vpop.f32.mrf.mxu0
    %v1519 = vadd.f32 %v1203, %v1518
    %1520 = vdwg.mxu0
    %1521 = vmatpush.msra.mxu0 %v1163
    %1522 = vmatpush.msra.mxu0 %v1131
    %1523 = vmatpush.msra.mxu0 %v1099
    %1524 = vmatpush.msra.mxu0 %v1067
    %1525 = vmatpush.msra.mxu0 %v1035
    %1526 = vmatpush.msra.mxu0 %v1003
    %1527 = vmatpush.msra.mxu0 %v971
    %1528 = vmatpush.msra.mxu0 %v939
    %1529 = vmatpush.msra.mxu0 %v907
    %1530 = vmatpush.msra.mxu0 %v875
    %1531 = vmatpush.msra.mxu0 %v843
    %1532 = vmatpush.msra.mxu0 %v811
    %1533 = vmatpush.msra.mxu0 %v779
    %1534 = vmatpush.msra.mxu0 %v747
    %1535 = vmatpush.msra.mxu0 %v715
    %1536 = vmatpush.msra.mxu0 %v683
    %1537 = vmatmul.f32.gmra.mxu0 %v164
    %v1538 = vpop.f32.mrf.mxu0
    %v1539 = vadd.f32 %v1519, %v1538
    %1540 = vdwg.mxu0
    %1541 = vmatpush.msra.mxu0 %v652
    %1542 = vmatpush.msra.mxu0 %v620
    %1543 = vmatpush.msra.mxu0 %v588
    %1544 = vmatpush.msra.mxu0 %v556
    %1545 = vmatpush.msra.mxu0 %v524
    %1546 = vmatpush.msra.mxu0 %v492
    %1547 = vmatpush.msra.mxu0 %v460
    %1548 = vmatpush.msra.mxu0 %v428
    %1549 = vmatpush.msra.mxu0 %v396
    %1550 = vmatpush.msra.mxu0 %v364
    %1551 = vmatpush.msra.mxu0 %v332
    %1552 = vmatpush.msra.mxu0 %v300
    %1553 = vmatpush.msra.mxu0 %v268
    %1554 = vmatpush.msra.mxu0 %v236
    %1555 = vmatpush.msra.mxu0 %v204
    %1556 = vmatpush.msra.mxu0 %v172
    %1557 = vmatmul.f32.gmra.mxu0 %v163
    %v1558 = vpop.f32.mrf.mxu0
    %v1559 = vadd.f32 %v1204, %v1558
    %1560 = vdwg.mxu0
    %1561 = vmatpush.msra.mxu0 %v1164
    %1562 = vmatpush.msra.mxu0 %v1132
    %1563 = vmatpush.msra.mxu0 %v1100
    %1564 = vmatpush.msra.mxu0 %v1068
    %1565 = vmatpush.msra.mxu0 %v1036
    %1566 = vmatpush.msra.mxu0 %v1004
    %1567 = vmatpush.msra.mxu0 %v972
    %1568 = vmatpush.msra.mxu0 %v940
    %1569 = vmatpush.msra.mxu0 %v908
    %1570 = vmatpush.msra.mxu0 %v876
    %1571 = vmatpush.msra.mxu0 %v844
    %1572 = vmatpush.msra.mxu0 %v812
    %1573 = vmatpush.msra.mxu0 %v780
    %1574 = vmatpush.msra.mxu0 %v748
    %1575 = vmatpush.msra.mxu0 %v716
    %1576 = vmatpush.msra.mxu0 %v684
    %1577 = vmatmul.f32.gmra.mxu0 %v164
    %v1578 = vpop.f32.mrf.mxu0
    %v1579 = vadd.f32 %v1559, %v1578
    %1580 = vdwg.mxu0
    %1581 = vmatpush.msra.mxu0 %v653
    %1582 = vmatpush.msra.mxu0 %v621
    %1583 = vmatpush.msra.mxu0 %v589
    %1584 = vmatpush.msra.mxu0 %v557
    %1585 = vmatpush.msra.mxu0 %v525
    %1586 = vmatpush.msra.mxu0 %v493
    %1587 = vmatpush.msra.mxu0 %v461
    %1588 = vmatpush.msra.mxu0 %v429
    %1589 = vmatpush.msra.mxu0 %v397
    %1590 = vmatpush.msra.mxu0 %v365
    %1591 = vmatpush.msra.mxu0 %v333
    %1592 = vmatpush.msra.mxu0 %v301
    %1593 = vmatpush.msra.mxu0 %v269
    %1594 = vmatpush.msra.mxu0 %v237
    %1595 = vmatpush.msra.mxu0 %v205
    %1596 = vmatpush.msra.mxu0 %v173
    %1597 = vmatmul.f32.gmra.mxu0 %v163
    %v1598 = vpop.f32.mrf.mxu0
    %v1599 = vadd.f32 %v1205, %v1598
    %1600 = vdwg.mxu0
    %1601 = vmatpush.msra.mxu0 %v1165
    %1602 = vmatpush.msra.mxu0 %v1133
    %1603 = vmatpush.msra.mxu0 %v1101
    %1604 = vmatpush.msra.mxu0 %v1069
    %1605 = vmatpush.msra.mxu0 %v1037
    %1606 = vmatpush.msra.mxu0 %v1005
    %1607 = vmatpush.msra.mxu0 %v973
    %1608 = vmatpush.msra.mxu0 %v941
    %1609 = vmatpush.msra.mxu0 %v909
    %1610 = vmatpush.msra.mxu0 %v877
    %1611 = vmatpush.msra.mxu0 %v845
    %1612 = vmatpush.msra.mxu0 %v813
    %1613 = vmatpush.msra.mxu0 %v781
    %1614 = vmatpush.msra.mxu0 %v749
    %1615 = vmatpush.msra.mxu0 %v717
    %1616 = vmatpush.msra.mxu0 %v685
    %1617 = vmatmul.f32.gmra.mxu0 %v164
    %v1618 = vpop.f32.mrf.mxu0
    %v1619 = vadd.f32 %v1599, %v1618
    %1620 = vdwg.mxu0
    %1621 = vmatpush.msra.mxu0 %v654
    %1622 = vmatpush.msra.mxu0 %v622
    %1623 = vmatpush.msra.mxu0 %v590
    %1624 = vmatpush.msra.mxu0 %v558
    %1625 = vmatpush.msra.mxu0 %v526
    %1626 = vmatpush.msra.mxu0 %v494
    %1627 = vmatpush.msra.mxu0 %v462
    %1628 = vmatpush.msra.mxu0 %v430
    %1629 = vmatpush.msra.mxu0 %v398
    %1630 = vmatpush.msra.mxu0 %v366
    %1631 = vmatpush.msra.mxu0 %v334
    %1632 = vmatpush.msra.mxu0 %v302
    %1633 = vmatpush.msra.mxu0 %v270
    %1634 = vmatpush.msra.mxu0 %v238
    %1635 = vmatpush.msra.mxu0 %v206
    %1636 = vmatpush.msra.mxu0 %v174
    %1637 = vmatmul.f32.gmra.mxu0 %v163
    %v1638 = vpop.f32.mrf.mxu0
    %v1639 = vadd.f32 %v1206, %v1638
    %1640 = vdwg.mxu0
    %1641 = vmatpush.msra.mxu0 %v1166
    %1642 = vmatpush.msra.mxu0 %v1134
    %1643 = vmatpush.msra.mxu0 %v1102
    %1644 = vmatpush.msra.mxu0 %v1070
    %1645 = vmatpush.msra.mxu0 %v1038
    %1646 = vmatpush.msra.mxu0 %v1006
    %1647 = vmatpush.msra.mxu0 %v974
    %1648 = vmatpush.msra.mxu0 %v942
    %1649 = vmatpush.msra.mxu0 %v910
    %1650 = vmatpush.msra.mxu0 %v878
    %1651 = vmatpush.msra.mxu0 %v846
    %1652 = vmatpush.msra.mxu0 %v814
    %1653 = vmatpush.msra.mxu0 %v782
    %1654 = vmatpush.msra.mxu0 %v750
    %1655 = vmatpush.msra.mxu0 %v718
    %1656 = vmatpush.msra.mxu0 %v686
    %1657 = vmatmul.f32.gmra.mxu0 %v164
    %v1658 = vpop.f32.mrf.mxu0
    %v1659 = vadd.f32 %v1639, %v1658
    %1660 = vdwg.mxu0
    %1661 = vmatpush.msra.mxu0 %v655
    %1662 = vmatpush.msra.mxu0 %v623
    %1663 = vmatpush.msra.mxu0 %v591
    %1664 = vmatpush.msra.mxu0 %v559
    %1665 = vmatpush.msra.mxu0 %v527
    %1666 = vmatpush.msra.mxu0 %v495
    %1667 = vmatpush.msra.mxu0 %v463
    %1668 = vmatpush.msra.mxu0 %v431
    %1669 = vmatpush.msra.mxu0 %v399
    %1670 = vmatpush.msra.mxu0 %v367
    %1671 = vmatpush.msra.mxu0 %v335
    %1672 = vmatpush.msra.mxu0 %v303
    %1673 = vmatpush.msra.mxu0 %v271
    %1674 = vmatpush.msra.mxu0 %v239
    %1675 = vmatpush.msra.mxu0 %v207
    %1676 = vmatpush.msra.mxu0 %v175
    %1677 = vmatmul.f32.gmra.mxu0 %v163
    %v1678 = vpop.f32.mrf.mxu0
    %v1679 = vadd.f32 %v1207, %v1678
    %1680 = vdwg.mxu0
    %1681 = vmatpush.msra.mxu0 %v1167
    %1682 = vmatpush.msra.mxu0 %v1135
    %1683 = vmatpush.msra.mxu0 %v1103
    %1684 = vmatpush.msra.mxu0 %v1071
    %1685 = vmatpush.msra.mxu0 %v1039
    %1686 = vmatpush.msra.mxu0 %v1007
    %1687 = vmatpush.msra.mxu0 %v975
    %1688 = vmatpush.msra.mxu0 %v943
    %1689 = vmatpush.msra.mxu0 %v911
    %1690 = vmatpush.msra.mxu0 %v879
    %1691 = vmatpush.msra.mxu0 %v847
    %1692 = vmatpush.msra.mxu0 %v815
    %1693 = vmatpush.msra.mxu0 %v783
    %1694 = vmatpush.msra.mxu0 %v751
    %1695 = vmatpush.msra.mxu0 %v719
    %1696 = vmatpush.msra.mxu0 %v687
    %1697 = vmatmul.f32.gmra.mxu0 %v164
    %v1698 = vpop.f32.mrf.mxu0
    %v1699 = vadd.f32 %v1679, %v1698
    %1700 = vdwg.mxu0
    %1701 = vmatpush.msra.mxu0 %v656
    %1702 = vmatpush.msra.mxu0 %v624
    %1703 = vmatpush.msra.mxu0 %v592
    %1704 = vmatpush.msra.mxu0 %v560
    %1705 = vmatpush.msra.mxu0 %v528
    %1706 = vmatpush.msra.mxu0 %v496
    %1707 = vmatpush.msra.mxu0 %v464
    %1708 = vmatpush.msra.mxu0 %v432
    %1709 = vmatpush.msra.mxu0 %v400
    %1710 = vmatpush.msra.mxu0 %v368
    %1711 = vmatpush.msra.mxu0 %v336
    %1712 = vmatpush.msra.mxu0 %v304
    %1713 = vmatpush.msra.mxu0 %v272
    %1714 = vmatpush.msra.mxu0 %v240
    %1715 = vmatpush.msra.mxu0 %v208
    %1716 = vmatpush.msra.mxu0 %v176
    %1717 = vmatmul.f32.gmra.mxu0 %v163
    %v1718 = vpop.f32.mrf.mxu0
    %v1719 = vadd.f32 %v1208, %v1718
    %1720 = vdwg.mxu0
    %1721 = vmatpush.msra.mxu0 %v1168
    %1722 = vmatpush.msra.mxu0 %v1136
    %1723 = vmatpush.msra.mxu0 %v1104
    %1724 = vmatpush.msra.mxu0 %v1072
    %1725 = vmatpush.msra.mxu0 %v1040
    %1726 = vmatpush.msra.mxu0 %v1008
    %1727 = vmatpush.msra.mxu0 %v976
    %1728 = vmatpush.msra.mxu0 %v944
    %1729 = vmatpush.msra.mxu0 %v912
    %1730 = vmatpush.msra.mxu0 %v880
    %1731 = vmatpush.msra.mxu0 %v848
    %1732 = vmatpush.msra.mxu0 %v816
    %1733 = vmatpush.msra.mxu0 %v784
    %1734 = vmatpush.msra.mxu0 %v752
    %1735 = vmatpush.msra.mxu0 %v720
    %1736 = vmatpush.msra.mxu0 %v688
    %1737 = vmatmul.f32.gmra.mxu0 %v164
    %v1738 = vpop.f32.mrf.mxu0
    %v1739 = vadd.f32 %v1719, %v1738
    %1740 = vdwg.mxu0
    %1741 = vmatpush.msra.mxu0 %v657
    %1742 = vmatpush.msra.mxu0 %v625
    %1743 = vmatpush.msra.mxu0 %v593
    %1744 = vmatpush.msra.mxu0 %v561
    %1745 = vmatpush.msra.mxu0 %v529
    %1746 = vmatpush.msra.mxu0 %v497
    %1747 = vmatpush.msra.mxu0 %v465
    %1748 = vmatpush.msra.mxu0 %v433
    %1749 = vmatpush.msra.mxu0 %v401
    %1750 = vmatpush.msra.mxu0 %v369
    %1751 = vmatpush.msra.mxu0 %v337
    %1752 = vmatpush.msra.mxu0 %v305
    %1753 = vmatpush.msra.mxu0 %v273
    %1754 = vmatpush.msra.mxu0 %v241
    %1755 = vmatpush.msra.mxu0 %v209
    %1756 = vmatpush.msra.mxu0 %v177
    %1757 = vmatmul.f32.gmra.mxu0 %v163
    %v1758 = vpop.f32.mrf.mxu0
    %v1759 = vadd.f32 %v1209, %v1758
    %1760 = vdwg.mxu0
    %1761 = vmatpush.msra.mxu0 %v1169
    %1762 = vmatpush.msra.mxu0 %v1137
    %1763 = vmatpush.msra.mxu0 %v1105
    %1764 = vmatpush.msra.mxu0 %v1073
    %1765 = vmatpush.msra.mxu0 %v1041
    %1766 = vmatpush.msra.mxu0 %v1009
    %1767 = vmatpush.msra.mxu0 %v977
    %1768 = vmatpush.msra.mxu0 %v945
    %1769 = vmatpush.msra.mxu0 %v913
    %1770 = vmatpush.msra.mxu0 %v881
    %1771 = vmatpush.msra.mxu0 %v849
    %1772 = vmatpush.msra.mxu0 %v817
    %1773 = vmatpush.msra.mxu0 %v785
    %1774 = vmatpush.msra.mxu0 %v753
    %1775 = vmatpush.msra.mxu0 %v721
    %1776 = vmatpush.msra.mxu0 %v689
    %1777 = vmatmul.f32.gmra.mxu0 %v164
    %v1778 = vpop.f32.mrf.mxu0
    %v1779 = vadd.f32 %v1759, %v1778
    %1780 = vdwg.mxu0
    %1781 = vmatpush.msra.mxu0 %v658
    %1782 = vmatpush.msra.mxu0 %v626
    %1783 = vmatpush.msra.mxu0 %v594
    %1784 = vmatpush.msra.mxu0 %v562
    %1785 = vmatpush.msra.mxu0 %v530
    %1786 = vmatpush.msra.mxu0 %v498
    %1787 = vmatpush.msra.mxu0 %v466
    %1788 = vmatpush.msra.mxu0 %v434
    %1789 = vmatpush.msra.mxu0 %v402
    %1790 = vmatpush.msra.mxu0 %v370
    %1791 = vmatpush.msra.mxu0 %v338
    %1792 = vmatpush.msra.mxu0 %v306
    %1793 = vmatpush.msra.mxu0 %v274
    %1794 = vmatpush.msra.mxu0 %v242
    %1795 = vmatpush.msra.mxu0 %v210
    %1796 = vmatpush.msra.mxu0 %v178
    %1797 = vmatmul.f32.gmra.mxu0 %v163
    %v1798 = vpop.f32.mrf.mxu0
    %v1799 = vadd.f32 %v1210, %v1798
    %1800 = vdwg.mxu0
    %1801 = vmatpush.msra.mxu0 %v1170
    %1802 = vmatpush.msra.mxu0 %v1138
    %1803 = vmatpush.msra.mxu0 %v1106
    %1804 = vmatpush.msra.mxu0 %v1074
    %1805 = vmatpush.msra.mxu0 %v1042
    %1806 = vmatpush.msra.mxu0 %v1010
    %1807 = vmatpush.msra.mxu0 %v978
    %1808 = vmatpush.msra.mxu0 %v946
    %1809 = vmatpush.msra.mxu0 %v914
    %1810 = vmatpush.msra.mxu0 %v882
    %1811 = vmatpush.msra.mxu0 %v850
    %1812 = vmatpush.msra.mxu0 %v818
    %1813 = vmatpush.msra.mxu0 %v786
    %1814 = vmatpush.msra.mxu0 %v754
    %1815 = vmatpush.msra.mxu0 %v722
    %1816 = vmatpush.msra.mxu0 %v690
    %1817 = vmatmul.f32.gmra.mxu0 %v164
    %v1818 = vpop.f32.mrf.mxu0
    %v1819 = vadd.f32 %v1799, %v1818
    %1820 = vdwg.mxu0
    %1821 = vmatpush.msra.mxu0 %v659
    %1822 = vmatpush.msra.mxu0 %v627
    %1823 = vmatpush.msra.mxu0 %v595
    %1824 = vmatpush.msra.mxu0 %v563
    %1825 = vmatpush.msra.mxu0 %v531
    %1826 = vmatpush.msra.mxu0 %v499
    %1827 = vmatpush.msra.mxu0 %v467
    %1828 = vmatpush.msra.mxu0 %v435
    %1829 = vmatpush.msra.mxu0 %v403
    %1830 = vmatpush.msra.mxu0 %v371
    %1831 = vmatpush.msra.mxu0 %v339
    %1832 = vmatpush.msra.mxu0 %v307
    %1833 = vmatpush.msra.mxu0 %v275
    %1834 = vmatpush.msra.mxu0 %v243
    %1835 = vmatpush.msra.mxu0 %v211
    %1836 = vmatpush.msra.mxu0 %v179
    %1837 = vmatmul.f32.gmra.mxu0 %v163
    %v1838 = vpop.f32.mrf.mxu0
    %v1839 = vadd.f32 %v1211, %v1838
    %1840 = vdwg.mxu0
    %1841 = vmatpush.msra.mxu0 %v1171
    %1842 = vmatpush.msra.mxu0 %v1139
    %1843 = vmatpush.msra.mxu0 %v1107
    %1844 = vmatpush.msra.mxu0 %v1075
    %1845 = vmatpush.msra.mxu0 %v1043
    %1846 = vmatpush.msra.mxu0 %v1011
    %1847 = vmatpush.msra.mxu0 %v979
    %1848 = vmatpush.msra.mxu0 %v947
    %1849 = vmatpush.msra.mxu0 %v915
    %1850 = vmatpush.msra.mxu0 %v883
    %1851 = vmatpush.msra.mxu0 %v851
    %1852 = vmatpush.msra.mxu0 %v819
    %1853 = vmatpush.msra.mxu0 %v787
    %1854 = vmatpush.msra.mxu0 %v755
    %1855 = vmatpush.msra.mxu0 %v723
    %1856 = vmatpush.msra.mxu0 %v691
    %1857 = vmatmul.f32.gmra.mxu0 %v164
    %v1858 = vpop.f32.mrf.mxu0
    %v1859 = vadd.f32 %v1839, %v1858
    %1860 = vdwg.mxu0
    %1861 = vmatpush.msra.mxu0 %v660
    %1862 = vmatpush.msra.mxu0 %v628
    %1863 = vmatpush.msra.mxu0 %v596
    %1864 = vmatpush.msra.mxu0 %v564
    %1865 = vmatpush.msra.mxu0 %v532
    %1866 = vmatpush.msra.mxu0 %v500
    %1867 = vmatpush.msra.mxu0 %v468
    %1868 = vmatpush.msra.mxu0 %v436
    %1869 = vmatpush.msra.mxu0 %v404
    %1870 = vmatpush.msra.mxu0 %v372
    %1871 = vmatpush.msra.mxu0 %v340
    %1872 = vmatpush.msra.mxu0 %v308
    %1873 = vmatpush.msra.mxu0 %v276
    %1874 = vmatpush.msra.mxu0 %v244
    %1875 = vmatpush.msra.mxu0 %v212
    %1876 = vmatpush.msra.mxu0 %v180
    %1877 = vmatmul.f32.gmra.mxu0 %v163
    %v1878 = vpop.f32.mrf.mxu0
    %v1879 = vadd.f32 %v1212, %v1878
    %1880 = vdwg.mxu0
    %1881 = vmatpush.msra.mxu0 %v1172
    %1882 = vmatpush.msra.mxu0 %v1140
    %1883 = vmatpush.msra.mxu0 %v1108
    %1884 = vmatpush.msra.mxu0 %v1076
    %1885 = vmatpush.msra.mxu0 %v1044
    %1886 = vmatpush.msra.mxu0 %v1012
    %1887 = vmatpush.msra.mxu0 %v980
    %1888 = vmatpush.msra.mxu0 %v948
    %1889 = vmatpush.msra.mxu0 %v916
    %1890 = vmatpush.msra.mxu0 %v884
    %1891 = vmatpush.msra.mxu0 %v852
    %1892 = vmatpush.msra.mxu0 %v820
    %1893 = vmatpush.msra.mxu0 %v788
    %1894 = vmatpush.msra.mxu0 %v756
    %1895 = vmatpush.msra.mxu0 %v724
    %1896 = vmatpush.msra.mxu0 %v692
    %1897 = vmatmul.f32.gmra.mxu0 %v164
    %v1898 = vpop.f32.mrf.mxu0
    %v1899 = vadd.f32 %v1879, %v1898
    %1900 = vdwg.mxu0
    %1901 = vmatpush.msra.mxu0 %v661
    %1902 = vmatpush.msra.mxu0 %v629
    %1903 = vmatpush.msra.mxu0 %v597
    %1904 = vmatpush.msra.mxu0 %v565
    %1905 = vmatpush.msra.mxu0 %v533
    %1906 = vmatpush.msra.mxu0 %v501
    %1907 = vmatpush.msra.mxu0 %v469
    %1908 = vmatpush.msra.mxu0 %v437
    %1909 = vmatpush.msra.mxu0 %v405
    %1910 = vmatpush.msra.mxu0 %v373
    %1911 = vmatpush.msra.mxu0 %v341
    %1912 = vmatpush.msra.mxu0 %v309
    %1913 = vmatpush.msra.mxu0 %v277
    %1914 = vmatpush.msra.mxu0 %v245
    %1915 = vmatpush.msra.mxu0 %v213
    %1916 = vmatpush.msra.mxu0 %v181
    %1917 = vmatmul.f32.gmra.mxu0 %v163
    %v1918 = vpop.f32.mrf.mxu0
    %v1919 = vadd.f32 %v1213, %v1918
    %1920 = vdwg.mxu0
    %1921 = vmatpush.msra.mxu0 %v1173
    %1922 = vmatpush.msra.mxu0 %v1141
    %1923 = vmatpush.msra.mxu0 %v1109
    %1924 = vmatpush.msra.mxu0 %v1077
    %1925 = vmatpush.msra.mxu0 %v1045
    %1926 = vmatpush.msra.mxu0 %v1013
    %1927 = vmatpush.msra.mxu0 %v981
    %1928 = vmatpush.msra.mxu0 %v949
    %1929 = vmatpush.msra.mxu0 %v917
    %1930 = vmatpush.msra.mxu0 %v885
    %1931 = vmatpush.msra.mxu0 %v853
    %1932 = vmatpush.msra.mxu0 %v821
    %1933 = vmatpush.msra.mxu0 %v789
    %1934 = vmatpush.msra.mxu0 %v757
    %1935 = vmatpush.msra.mxu0 %v725
    %1936 = vmatpush.msra.mxu0 %v693
    %1937 = vmatmul.f32.gmra.mxu0 %v164
    %v1938 = vpop.f32.mrf.mxu0
    %v1939 = vadd.f32 %v1919, %v1938
    %1940 = vdwg.mxu0
    %1941 = vmatpush.msra.mxu0 %v662
    %1942 = vmatpush.msra.mxu0 %v630
    %1943 = vmatpush.msra.mxu0 %v598
    %1944 = vmatpush.msra.mxu0 %v566
    %1945 = vmatpush.msra.mxu0 %v534
    %1946 = vmatpush.msra.mxu0 %v502
    %1947 = vmatpush.msra.mxu0 %v470
    %1948 = vmatpush.msra.mxu0 %v438
    %1949 = vmatpush.msra.mxu0 %v406
    %1950 = vmatpush.msra.mxu0 %v374
    %1951 = vmatpush.msra.mxu0 %v342
    %1952 = vmatpush.msra.mxu0 %v310
    %1953 = vmatpush.msra.mxu0 %v278
    %1954 = vmatpush.msra.mxu0 %v246
    %1955 = vmatpush.msra.mxu0 %v214
    %1956 = vmatpush.msra.mxu0 %v182
    %1957 = vmatmul.f32.gmra.mxu0 %v163
    %v1958 = vpop.f32.mrf.mxu0
    %v1959 = vadd.f32 %v1214, %v1958
    %1960 = vdwg.mxu0
    %1961 = vmatpush.msra.mxu0 %v1174
    %1962 = vmatpush.msra.mxu0 %v1142
    %1963 = vmatpush.msra.mxu0 %v1110
    %1964 = vmatpush.msra.mxu0 %v1078
    %1965 = vmatpush.msra.mxu0 %v1046
    %1966 = vmatpush.msra.mxu0 %v1014
    %1967 = vmatpush.msra.mxu0 %v982
    %1968 = vmatpush.msra.mxu0 %v950
    %1969 = vmatpush.msra.mxu0 %v918
    %1970 = vmatpush.msra.mxu0 %v886
    %1971 = vmatpush.msra.mxu0 %v854
    %1972 = vmatpush.msra.mxu0 %v822
    %1973 = vmatpush.msra.mxu0 %v790
    %1974 = vmatpush.msra.mxu0 %v758
    %1975 = vmatpush.msra.mxu0 %v726
    %1976 = vmatpush.msra.mxu0 %v694
    %1977 = vmatmul.f32.gmra.mxu0 %v164
    %v1978 = vpop.f32.mrf.mxu0
    %v1979 = vadd.f32 %v1959, %v1978
    %1980 = vdwg.mxu0
    %1981 = vmatpush.msra.mxu0 %v663
    %1982 = vmatpush.msra.mxu0 %v631
    %1983 = vmatpush.msra.mxu0 %v599
    %1984 = vmatpush.msra.mxu0 %v567
    %1985 = vmatpush.msra.mxu0 %v535
    %1986 = vmatpush.msra.mxu0 %v503
    %1987 = vmatpush.msra.mxu0 %v471
    %1988 = vmatpush.msra.mxu0 %v439
    %1989 = vmatpush.msra.mxu0 %v407
    %1990 = vmatpush.msra.mxu0 %v375
    %1991 = vmatpush.msra.mxu0 %v343
    %1992 = vmatpush.msra.mxu0 %v311
    %1993 = vmatpush.msra.mxu0 %v279
    %1994 = vmatpush.msra.mxu0 %v247
    %1995 = vmatpush.msra.mxu0 %v215
    %1996 = vmatpush.msra.mxu0 %v183
    %1997 = vmatmul.f32.gmra.mxu0 %v163
    %v1998 = vpop.f32.mrf.mxu0
    %v1999 = vadd.f32 %v1215, %v1998
    %2000 = vdwg.mxu0
    %2001 = vmatpush.msra.mxu0 %v1175
    %2002 = vmatpush.msra.mxu0 %v1143
    %2003 = vmatpush.msra.mxu0 %v1111
    %2004 = vmatpush.msra.mxu0 %v1079
    %2005 = vmatpush.msra.mxu0 %v1047
    %2006 = vmatpush.msra.mxu0 %v1015
    %2007 = vmatpush.msra.mxu0 %v983
    %2008 = vmatpush.msra.mxu0 %v951
    %2009 = vmatpush.msra.mxu0 %v919
    %2010 = vmatpush.msra.mxu0 %v887
    %2011 = vmatpush.msra.mxu0 %v855
    %2012 = vmatpush.msra.mxu0 %v823
    %2013 = vmatpush.msra.mxu0 %v791
    %2014 = vmatpush.msra.mxu0 %v759
    %2015 = vmatpush.msra.mxu0 %v727
    %2016 = vmatpush.msra.mxu0 %v695
    %2017 = vmatmul.f32.gmra.mxu0 %v164
    %v2018 = vpop.f32.mrf.mxu0
    %v2019 = vadd.f32 %v1999, %v2018
    %2020 = vdwg.mxu0
    %2021 = vmatpush.msra.mxu0 %v664
    %2022 = vmatpush.msra.mxu0 %v632
    %2023 = vmatpush.msra.mxu0 %v600
    %2024 = vmatpush.msra.mxu0 %v568
    %2025 = vmatpush.msra.mxu0 %v536
    %2026 = vmatpush.msra.mxu0 %v504
    %2027 = vmatpush.msra.mxu0 %v472
    %2028 = vmatpush.msra.mxu0 %v440
    %2029 = vmatpush.msra.mxu0 %v408
    %2030 = vmatpush.msra.mxu0 %v376
    %2031 = vmatpush.msra.mxu0 %v344
    %2032 = vmatpush.msra.mxu0 %v312
    %2033 = vmatpush.msra.mxu0 %v280
    %2034 = vmatpush.msra.mxu0 %v248
    %2035 = vmatpush.msra.mxu0 %v216
    %2036 = vmatpush.msra.mxu0 %v184
    %2037 = vmatmul.f32.gmra.mxu0 %v163
    %v2038 = vpop.f32.mrf.mxu0
    %v2039 = vadd.f32 %v1216, %v2038
    %2040 = vdwg.mxu0
    %2041 = vmatpush.msra.mxu0 %v1176
    %2042 = vmatpush.msra.mxu0 %v1144
    %2043 = vmatpush.msra.mxu0 %v1112
    %2044 = vmatpush.msra.mxu0 %v1080
    %2045 = vmatpush.msra.mxu0 %v1048
    %2046 = vmatpush.msra.mxu0 %v1016
    %2047 = vmatpush.msra.mxu0 %v984
    %2048 = vmatpush.msra.mxu0 %v952
    %2049 = vmatpush.msra.mxu0 %v920
    %2050 = vmatpush.msra.mxu0 %v888
    %2051 = vmatpush.msra.mxu0 %v856
    %2052 = vmatpush.msra.mxu0 %v824
    %2053 = vmatpush.msra.mxu0 %v792
    %2054 = vmatpush.msra.mxu0 %v760
    %2055 = vmatpush.msra.mxu0 %v728
    %2056 = vmatpush.msra.mxu0 %v696
    %2057 = vmatmul.f32.gmra.mxu0 %v164
    %v2058 = vpop.f32.mrf.mxu0
    %v2059 = vadd.f32 %v2039, %v2058
    %2060 = vdwg.mxu0
    %2061 = vmatpush.msra.mxu0 %v665
    %2062 = vmatpush.msra.mxu0 %v633
    %2063 = vmatpush.msra.mxu0 %v601
    %2064 = vmatpush.msra.mxu0 %v569
    %2065 = vmatpush.msra.mxu0 %v537
    %2066 = vmatpush.msra.mxu0 %v505
    %2067 = vmatpush.msra.mxu0 %v473
    %2068 = vmatpush.msra.mxu0 %v441
    %2069 = vmatpush.msra.mxu0 %v409
    %2070 = vmatpush.msra.mxu0 %v377
    %2071 = vmatpush.msra.mxu0 %v345
    %2072 = vmatpush.msra.mxu0 %v313
    %2073 = vmatpush.msra.mxu0 %v281
    %2074 = vmatpush.msra.mxu0 %v249
    %2075 = vmatpush.msra.mxu0 %v217
    %2076 = vmatpush.msra.mxu0 %v185
    %2077 = vmatmul.f32.gmra.mxu0 %v163
    %v2078 = vpop.f32.mrf.mxu0
    %v2079 = vadd.f32 %v1217, %v2078
    %2080 = vdwg.mxu0
    %2081 = vmatpush.msra.mxu0 %v1177
    %2082 = vmatpush.msra.mxu0 %v1145
    %2083 = vmatpush.msra.mxu0 %v1113
    %2084 = vmatpush.msra.mxu0 %v1081
    %2085 = vmatpush.msra.mxu0 %v1049
    %2086 = vmatpush.msra.mxu0 %v1017
    %2087 = vmatpush.msra.mxu0 %v985
    %2088 = vmatpush.msra.mxu0 %v953
    %2089 = vmatpush.msra.mxu0 %v921
    %2090 = vmatpush.msra.mxu0 %v889
    %2091 = vmatpush.msra.mxu0 %v857
    %2092 = vmatpush.msra.mxu0 %v825
    %2093 = vmatpush.msra.mxu0 %v793
    %2094 = vmatpush.msra.mxu0 %v761
    %2095 = vmatpush.msra.mxu0 %v729
    %2096 = vmatpush.msra.mxu0 %v697
    %2097 = vmatmul.f32.gmra.mxu0 %v164
    %v2098 = vpop.f32.mrf.mxu0
    %v2099 = vadd.f32 %v2079, %v2098
    %2100 = vdwg.mxu0
    %2101 = vmatpush.msra.mxu0 %v666
    %2102 = vmatpush.msra.mxu0 %v634
    %2103 = vmatpush.msra.mxu0 %v602
    %2104 = vmatpush.msra.mxu0 %v570
    %2105 = vmatpush.msra.mxu0 %v538
    %2106 = vmatpush.msra.mxu0 %v506
    %2107 = vmatpush.msra.mxu0 %v474
    %2108 = vmatpush.msra.mxu0 %v442
    %2109 = vmatpush.msra.mxu0 %v410
    %2110 = vmatpush.msra.mxu0 %v378
    %2111 = vmatpush.msra.mxu0 %v346
    %2112 = vmatpush.msra.mxu0 %v314
    %2113 = vmatpush.msra.mxu0 %v282
    %2114 = vmatpush.msra.mxu0 %v250
    %2115 = vmatpush.msra.mxu0 %v218
    %2116 = vmatpush.msra.mxu0 %v186
    %2117 = vmatmul.f32.gmra.mxu0 %v163
    %v2118 = vpop.f32.mrf.mxu0
    %v2119 = vadd.f32 %v1218, %v2118
    %2120 = vdwg.mxu0
    %2121 = vmatpush.msra.mxu0 %v1178
    %2122 = vmatpush.msra.mxu0 %v1146
    %2123 = vmatpush.msra.mxu0 %v1114
    %2124 = vmatpush.msra.mxu0 %v1082
    %2125 = vmatpush.msra.mxu0 %v1050
    %2126 = vmatpush.msra.mxu0 %v1018
    %2127 = vmatpush.msra.mxu0 %v986
    %2128 = vmatpush.msra.mxu0 %v954
    %2129 = vmatpush.msra.mxu0 %v922
    %2130 = vmatpush.msra.mxu0 %v890
    %2131 = vmatpush.msra.mxu0 %v858
    %2132 = vmatpush.msra.mxu0 %v826
    %2133 = vmatpush.msra.mxu0 %v794
    %2134 = vmatpush.msra.mxu0 %v762
    %2135 = vmatpush.msra.mxu0 %v730
    %2136 = vmatpush.msra.mxu0 %v698
    %2137 = vmatmul.f32.gmra.mxu0 %v164
    %v2138 = vpop.f32.mrf.mxu0
    %v2139 = vadd.f32 %v2119, %v2138
    %2140 = vdwg.mxu0
    %2141 = vmatpush.msra.mxu0 %v667
    %2142 = vmatpush.msra.mxu0 %v635
    %2143 = vmatpush.msra.mxu0 %v603
    %2144 = vmatpush.msra.mxu0 %v571
    %2145 = vmatpush.msra.mxu0 %v539
    %2146 = vmatpush.msra.mxu0 %v507
    %2147 = vmatpush.msra.mxu0 %v475
    %2148 = vmatpush.msra.mxu0 %v443
    %2149 = vmatpush.msra.mxu0 %v411
    %2150 = vmatpush.msra.mxu0 %v379
    %2151 = vmatpush.msra.mxu0 %v347
    %2152 = vmatpush.msra.mxu0 %v315
    %2153 = vmatpush.msra.mxu0 %v283
    %2154 = vmatpush.msra.mxu0 %v251
    %2155 = vmatpush.msra.mxu0 %v219
    %2156 = vmatpush.msra.mxu0 %v187
    %2157 = vmatmul.f32.gmra.mxu0 %v163
    %v2158 = vpop.f32.mrf.mxu0
    %v2159 = vadd.f32 %v1219, %v2158
    %2160 = vdwg.mxu0
    %2161 = vmatpush.msra.mxu0 %v1179
    %2162 = vmatpush.msra.mxu0 %v1147
    %2163 = vmatpush.msra.mxu0 %v1115
    %2164 = vmatpush.msra.mxu0 %v1083
    %2165 = vmatpush.msra.mxu0 %v1051
    %2166 = vmatpush.msra.mxu0 %v1019
    %2167 = vmatpush.msra.mxu0 %v987
    %2168 = vmatpush.msra.mxu0 %v955
    %2169 = vmatpush.msra.mxu0 %v923
    %2170 = vmatpush.msra.mxu0 %v891
    %2171 = vmatpush.msra.mxu0 %v859
    %2172 = vmatpush.msra.mxu0 %v827
    %2173 = vmatpush.msra.mxu0 %v795
    %2174 = vmatpush.msra.mxu0 %v763
    %2175 = vmatpush.msra.mxu0 %v731
    %2176 = vmatpush.msra.mxu0 %v699
    %2177 = vmatmul.f32.gmra.mxu0 %v164
    %v2178 = vpop.f32.mrf.mxu0
    %v2179 = vadd.f32 %v2159, %v2178
    %2180 = vdwg.mxu0
    %2181 = vmatpush.msra.mxu0 %v668
    %2182 = vmatpush.msra.mxu0 %v636
    %2183 = vmatpush.msra.mxu0 %v604
    %2184 = vmatpush.msra.mxu0 %v572
    %2185 = vmatpush.msra.mxu0 %v540
    %2186 = vmatpush.msra.mxu0 %v508
    %2187 = vmatpush.msra.mxu0 %v476
    %2188 = vmatpush.msra.mxu0 %v444
    %2189 = vmatpush.msra.mxu0 %v412
    %2190 = vmatpush.msra.mxu0 %v380
    %2191 = vmatpush.msra.mxu0 %v348
    %2192 = vmatpush.msra.mxu0 %v316
    %2193 = vmatpush.msra.mxu0 %v284
    %2194 = vmatpush.msra.mxu0 %v252
    %2195 = vmatpush.msra.mxu0 %v220
    %2196 = vmatpush.msra.mxu0 %v188
    %2197 = vmatmul.f32.gmra.mxu0 %v163
    %v2198 = vpop.f32.mrf.mxu0
    %v2199 = vadd.f32 %v1220, %v2198
    %2200 = vdwg.mxu0
    %2201 = vmatpush.msra.mxu0 %v1180
    %2202 = vmatpush.msra.mxu0 %v1148
    %2203 = vmatpush.msra.mxu0 %v1116
    %2204 = vmatpush.msra.mxu0 %v1084
    %2205 = vmatpush.msra.mxu0 %v1052
    %2206 = vmatpush.msra.mxu0 %v1020
    %2207 = vmatpush.msra.mxu0 %v988
    %2208 = vmatpush.msra.mxu0 %v956
    %2209 = vmatpush.msra.mxu0 %v924
    %2210 = vmatpush.msra.mxu0 %v892
    %2211 = vmatpush.msra.mxu0 %v860
    %2212 = vmatpush.msra.mxu0 %v828
    %2213 = vmatpush.msra.mxu0 %v796
    %2214 = vmatpush.msra.mxu0 %v764
    %2215 = vmatpush.msra.mxu0 %v732
    %2216 = vmatpush.msra.mxu0 %v700
    %2217 = vmatmul.f32.gmra.mxu0 %v164
    %v2218 = vpop.f32.mrf.mxu0
    %v2219 = vadd.f32 %v2199, %v2218
    %2220 = vdwg.mxu0
    %2221 = vmatpush.msra.mxu0 %v669
    %2222 = vmatpush.msra.mxu0 %v637
    %2223 = vmatpush.msra.mxu0 %v605
    %2224 = vmatpush.msra.mxu0 %v573
    %2225 = vmatpush.msra.mxu0 %v541
    %2226 = vmatpush.msra.mxu0 %v509
    %2227 = vmatpush.msra.mxu0 %v477
    %2228 = vmatpush.msra.mxu0 %v445
    %2229 = vmatpush.msra.mxu0 %v413
    %2230 = vmatpush.msra.mxu0 %v381
    %2231 = vmatpush.msra.mxu0 %v349
    %2232 = vmatpush.msra.mxu0 %v317
    %2233 = vmatpush.msra.mxu0 %v285
    %2234 = vmatpush.msra.mxu0 %v253
    %2235 = vmatpush.msra.mxu0 %v221
    %2236 = vmatpush.msra.mxu0 %v189
    %2237 = vmatmul.f32.gmra.mxu0 %v163
    %v2238 = vpop.f32.mrf.mxu0
    %v2239 = vadd.f32 %v1221, %v2238
    %2240 = vdwg.mxu0
    %2241 = vmatpush.msra.mxu0 %v1181
    %2242 = vmatpush.msra.mxu0 %v1149
    %2243 = vmatpush.msra.mxu0 %v1117
    %2244 = vmatpush.msra.mxu0 %v1085
    %2245 = vmatpush.msra.mxu0 %v1053
    %2246 = vmatpush.msra.mxu0 %v1021
    %2247 = vmatpush.msra.mxu0 %v989
    %2248 = vmatpush.msra.mxu0 %v957
    %2249 = vmatpush.msra.mxu0 %v925
    %2250 = vmatpush.msra.mxu0 %v893
    %2251 = vmatpush.msra.mxu0 %v861
    %2252 = vmatpush.msra.mxu0 %v829
    %2253 = vmatpush.msra.mxu0 %v797
    %2254 = vmatpush.msra.mxu0 %v765
    %2255 = vmatpush.msra.mxu0 %v733
    %2256 = vmatpush.msra.mxu0 %v701
    %2257 = vmatmul.f32.gmra.mxu0 %v164
    %v2258 = vpop.f32.mrf.mxu0
    %v2259 = vadd.f32 %v2239, %v2258
    %2260 = vdwg.mxu0
    %2261 = vmatpush.msra.mxu0 %v670
    %2262 = vmatpush.msra.mxu0 %v638
    %2263 = vmatpush.msra.mxu0 %v606
    %2264 = vmatpush.msra.mxu0 %v574
    %2265 = vmatpush.msra.mxu0 %v542
    %2266 = vmatpush.msra.mxu0 %v510
    %2267 = vmatpush.msra.mxu0 %v478
    %2268 = vmatpush.msra.mxu0 %v446
    %2269 = vmatpush.msra.mxu0 %v414
    %2270 = vmatpush.msra.mxu0 %v382
    %2271 = vmatpush.msra.mxu0 %v350
    %2272 = vmatpush.msra.mxu0 %v318
    %2273 = vmatpush.msra.mxu0 %v286
    %2274 = vmatpush.msra.mxu0 %v254
    %2275 = vmatpush.msra.mxu0 %v222
    %2276 = vmatpush.msra.mxu0 %v190
    %2277 = vmatmul.f32.gmra.mxu0 %v163
    %v2278 = vpop.f32.mrf.mxu0
    %v2279 = vadd.f32 %v1222, %v2278
    %2280 = vdwg.mxu0
    %2281 = vmatpush.msra.mxu0 %v1182
    %2282 = vmatpush.msra.mxu0 %v1150
    %2283 = vmatpush.msra.mxu0 %v1118
    %2284 = vmatpush.msra.mxu0 %v1086
    %2285 = vmatpush.msra.mxu0 %v1054
    %2286 = vmatpush.msra.mxu0 %v1022
    %2287 = vmatpush.msra.mxu0 %v990
    %2288 = vmatpush.msra.mxu0 %v958
    %2289 = vmatpush.msra.mxu0 %v926
    %2290 = vmatpush.msra.mxu0 %v894
    %2291 = vmatpush.msra.mxu0 %v862
    %2292 = vmatpush.msra.mxu0 %v830
    %2293 = vmatpush.msra.mxu0 %v798
    %2294 = vmatpush.msra.mxu0 %v766
    %2295 = vmatpush.msra.mxu0 %v734
    %2296 = vmatpush.msra.mxu0 %v702
    %2297 = vmatmul.f32.gmra.mxu0 %v164
    %v2298 = vpop.f32.mrf.mxu0
    %v2299 = vadd.f32 %v2279, %v2298
    %2300 = vdwg.mxu0
    %2301 = vmatpush.msra.mxu0 %v671
    %2302 = vmatpush.msra.mxu0 %v639
    %2303 = vmatpush.msra.mxu0 %v607
    %2304 = vmatpush.msra.mxu0 %v575
    %2305 = vmatpush.msra.mxu0 %v543
    %2306 = vmatpush.msra.mxu0 %v511
    %2307 = vmatpush.msra.mxu0 %v479
    %2308 = vmatpush.msra.mxu0 %v447
    %2309 = vmatpush.msra.mxu0 %v415
    %2310 = vmatpush.msra.mxu0 %v383
    %2311 = vmatpush.msra.mxu0 %v351
    %2312 = vmatpush.msra.mxu0 %v319
    %2313 = vmatpush.msra.mxu0 %v287
    %2314 = vmatpush.msra.mxu0 %v255
    %2315 = vmatpush.msra.mxu0 %v223
    %2316 = vmatpush.msra.mxu0 %v191
    %2317 = vmatmul.f32.gmra.mxu0 %v163
    %v2318 = vpop.f32.mrf.mxu0
    %v2319 = vadd.f32 %v1223, %v2318
    %2320 = vdwg.mxu0
    %2321 = vmatpush.msra.mxu0 %v1183
    %2322 = vmatpush.msra.mxu0 %v1151
    %2323 = vmatpush.msra.mxu0 %v1119
    %2324 = vmatpush.msra.mxu0 %v1087
    %2325 = vmatpush.msra.mxu0 %v1055
    %2326 = vmatpush.msra.mxu0 %v1023
    %2327 = vmatpush.msra.mxu0 %v991
    %2328 = vmatpush.msra.mxu0 %v959
    %2329 = vmatpush.msra.mxu0 %v927
    %2330 = vmatpush.msra.mxu0 %v895
    %2331 = vmatpush.msra.mxu0 %v863
    %2332 = vmatpush.msra.mxu0 %v831
    %2333 = vmatpush.msra.mxu0 %v799
    %2334 = vmatpush.msra.mxu0 %v767
    %2335 = vmatpush.msra.mxu0 %v735
    %2336 = vmatpush.msra.mxu0 %v703
    %2337 = vmatmul.f32.gmra.mxu0 %v164
    %v2338 = vpop.f32.mrf.mxu0
    %v2339 = vadd.f32 %v2319, %v2338
    %2340 = vdwg.mxu0
    %2341 = vmatpush.msra.mxu0 %v672
    %2342 = vmatpush.msra.mxu0 %v640
    %2343 = vmatpush.msra.mxu0 %v608
    %2344 = vmatpush.msra.mxu0 %v576
    %2345 = vmatpush.msra.mxu0 %v544
    %2346 = vmatpush.msra.mxu0 %v512
    %2347 = vmatpush.msra.mxu0 %v480
    %2348 = vmatpush.msra.mxu0 %v448
    %2349 = vmatpush.msra.mxu0 %v416
    %2350 = vmatpush.msra.mxu0 %v384
    %2351 = vmatpush.msra.mxu0 %v352
    %2352 = vmatpush.msra.mxu0 %v320
    %2353 = vmatpush.msra.mxu0 %v288
    %2354 = vmatpush.msra.mxu0 %v256
    %2355 = vmatpush.msra.mxu0 %v224
    %2356 = vmatpush.msra.mxu0 %v192
    %2357 = vmatmul.f32.gmra.mxu0 %v163
    %v2358 = vpop.f32.mrf.mxu0
    %v2359 = vadd.f32 %v1224, %v2358
    %2360 = vdwg.mxu0
    %2361 = vmatpush.msra.mxu0 %v1184
    %2362 = vmatpush.msra.mxu0 %v1152
    %2363 = vmatpush.msra.mxu0 %v1120
    %2364 = vmatpush.msra.mxu0 %v1088
    %2365 = vmatpush.msra.mxu0 %v1056
    %2366 = vmatpush.msra.mxu0 %v1024
    %2367 = vmatpush.msra.mxu0 %v992
    %2368 = vmatpush.msra.mxu0 %v960
    %2369 = vmatpush.msra.mxu0 %v928
    %2370 = vmatpush.msra.mxu0 %v896
    %2371 = vmatpush.msra.mxu0 %v864
    %2372 = vmatpush.msra.mxu0 %v832
    %2373 = vmatpush.msra.mxu0 %v800
    %2374 = vmatpush.msra.mxu0 %v768
    %2375 = vmatpush.msra.mxu0 %v736
    %2376 = vmatpush.msra.mxu0 %v704
    %2377 = vmatmul.f32.gmra.mxu0 %v164
    %v2378 = vpop.f32.mrf.mxu0
    %v2379 = vadd.f32 %v2359, %v2378
    %2380 = vdwg.mxu0
    %2381 = vmatpush.msra.mxu0 %v673
    %2382 = vmatpush.msra.mxu0 %v641
    %2383 = vmatpush.msra.mxu0 %v609
    %2384 = vmatpush.msra.mxu0 %v577
    %2385 = vmatpush.msra.mxu0 %v545
    %2386 = vmatpush.msra.mxu0 %v513
    %2387 = vmatpush.msra.mxu0 %v481
    %2388 = vmatpush.msra.mxu0 %v449
    %2389 = vmatpush.msra.mxu0 %v417
    %2390 = vmatpush.msra.mxu0 %v385
    %2391 = vmatpush.msra.mxu0 %v353
    %2392 = vmatpush.msra.mxu0 %v321
    %2393 = vmatpush.msra.mxu0 %v289
    %2394 = vmatpush.msra.mxu0 %v257
    %2395 = vmatpush.msra.mxu0 %v225
    %2396 = vmatpush.msra.mxu0 %v193
    %2397 = vmatmul.f32.gmra.mxu0 %v163
    %v2398 = vpop.f32.mrf.mxu0
    %v2399 = vadd.f32 %v1225, %v2398
    %2400 = vdwg.mxu0
    %2401 = vmatpush.msra.mxu0 %v1185
    %2402 = vmatpush.msra.mxu0 %v1153
    %2403 = vmatpush.msra.mxu0 %v1121
    %2404 = vmatpush.msra.mxu0 %v1089
    %2405 = vmatpush.msra.mxu0 %v1057
    %2406 = vmatpush.msra.mxu0 %v1025
    %2407 = vmatpush.msra.mxu0 %v993
    %2408 = vmatpush.msra.mxu0 %v961
    %2409 = vmatpush.msra.mxu0 %v929
    %2410 = vmatpush.msra.mxu0 %v897
    %2411 = vmatpush.msra.mxu0 %v865
    %2412 = vmatpush.msra.mxu0 %v833
    %2413 = vmatpush.msra.mxu0 %v801
    %2414 = vmatpush.msra.mxu0 %v769
    %2415 = vmatpush.msra.mxu0 %v737
    %2416 = vmatpush.msra.mxu0 %v705
    %2417 = vmatmul.f32.gmra.mxu0 %v164
    %v2418 = vpop.f32.mrf.mxu0
    %v2419 = vadd.f32 %v2399, %v2418
    %2420 = vdwg.mxu0
    %2421 = vmatpush.msra.mxu0 %v674
    %2422 = vmatpush.msra.mxu0 %v642
    %2423 = vmatpush.msra.mxu0 %v610
    %2424 = vmatpush.msra.mxu0 %v578
    %2425 = vmatpush.msra.mxu0 %v546
    %2426 = vmatpush.msra.mxu0 %v514
    %2427 = vmatpush.msra.mxu0 %v482
    %2428 = vmatpush.msra.mxu0 %v450
    %2429 = vmatpush.msra.mxu0 %v418
    %2430 = vmatpush.msra.mxu0 %v386
    %2431 = vmatpush.msra.mxu0 %v354
    %2432 = vmatpush.msra.mxu0 %v322
    %2433 = vmatpush.msra.mxu0 %v290
    %2434 = vmatpush.msra.mxu0 %v258
    %2435 = vmatpush.msra.mxu0 %v226
    %2436 = vmatpush.msra.mxu0 %v194
    %2437 = vmatmul.f32.gmra.mxu0 %v163
    %v2438 = vpop.f32.mrf.mxu0
    %v2439 = vadd.f32 %v1226, %v2438
    %2440 = vdwg.mxu0
    %2441 = vmatpush.msra.mxu0 %v1186
    %2442 = vmatpush.msra.mxu0 %v1154
    %2443 = vmatpush.msra.mxu0 %v1122
    %2444 = vmatpush.msra.mxu0 %v1090
    %2445 = vmatpush.msra.mxu0 %v1058
    %2446 = vmatpush.msra.mxu0 %v1026
    %2447 = vmatpush.msra.mxu0 %v994
    %2448 = vmatpush.msra.mxu0 %v962
    %2449 = vmatpush.msra.mxu0 %v930
    %2450 = vmatpush.msra.mxu0 %v898
    %2451 = vmatpush.msra.mxu0 %v866
    %2452 = vmatpush.msra.mxu0 %v834
    %2453 = vmatpush.msra.mxu0 %v802
    %2454 = vmatpush.msra.mxu0 %v770
    %2455 = vmatpush.msra.mxu0 %v738
    %2456 = vmatpush.msra.mxu0 %v706
    %2457 = vmatmul.f32.gmra.mxu0 %v164
    %v2458 = vpop.f32.mrf.mxu0
    %v2459 = vadd.f32 %v2439, %v2458
    %2460 = vdwg.mxu0
    %2461 = vmatpush.msra.mxu0 %v675
    %2462 = vmatpush.msra.mxu0 %v643
    %2463 = vmatpush.msra.mxu0 %v611
    %2464 = vmatpush.msra.mxu0 %v579
    %2465 = vmatpush.msra.mxu0 %v547
    %2466 = vmatpush.msra.mxu0 %v515
    %2467 = vmatpush.msra.mxu0 %v483
    %2468 = vmatpush.msra.mxu0 %v451
    %2469 = vmatpush.msra.mxu0 %v419
    %2470 = vmatpush.msra.mxu0 %v387
    %2471 = vmatpush.msra.mxu0 %v355
    %2472 = vmatpush.msra.mxu0 %v323
    %2473 = vmatpush.msra.mxu0 %v291
    %2474 = vmatpush.msra.mxu0 %v259
    %2475 = vmatpush.msra.mxu0 %v227
    %2476 = vmatpush.msra.mxu0 %v195
    %2477 = vmatmul.f32.gmra.mxu0 %v163
    %v2478 = vpop.f32.mrf.mxu0
    %v2479 = vadd.f32 %v1227, %v2478
    %2480 = vdwg.mxu0
    %2481 = vmatpush.msra.mxu0 %v1187
    %2482 = vmatpush.msra.mxu0 %v1155
    %2483 = vmatpush.msra.mxu0 %v1123
    %2484 = vmatpush.msra.mxu0 %v1091
    %2485 = vmatpush.msra.mxu0 %v1059
    %2486 = vmatpush.msra.mxu0 %v1027
    %2487 = vmatpush.msra.mxu0 %v995
    %2488 = vmatpush.msra.mxu0 %v963
    %2489 = vmatpush.msra.mxu0 %v931
    %2490 = vmatpush.msra.mxu0 %v899
    %2491 = vmatpush.msra.mxu0 %v867
    %2492 = vmatpush.msra.mxu0 %v835
    %2493 = vmatpush.msra.mxu0 %v803
    %2494 = vmatpush.msra.mxu0 %v771
    %2495 = vmatpush.msra.mxu0 %v739
    %2496 = vmatpush.msra.mxu0 %v707
    %2497 = vmatmul.f32.gmra.mxu0 %v164
    %v2498 = vpop.f32.mrf.mxu0
    %v2499 = vadd.f32 %v2479, %v2498
    %2500 = vdwg.mxu0
    %2501 = vmatpush.msra.mxu0 %v676
    %2502 = vmatpush.msra.mxu0 %v644
    %2503 = vmatpush.msra.mxu0 %v612
    %2504 = vmatpush.msra.mxu0 %v580
    %2505 = vmatpush.msra.mxu0 %v548
    %2506 = vmatpush.msra.mxu0 %v516
    %2507 = vmatpush.msra.mxu0 %v484
    %2508 = vmatpush.msra.mxu0 %v452
    %2509 = vmatpush.msra.mxu0 %v420
    %2510 = vmatpush.msra.mxu0 %v388
    %2511 = vmatpush.msra.mxu0 %v356
    %2512 = vmatpush.msra.mxu0 %v324
    %2513 = vmatpush.msra.mxu0 %v292
    %2514 = vmatpush.msra.mxu0 %v260
    %2515 = vmatpush.msra.mxu0 %v228
    %2516 = vmatpush.msra.mxu0 %v196
    %2517 = vmatmul.f32.gmra.mxu0 %v163
    %v2518 = vpop.f32.mrf.mxu0
    %v2519 = vadd.f32 %v1228, %v2518
    %2520 = vdwg.mxu0
    %2521 = vmatpush.msra.mxu0 %v1188
    %2522 = vmatpush.msra.mxu0 %v1156
    %2523 = vmatpush.msra.mxu0 %v1124
    %2524 = vmatpush.msra.mxu0 %v1092
    %2525 = vmatpush.msra.mxu0 %v1060
    %2526 = vmatpush.msra.mxu0 %v1028
    %2527 = vmatpush.msra.mxu0 %v996
    %2528 = vmatpush.msra.mxu0 %v964
    %2529 = vmatpush.msra.mxu0 %v932
    %2530 = vmatpush.msra.mxu0 %v900
    %2531 = vmatpush.msra.mxu0 %v868
    %2532 = vmatpush.msra.mxu0 %v836
    %2533 = vmatpush.msra.mxu0 %v804
    %2534 = vmatpush.msra.mxu0 %v772
    %2535 = vmatpush.msra.mxu0 %v740
    %2536 = vmatpush.msra.mxu0 %v708
    %2537 = vmatmul.f32.gmra.mxu0 %v164
    %v2538 = vpop.f32.mrf.mxu0
    %v2539 = vadd.f32 %v2519, %v2538
    %2540 = vdwg.mxu0
    %vm2541 = vcmp.gt.f32.partialorder %v1299, 0.0
    %vm2542 = vcmp.gt.f32.partialorder %v1339, 0.0
    %vm2543 = vcmp.gt.f32.partialorder %v1379, 0.0
    %vm2544 = vcmp.gt.f32.partialorder %v1419, 0.0
    %vm2545 = vcmp.gt.f32.partialorder %v1459, 0.0
    %vm2546 = vcmp.gt.f32.partialorder %v1499, 0.0
    %vm2547 = vcmp.gt.f32.partialorder %v1539, 0.0
    %vm2548 = vcmp.gt.f32.partialorder %v1579, 0.0
    %vm2549 = vcmp.gt.f32.partialorder %v1619, 0.0
    %vm2550 = vcmp.gt.f32.partialorder %v1659, 0.0
    %vm2551 = vcmp.gt.f32.partialorder %v1699, 0.0
    %vm2552 = vcmp.gt.f32.partialorder %v1739, 0.0
    %vm2553 = vcmp.gt.f32.partialorder %v1779, 0.0
    %vm2554 = vcmp.gt.f32.partialorder %v1819, 0.0
    %vm2555 = vcmp.gt.f32.partialorder %v1859, 0.0
    %vm2556 = vcmp.gt.f32.partialorder %v1899, 0.0
    %vm2557 = vcmp.gt.f32.partialorder %v1939, 0.0
    %vm2558 = vcmp.gt.f32.partialorder %v1979, 0.0
    %vm2559 = vcmp.gt.f32.partialorder %v2019, 0.0
    %vm2560 = vcmp.gt.f32.partialorder %v2059, 0.0
    %vm2561 = vcmp.gt.f32.partialorder %v2099, 0.0
    %vm2562 = vcmp.gt.f32.partialorder %v2139, 0.0
    %vm2563 = vcmp.gt.f32.partialorder %v2179, 0.0
    %vm2564 = vcmp.gt.f32.partialorder %v2219, 0.0
    %vm2565 = vcmp.gt.f32.partialorder %v2259, 0.0
    %vm2566 = vcmp.gt.f32.partialorder %v2299, 0.0
    %vm2567 = vcmp.gt.f32.partialorder %v2339, 0.0
    %vm2568 = vcmp.gt.f32.partialorder %v2379, 0.0
    %vm2569 = vcmp.gt.f32.partialorder %v2419, 0.0
    %vm2570 = vcmp.gt.f32.partialorder %v2459, 0.0
    %vm2571 = vcmp.gt.f32.partialorder %v2499, 0.0
    %vm2572 = vcmp.gt.f32.partialorder %v2539, 0.0
    %v2573 = vmul.f32 %v1299, 1.442695
    %v2574 = vpow.pop %v2573
    %v2575 = vmul.f32 %v1339, 1.442695
    %v2576 = vpow.pop %v2575
    %v2577 = vmul.f32 %v1379, 1.442695
    %v2578 = vpow.pop %v2577
    %v2579 = vmul.f32 %v1419, 1.442695
    %v2580 = vpow.pop %v2579
    %v2581 = vmul.f32 %v1459, 1.442695
    %v2582 = vpow.pop %v2581
    %v2583 = vmul.f32 %v1499, 1.442695
    %v2584 = vpow.pop %v2583
    %v2585 = vmul.f32 %v1539, 1.442695
    %v2586 = vpow.pop %v2585
    %v2587 = vmul.f32 %v1579, 1.442695
    %v2588 = vpow.pop %v2587
    %v2589 = vmul.f32 %v1619, 1.442695
    %v2590 = vpow.pop %v2589
    %v2591 = vmul.f32 %v1659, 1.442695
    %v2592 = vpow.pop %v2591
    %v2593 = vmul.f32 %v1699, 1.442695
    %v2594 = vpow.pop %v2593
    %v2595 = vmul.f32 %v1739, 1.442695
    %v2596 = vpow.pop %v2595
    %v2597 = vmul.f32 %v1779, 1.442695
    %v2598 = vpow.pop %v2597
    %v2599 = vmul.f32 %v1819, 1.442695
    %v2600 = vpow.pop %v2599
    %v2601 = vmul.f32 %v1859, 1.442695
    %v2602 = vpow.pop %v2601
    %v2603 = vmul.f32 %v1899, 1.442695
    %v2604 = vpow.pop %v2603
    %v2605 = vmul.f32 %v1939, 1.442695
    %v2606 = vpow.pop %v2605
    %v2607 = vmul.f32 %v1979, 1.442695
    %v2608 = vpow.pop %v2607
    %v2609 = vmul.f32 %v2019, 1.442695
    %v2610 = vpow.pop %v2609
    %v2611 = vmul.f32 %v2059, 1.442695
    %v2612 = vpow.pop %v2611
    %v2613 = vmul.f32 %v2099, 1.442695
    %v2614 = vpow.pop %v2613
    %v2615 = vmul.f32 %v2139, 1.442695
    %v2616 = vpow.pop %v2615
    %v2617 = vmul.f32 %v2179, 1.442695
    %v2618 = vpow.pop %v2617
    %v2619 = vmul.f32 %v2219, 1.442695
    %v2620 = vpow.pop %v2619
    %v2621 = vmul.f32 %v2259, 1.442695
    %v2622 = vpow.pop %v2621
    %v2623 = vmul.f32 %v2299, 1.442695
    %v2624 = vpow.pop %v2623
    %v2625 = vmul.f32 %v2339, 1.442695
    %v2626 = vpow.pop %v2625
    %v2627 = vmul.f32 %v2379, 1.442695
    %v2628 = vpow.pop %v2627
    %v2629 = vmul.f32 %v2419, 1.442695
    %v2630 = vpow.pop %v2629
    %v2631 = vmul.f32 %v2459, 1.442695
    %v2632 = vpow.pop %v2631
    %v2633 = vmul.f32 %v2499, 1.442695
    %v2634 = vpow.pop %v2633
    %v2635 = vmul.f32 %v2539, 1.442695
    %v2636 = vpow.pop %v2635
    %v2637 = vsub.f32 %v2574, 1.0
    %v2638 = vsub.f32 %v2576, 1.0
    %v2639 = vsub.f32 %v2578, 1.0
    %v2640 = vsub.f32 %v2580, 1.0
    %v2641 = vsub.f32 %v2582, 1.0
    %v2642 = vsub.f32 %v2584, 1.0
    %v2643 = vsub.f32 %v2586, 1.0
    %v2644 = vsub.f32 %v2588, 1.0
    %v2645 = vsub.f32 %v2590, 1.0
    %v2646 = vsub.f32 %v2592, 1.0
    %v2647 = vsub.f32 %v2594, 1.0
    %v2648 = vsub.f32 %v2596, 1.0
    %v2649 = vsub.f32 %v2598, 1.0
    %v2650 = vsub.f32 %v2600, 1.0
    %v2651 = vsub.f32 %v2602, 1.0
    %v2652 = vsub.f32 %v2604, 1.0
    %v2653 = vsub.f32 %v2606, 1.0
    %v2654 = vsub.f32 %v2608, 1.0
    %v2655 = vsub.f32 %v2610, 1.0
    %v2656 = vsub.f32 %v2612, 1.0
    %v2657 = vsub.f32 %v2614, 1.0
    %v2658 = vsub.f32 %v2616, 1.0
    %v2659 = vsub.f32 %v2618, 1.0
    %v2660 = vsub.f32 %v2620, 1.0
    %v2661 = vsub.f32 %v2622, 1.0
    %v2662 = vsub.f32 %v2624, 1.0
    %v2663 = vsub.f32 %v2626, 1.0
    %v2664 = vsub.f32 %v2628, 1.0
    %v2665 = vsub.f32 %v2630, 1.0
    %v2666 = vsub.f32 %v2632, 1.0
    %v2667 = vsub.f32 %v2634, 1.0
    %v2668 = vsub.f32 %v2636, 1.0
    %v2669 = vmul.f32 %v2637, 1.6732632
    %v2670 = vmul.f32 %v2638, 1.6732632
    %v2671 = vmul.f32 %v2639, 1.6732632
    %v2672 = vmul.f32 %v2640, 1.6732632
    %v2673 = vmul.f32 %v2641, 1.6732632
    %v2674 = vmul.f32 %v2642, 1.6732632
    %v2675 = vmul.f32 %v2643, 1.6732632
    %v2676 = vmul.f32 %v2644, 1.6732632
    %v2677 = vmul.f32 %v2645, 1.6732632
    %v2678 = vmul.f32 %v2646, 1.6732632
    %v2679 = vmul.f32 %v2647, 1.6732632
    %v2680 = vmul.f32 %v2648, 1.6732632
    %v2681 = vmul.f32 %v2649, 1.6732632
    %v2682 = vmul.f32 %v2650, 1.6732632
    %v2683 = vmul.f32 %v2651, 1.6732632
    %v2684 = vmul.f32 %v2652, 1.6732632
    %v2685 = vmul.f32 %v2653, 1.6732632
    %v2686 = vmul.f32 %v2654, 1.6732632
    %v2687 = vmul.f32 %v2655, 1.6732632
    %v2688 = vmul.f32 %v2656, 1.6732632
    %v2689 = vmul.f32 %v2657, 1.6732632
    %v2690 = vmul.f32 %v2658, 1.6732632
    %v2691 = vmul.f32 %v2659, 1.6732632
    %v2692 = vmul.f32 %v2660, 1.6732632
    %v2693 = vmul.f32 %v2661, 1.6732632
    %v2694 = vmul.f32 %v2662, 1.6732632
    %v2695 = vmul.f32 %v2663, 1.6732632
    %v2696 = vmul.f32 %v2664, 1.6732632
    %v2697 = vmul.f32 %v2665, 1.6732632
    %v2698 = vmul.f32 %v2666, 1.6732632
    %v2699 = vmul.f32 %v2667, 1.6732632
    %v2700 = vmul.f32 %v2668, 1.6732632
    %v2701 = vsel %vm2541, %v1299, %v2669
    %v2702 = vsel %vm2542, %v1339, %v2670
    %v2703 = vsel %vm2543, %v1379, %v2671
    %v2704 = vsel %vm2544, %v1419, %v2672
    %v2705 = vsel %vm2545, %v1459, %v2673
    %v2706 = vsel %vm2546, %v1499, %v2674
    %v2707 = vsel %vm2547, %v1539, %v2675
    %v2708 = vsel %vm2548, %v1579, %v2676
    %v2709 = vsel %vm2549, %v1619, %v2677
    %v2710 = vsel %vm2550, %v1659, %v2678
    %v2711 = vsel %vm2551, %v1699, %v2679
    %v2712 = vsel %vm2552, %v1739, %v2680
    %v2713 = vsel %vm2553, %v1779, %v2681
    %v2714 = vsel %vm2554, %v1819, %v2682
    %v2715 = vsel %vm2555, %v1859, %v2683
    %v2716 = vsel %vm2556, %v1899, %v2684
    %v2717 = vsel %vm2557, %v1939, %v2685
    %v2718 = vsel %vm2558, %v1979, %v2686
    %v2719 = vsel %vm2559, %v2019, %v2687
    %v2720 = vsel %vm2560, %v2059, %v2688
    %v2721 = vsel %vm2561, %v2099, %v2689
    %v2722 = vsel %vm2562, %v2139, %v2690
    %v2723 = vsel %vm2563, %v2179, %v2691
    %v2724 = vsel %vm2564, %v2219, %v2692
    %v2725 = vsel %vm2565, %v2259, %v2693
    %v2726 = vsel %vm2566, %v2299, %v2694
    %v2727 = vsel %vm2567, %v2339, %v2695
    %v2728 = vsel %vm2568, %v2379, %v2696
    %v2729 = vsel %vm2569, %v2419, %v2697
    %v2730 = vsel %vm2570, %v2459, %v2698
    %v2731 = vsel %vm2571, %v2499, %v2699
    %v2732 = vsel %vm2572, %v2539, %v2700
    %v2733 = vmul.f32 %v2701, 1.050701
    %v2734 = vmul.f32 %v2702, 1.050701
    %v2735 = vmul.f32 %v2703, 1.050701
    %v2736 = vmul.f32 %v2704, 1.050701
    %v2737 = vmul.f32 %v2705, 1.050701
    %v2738 = vmul.f32 %v2706, 1.050701
    %v2739 = vmul.f32 %v2707, 1.050701
    %v2740 = vmul.f32 %v2708, 1.050701
    %v2741 = vmul.f32 %v2709, 1.050701
    %v2742 = vmul.f32 %v2710, 1.050701
    %v2743 = vmul.f32 %v2711, 1.050701
    %v2744 = vmul.f32 %v2712, 1.050701
    %v2745 = vmul.f32 %v2713, 1.050701
    %v2746 = vmul.f32 %v2714, 1.050701
    %v2747 = vmul.f32 %v2715, 1.050701
    %v2748 = vmul.f32 %v2716, 1.050701
    %v2749 = vmul.f32 %v2717, 1.050701
    %v2750 = vmul.f32 %v2718, 1.050701
    %v2751 = vmul.f32 %v2719, 1.050701
    %v2752 = vmul.f32 %v2720, 1.050701
    %v2753 = vmul.f32 %v2721, 1.050701
    %v2754 = vmul.f32 %v2722, 1.050701
    %v2755 = vmul.f32 %v2723, 1.050701
    %v2756 = vmul.f32 %v2724, 1.050701
    %v2757 = vmul.f32 %v2725, 1.050701
    %v2758 = vmul.f32 %v2726, 1.050701
    %v2759 = vmul.f32 %v2727, 1.050701
    %v2760 = vmul.f32 %v2728, 1.050701
    %v2761 = vmul.f32 %v2729, 1.050701
    %v2762 = vmul.f32 %v2730, 1.050701
    %v2763 = vmul.f32 %v2731, 1.050701
    %v2764 = vmul.f32 %v2732, 1.050701
    %2765 = vst [vmem:[%s5] sm:$0xff] %v2733
    %2766 = vst [vmem:[%s5 + $0x8] sm:$0xff] %v2734
    %2767 = vst [vmem:[%s5 + $0x10] sm:$0xff] %v2735
    %2768 = vst [vmem:[%s5 + $0x18] sm:$0xff] %v2736
    %2769 = vst [vmem:[%s5 + $0x20] sm:$0xff] %v2737
    %2770 = vst [vmem:[%s5 + $0x28] sm:$0xff] %v2738
    %2771 = vst [vmem:[%s5 + $0x30] sm:$0xff] %v2739
    %2772 = vst [vmem:[%s5 + $0x38] sm:$0xff] %v2740
    %2773 = vst [vmem:[%s5 + $0x40] sm:$0xff] %v2741
    %2774 = vst [vmem:[%s5 + $0x48] sm:$0xff] %v2742
    %2775 = vst [vmem:[%s5 + $0x50] sm:$0xff] %v2743
    %2776 = vst [vmem:[%s5 + $0x58] sm:$0xff] %v2744
    %2777 = vst [vmem:[%s5 + $0x60] sm:$0xff] %v2745
    %2778 = vst [vmem:[%s5 + $0x68] sm:$0xff] %v2746
    %2779 = vst [vmem:[%s5 + $0x70] sm:$0xff] %v2747
    %2780 = vst [vmem:[%s5 + $0x78] sm:$0xff] %v2748
    %2781 = vst [vmem:[%s5 + $0x80] sm:$0xff] %v2749
    %2782 = vst [vmem:[%s5 + $0x88] sm:$0xff] %v2750
    %2783 = vst [vmem:[%s5 + $0x90] sm:$0xff] %v2751
    %2784 = vst [vmem:[%s5 + $0x98] sm:$0xff] %v2752
    %2785 = vst [vmem:[%s5 + $0xa0] sm:$0xff] %v2753
    %2786 = vst [vmem:[%s5 + $0xa8] sm:$0xff] %v2754
    %2787 = vst [vmem:[%s5 + $0xb0] sm:$0xff] %v2755
    %2788 = vst [vmem:[%s5 + $0xb8] sm:$0xff] %v2756
    %2789 = vst [vmem:[%s5 + $0xc0] sm:$0xff] %v2757
    %2790 = vst [vmem:[%s5 + $0xc8] sm:$0xff] %v2758
    %2791 = vst [vmem:[%s5 + $0xd0] sm:$0xff] %v2759
    %2792 = vst [vmem:[%s5 + $0xd8] sm:$0xff] %v2760
    %2793 = vst [vmem:[%s5 + $0xe0] sm:$0xff] %v2761
    %2794 = vst [vmem:[%s5 + $0xe8] sm:$0xff] %v2762
    %2795 = vst [vmem:[%s5 + $0xf0] sm:$0xff] %v2763
    %2796 = vst [vmem:[%s5 + $0xf8] sm:$0xff] %v2764
    // Predicated region
    $region42: #{forward_linear_decoder.1} parent=1 // pred_check
      _
    $region43: #{forward_linear_decoder.1} parent=1 // pred_check_branch
      %2798 = sbr.rel (0) target = $region45
    $region44: #{forward_linear_decoder.1} parent=1 // pred_region
      _
    $region45: #{forward_linear_decoder.1} parent=1 // pred_fallthru
      _
    // Predicated region
    $region46: #{forward_linear_decoder.1} parent=1 // pred_check
      _
    $region47: #{forward_linear_decoder.1} parent=1 // pred_check_branch
      %2800 = sbr.rel (0) target = $region49
    $region48: #{forward_linear_decoder.1} parent=1 // pred_region
      _
    $region49: #{forward_linear_decoder.1} parent=1 // pred_fallthru
      _
    %2801 = vsyncpa [#allocation3], 1
    %2802 = vsyncpa [#allocation5], 1
    %2803 = vsyncpa [#allocation8], 1

</llo_original>
